<compile_context>
chip_gen: v6e
topology: v6e:2x2x1
jax: 0.10.0
libtpu: 0.0.40
codegen_flags: <defaults>
</compile_context>

<pallas_src>
import functools

import jax
import jax.numpy as jnp
from jax import lax
from jax.experimental import pallas as pl
from jax.experimental.pallas import tpu as pltpu

EPS = 1e-5
LANES = 128   # channel padding granularity (lane-dense)


def _conv_stats_kernel(x_ref, w_ref, scale_ref, shift_ref,
                       y_ref, stats_ref, xp_s, op_s, *, apply_pre):
    """One batch tile: (optional affine+relu) -> 3x3 conv -> per-tile stats.

    x_ref     : (1, H, W, Cp)    input tile, NHWC, channels lane-dense
    w_ref     : (3, 3*Cp, Cp)    conv weight, (kh, kw*Cin, Cout), pre-flattened
    scale_ref : (1, Cp)          folded BN affine for the *input*
    shift_ref : (1, Cp)          (only used when apply_pre=True)
    y_ref     : (1, H, W, Cp)    conv output tile
    stats_ref : (1, 2, Cp)       row 0 = per-channel sum, row 1 = sum of squares
    xp_s      : (H+2, W+2, Cp)   VMEM scratch: halo-padded tile
    op_s      : (H+2, W, 3*Cp)   VMEM scratch: kw-unrolled operand (im2col/kw)
    """
    _, H, W, Cin = x_ref.shape
    Cout = w_ref.shape[-1]

    h = x_ref[0].astype(jnp.float32)                       # (H, W, Cin)
    if apply_pre:
        # Fused bn(previous conv) + relu, BN folded to per-channel affine.
        h = jnp.maximum(h * scale_ref[...] + shift_ref[...], 0.0)

    # Halo-padded tile: zero ONLY the 1-pixel border; interior is overwritten.
    zrow = jnp.zeros((1, W + 2, Cin), jnp.float32)
    zcol = jnp.zeros((H + 2, 1, Cin), jnp.float32)
    xp_s[0:1, :, :] = zrow
    xp_s[H + 1:H + 2, :, :] = zrow
    xp_s[:, 0:1, :] = zcol
    xp_s[:, W + 1:W + 2, :] = zcol
    xp_s[1:H + 1, 1:W + 1, :] = h

    # Build the kw-unrolled operand ONCE (lane-tile-aligned channel blocks);
    # each kh matmul then reads a free slice along the major (row) dim.
    op_s[:, :, 0:Cin] = xp_s[:, 0:W, :]
    op_s[:, :, Cin:2 * Cin] = xp_s[:, 1:W + 1, :]
    op_s[:, :, 2 * Cin:3 * Cin] = xp_s[:, 2:W + 2, :]

    # 3x3 conv (stride=1, pad=1) as 3 MXU matmuls (K = 3*Cin).
    acc = jnp.zeros((H * W, Cout), jnp.float32)
    for kh in range(3):
        lhs = op_s[kh:kh + H, :, :].reshape(H * W, 3 * Cin)
        acc = acc + jnp.dot(lhs, w_ref[kh],
                            preferred_element_type=jnp.float32)

    y_ref[0] = acc.reshape(H, W, Cout).astype(y_ref.dtype)
    # Per-tile partial BN statistics (combined across tiles in the wrapper).
    stats_ref[0] = jnp.concatenate(
        [jnp.sum(acc, axis=0, keepdims=True),
         jnp.sum(acc * acc, axis=0, keepdims=True)], axis=0)


def _bn_residual_relu_kernel(y_ref, x_ref, scale_ref, shift_ref, out_ref):
    """out = relu(bn2(conv2_out) + residual) for one batch tile."""
    y = y_ref[0].astype(jnp.float32)
    x = x_ref[0].astype(jnp.float32)
    out_ref[0] = jnp.maximum(y * scale_ref[...] + shift_ref[...] + x,
                             0.0).astype(out_ref.dtype)


def _conv_pass(x, w_flat, scale, shift, *, apply_pre):
    """Batch-tiled conv (+ optional fused input affine/relu) + BN partials."""
    N, H, W, Cp = x.shape
    kernel = functools.partial(_conv_stats_kernel, apply_pre=apply_pre)
    act_spec = pl.BlockSpec((1, H, W, Cp), lambda n: (n, 0, 0, 0))
    vec_spec = pl.BlockSpec((1, Cp), lambda n: (0, 0))
    return pl.pallas_call(
        kernel,
        grid=(N,),
        in_specs=[
            act_spec,
            pl.BlockSpec((3, 3 * Cp, Cp), lambda n: (0, 0, 0)),
            vec_spec,
            vec_spec,
        ],
        out_specs=(
            act_spec,
            pl.BlockSpec((1, 2, Cp), lambda n: (n, 0, 0)),
        ),
        out_shape=(
            jax.ShapeDtypeStruct((N, H, W, Cp), jnp.float32),
            jax.ShapeDtypeStruct((N, 2, Cp), jnp.float32),
        ),
        scratch_shapes=[
            pltpu.VMEM((H + 2, W + 2, Cp), jnp.float32),
            pltpu.VMEM((H + 2, W, 3 * Cp), jnp.float32),
        ],
        compiler_params=pltpu.CompilerParams(
            dimension_semantics=("parallel",)),
    )(x, w_flat, scale, shift)


def _bn_affine(stats, gamma, beta, count):
    """Fold training-mode BatchNorm (batch stats) into per-channel affine."""
    mean = jnp.sum(stats[:, 0, :], axis=0, keepdims=True) / count   # (1, Cp)
    ex2 = jnp.sum(stats[:, 1, :], axis=0, keepdims=True) / count
    var = jnp.maximum(ex2 - mean * mean, 0.0)
    scale = gamma * lax.rsqrt(var + EPS)
    shift = beta - mean * scale
    return scale, shift


def basic_block_forward(x_nchw, w1_oihw, g1, b1, w2_oihw, g2, b2):
    """Fused BasicBlock forward. x_nchw: (N, C, H, W) float32."""
    N, C, H, W = x_nchw.shape
    P = w1_oihw.shape[0]
    assert P == C, "stride=1 / downsample=None requires planes == inplanes"

    Cp = ((C + LANES - 1) // LANES) * LANES

    # NCHW -> NHWC; channels zero-padded to Cp so the lane dim is dense.
    x_nhwc = jnp.transpose(x_nchw, (0, 2, 3, 1))
    x_p = jnp.pad(x_nhwc, ((0, 0), (0, 0), (0, 0), (0, Cp - C)))

    # OIHW -> HWIO, both channel dims padded to Cp, kw folded into K up front.
    def prep_w(w_oihw):
        w_hwio = jnp.transpose(w_oihw, (2, 3, 1, 0))
        ci, co = w_hwio.shape[2], w_hwio.shape[3]
        w_pad = jnp.pad(w_hwio, ((0, 0), (0, 0), (0, Cp - ci), (0, Cp - co)))
        return w_pad.reshape(3, 3 * Cp, Cp).astype(jnp.float32)

    def prep_gb(g, b):
        # gamma/beta padded with zeros -> padded channels stay exactly zero.
        return (jnp.pad(g, (0, Cp - C)).reshape(1, Cp).astype(jnp.float32),
                jnp.pad(b, (0, Cp - C)).reshape(1, Cp).astype(jnp.float32))

    w1p, w2p = prep_w(w1_oihw), prep_w(w2_oihw)
    g1p, b1p = prep_gb(g1, b1)
    g2p, b2p = prep_gb(g2, b2)

    ident = jnp.ones((1, Cp), jnp.float32)
    zero = jnp.zeros((1, Cp), jnp.float32)
    count = N * H * W

    # Pass 1: conv1 + per-tile BN statistics.
    y1, st1 = _conv_pass(x_p, w1p, ident, zero, apply_pre=False)
    scale1, shift1 = _bn_affine(st1, g1p, b1p, count)

    # Pass 2: fused bn1+relu into conv2 + per-tile BN statistics.
    y2, st2 = _conv_pass(y1, w2p, scale1, shift1, apply_pre=True)
    scale2, shift2 = _bn_affine(st2, g2p, b2p, count)

    # Pass 3: bn2 + residual add + relu (batch-tiled, elementwise).
    act_spec = pl.BlockSpec((1, H, W, Cp), lambda n: (n, 0, 0, 0))
    vec_spec = pl.BlockSpec((1, Cp), lambda n: (0, 0))
    out_p = pl.pallas_call(
        _bn_residual_relu_kernel,
        grid=(N,),
        in_specs=[act_spec, act_spec, vec_spec, vec_spec],
        out_specs=act_spec,
        out_shape=jax.ShapeDtypeStruct((N, H, W, Cp), x_nchw.dtype),
        compiler_params=pltpu.CompilerParams(
            dimension_semantics=("parallel",)),
    )(y2, x_p, scale2, shift2)

    return jnp.transpose(out_p[..., :C], (0, 3, 1, 2))


def reference_forward(x, w1_oihw, g1, b1, w2_oihw, g2, b2):
    """Pure-JAX reference matching PyTorch BasicBlock.forward (training BN)."""
    def conv(h, w):
        return lax.conv_general_dilated(
            h, w, window_strides=(1, 1), padding=((1, 1), (1, 1)),
            dimension_numbers=("NCHW", "OIHW", "NCHW"))

    def bn(h, g, b):
        mu = jnp.mean(h, axis=(0, 2, 3), keepdims=True)
        var = jnp.mean((h - mu) ** 2, axis=(0, 2, 3), keepdims=True)
        return ((h - mu) * lax.rsqrt(var + EPS) * g.reshape(1, -1, 1, 1)
                + b.reshape(1, -1, 1, 1))

    h = jax.nn.relu(bn(conv(x, w1_oihw), g1, b1))
    h = bn(conv(h, w2_oihw), g2, b2)
    return jax.nn.relu(h + x)


if __name__ == "__main__":
    key = jax.random.PRNGKey(0)
    N, C, H, W = 2, 4, 16, 16           # inplanes = planes = 4, stride = 1
    P = C

    k_x, k_w1, k_w2, k_g1, k_b1, k_g2, k_b2 = jax.random.split(key, 7)
    x = jax.random.normal(k_x, (N, C, H, W), jnp.float32)

    # Deterministic synthetic parameters (PyTorch shapes: Conv2d weight OIHW)
    w1 = 0.1 * jax.random.normal(k_w1, (P, C, 3, 3), jnp.float32)
    w2 = 0.1 * jax.random.normal(k_w2, (P, P, 3, 3), jnp.float32)
    g1 = 1.0 + 0.1 * jax.random.normal(k_g1, (P,), jnp.float32)
    b1 = 0.1 * jax.random.normal(k_b1, (P,), jnp.float32)
    g2 = 1.0 + 0.1 * jax.random.normal(k_g2, (P,), jnp.float32)
    b2 = 0.1 * jax.random.normal(k_b2, (P,), jnp.float32)

    out = jax.block_until_ready(basic_block_forward(x, w1, g1, b1, w2, g2, b2))
    ref = jax.block_until_ready(reference_forward(x, w1, g1, b1, w2, g2, b2))

    assert out.shape == (N, C, H, W)
    max_err = jnp.max(jnp.abs(out - ref))
    assert jnp.allclose(out, ref, atol=2e-4, rtol=2e-4), (
        f"max abs err = {max_err}")

    print("KERNEL_OK")
</pallas_src>

<mosaic_0001>
module attributes {stable_mosaic.version = 11 : i64} {
  func.func @_conv_stats_kernel(%arg0: i32, %arg1: memref<1x16x16x128xf32, #tpu.memory_space<vmem>>, %arg2: memref<3x384x128xf32, #tpu.memory_space<vmem>>, %arg3: memref<1x128xf32, #tpu.memory_space<vmem>>, %arg4: memref<1x128xf32, #tpu.memory_space<vmem>>, %arg5: memref<1x16x16x128xf32, #tpu.memory_space<vmem>>, %arg6: memref<1x2x128xf32, #tpu.memory_space<vmem>>, %arg7: memref<18x18x128xf32, #tpu.memory_space<vmem>>, %arg8: memref<18x16x384xf32, #tpu.memory_space<vmem>>) attributes {dimension_semantics = [#tpu.dimension_semantics<parallel>], iteration_bounds = array<i64: 2>, scalar_prefetch = 0 : i64, scratch_operands = 2 : i64, tpu.core_type = #tpu.core_type<tc>, window_params = [{transform_indices = @transform_0, window_bounds = array<i64: 1, 16, 16, 128>}, {pipeline_mode = #tpu.pipeline_mode<synchronous>, transform_indices = @transform_1, window_bounds = array<i64: 3, 384, 128>}, {pipeline_mode = #tpu.pipeline_mode<synchronous>, transform_indices = @transform_2, window_bounds = array<i64: 1, 128>}, {pipeline_mode = #tpu.pipeline_mode<synchronous>, transform_indices = @transform_3, window_bounds = array<i64: 1, 128>}, {transform_indices = @transform_4, window_bounds = array<i64: 1, 16, 16, 128>}, {transform_indices = @transform_5, window_bounds = array<i64: 1, 2, 128>}]} {
    %c0 = arith.constant 0 : index
    %c0_0 = arith.constant 0 : index
    %c0_1 = arith.constant 0 : index
    %c0_2 = arith.constant 0 : index
    %0 = vector.load %arg1[%c0, %c0_0, %c0_1, %c0_2] : memref<1x16x16x128xf32, #tpu.memory_space<vmem>>, vector<1x16x16x128xf32>
    %1 = vector.shape_cast %0 : vector<1x16x16x128xf32> to vector<16x16x128xf32>
    %cst = arith.constant 0.000000e+00 : f32
    %2 = vector.broadcast %cst : f32 to vector<1x18x128xf32>
    %cst_3 = arith.constant 0.000000e+00 : f32
    %3 = vector.broadcast %cst_3 : f32 to vector<18x1x128xf32>
    %c0_4 = arith.constant 0 : index
    %c0_5 = arith.constant 0 : index
    %c0_6 = arith.constant 0 : index
    %4 = vector.load %arg7[%c0_4, %c0_5, %c0_6] : memref<18x18x128xf32, #tpu.memory_space<vmem>>, vector<1x18x128xf32>
    tpu.vector_store %arg7[%c0_4, %c0_5, %c0_6], %2 {strides = array<i32>} : memref<18x18x128xf32, #tpu.memory_space<vmem>>, vector<1x18x128xf32>,
    %c17 = arith.constant 17 : index
    %c0_7 = arith.constant 0 : index
    %c0_8 = arith.constant 0 : index
    %5 = vector.load %arg7[%c17, %c0_7, %c0_8] : memref<18x18x128xf32, #tpu.memory_space<vmem>>, vector<1x18x128xf32>
    tpu.vector_store %arg7[%c17, %c0_7, %c0_8], %2 {strides = array<i32>} : memref<18x18x128xf32, #tpu.memory_space<vmem>>, vector<1x18x128xf32>,
    %c0_9 = arith.constant 0 : index
    %c0_10 = arith.constant 0 : index
    %c0_11 = arith.constant 0 : index
    %6 = vector.load %arg7[%c0_9, %c0_10, %c0_11] : memref<18x18x128xf32, #tpu.memory_space<vmem>>, vector<18x1x128xf32>
    tpu.vector_store %arg7[%c0_9, %c0_10, %c0_11], %3 {strides = array<i32>} : memref<18x18x128xf32, #tpu.memory_space<vmem>>, vector<18x1x128xf32>,
    %c0_12 = arith.constant 0 : index
    %c17_13 = arith.constant 17 : index
    %c0_14 = arith.constant 0 : index
    %7 = vector.load %arg7[%c0_12, %c17_13, %c0_14] : memref<18x18x128xf32, #tpu.memory_space<vmem>>, vector<18x1x128xf32>
    tpu.vector_store %arg7[%c0_12, %c17_13, %c0_14], %3 {strides = array<i32>} : memref<18x18x128xf32, #tpu.memory_space<vmem>>, vector<18x1x128xf32>,
    %c1 = arith.constant 1 : index
    %c1_15 = arith.constant 1 : index
    %c0_16 = arith.constant 0 : index
    %8 = vector.load %arg7[%c1, %c1_15, %c0_16] : memref<18x18x128xf32, #tpu.memory_space<vmem>>, vector<16x16x128xf32>
    tpu.vector_store %arg7[%c1, %c1_15, %c0_16], %1 {strides = array<i32>} : memref<18x18x128xf32, #tpu.memory_space<vmem>>, vector<16x16x128xf32>,
    %c0_17 = arith.constant 0 : index
    %c0_18 = arith.constant 0 : index
    %c0_19 = arith.constant 0 : index
    %9 = vector.load %arg7[%c0_17, %c0_18, %c0_19] : memref<18x18x128xf32, #tpu.memory_space<vmem>>, vector<18x16x128xf32>
    %c0_20 = arith.constant 0 : index
    %c0_21 = arith.constant 0 : index
    %c0_22 = arith.constant 0 : index
    %10 = vector.load %arg8[%c0_20, %c0_21, %c0_22] : memref<18x16x384xf32, #tpu.memory_space<vmem>>, vector<18x16x128xf32>
    tpu.vector_store %arg8[%c0_20, %c0_21, %c0_22], %9 {strides = array<i32>} : memref<18x16x384xf32, #tpu.memory_space<vmem>>, vector<18x16x128xf32>,
    %c0_23 = arith.constant 0 : index
    %c1_24 = arith.constant 1 : index
    %c0_25 = arith.constant 0 : index
    %11 = vector.load %arg7[%c0_23, %c1_24, %c0_25] : memref<18x18x128xf32, #tpu.memory_space<vmem>>, vector<18x16x128xf32>
    %c0_26 = arith.constant 0 : index
    %c0_27 = arith.constant 0 : index
    %c128 = arith.constant 128 : index
    %12 = vector.load %arg8[%c0_26, %c0_27, %c128] : memref<18x16x384xf32, #tpu.memory_space<vmem>>, vector<18x16x128xf32>
    tpu.vector_store %arg8[%c0_26, %c0_27, %c128], %11 {strides = array<i32>} : memref<18x16x384xf32, #tpu.memory_space<vmem>>, vector<18x16x128xf32>,
    %c0_28 = arith.constant 0 : index
    %c2 = arith.constant 2 : index
    %c0_29 = arith.constant 0 : index
    %13 = vector.load %arg7[%c0_28, %c2, %c0_29] : memref<18x18x128xf32, #tpu.memory_space<vmem>>, vector<18x16x128xf32>
    %c0_30 = arith.constant 0 : index
    %c0_31 = arith.constant 0 : index
    %c256 = arith.constant 256 : index
    %14 = vector.load %arg8[%c0_30, %c0_31, %c256] : memref<18x16x384xf32, #tpu.memory_space<vmem>>, vector<18x16x128xf32>
    tpu.vector_store %arg8[%c0_30, %c0_31, %c256], %13 {strides = array<i32>} : memref<18x16x384xf32, #tpu.memory_space<vmem>>, vector<18x16x128xf32>,
    %cst_32 = arith.constant 0.000000e+00 : f32
    %15 = vector.broadcast %cst_32 : f32 to vector<256x128xf32>
    %c0_33 = arith.constant 0 : index
    %c0_34 = arith.constant 0 : index
    %c0_35 = arith.constant 0 : index
    %16 = vector.load %arg8[%c0_33, %c0_34, %c0_35] : memref<18x16x384xf32, #tpu.memory_space<vmem>>, vector<16x16x384xf32>
    %17 = vector.shape_cast %16 : vector<16x16x384xf32> to vector<256x384xf32>
    %c0_36 = arith.constant 0 : index
    %c0_37 = arith.constant 0 : index
    %c0_38 = arith.constant 0 : index
    %18 = vector.load %arg2[%c0_36, %c0_37, %c0_38] : memref<3x384x128xf32, #tpu.memory_space<vmem>>, vector<1x384x128xf32>
    %19 = vector.shape_cast %18 : vector<1x384x128xf32> to vector<384x128xf32>
    %cst_39 = arith.constant dense<0.000000e+00> : vector<256x128xf32>
    %20 = tpu.matmul %17, %19, %cst_39 {dimension_numbers = #tpu.dot_dimension_numbers<[1], [0], [0], [1], [0, 0, 1, 1], [], []>} : vector<256x384xf32>, vector<384x128xf32>, vector<256x128xf32> -> vector<256x128xf32>
    %21 = arith.addf %15, %20 : vector<256x128xf32>
    %c1_40 = arith.constant 1 : index
    %c0_41 = arith.constant 0 : index
    %c0_42 = arith.constant 0 : index
    %22 = vector.load %arg8[%c1_40, %c0_41, %c0_42] : memref<18x16x384xf32, #tpu.memory_space<vmem>>, vector<16x16x384xf32>
    %23 = vector.shape_cast %22 : vector<16x16x384xf32> to vector<256x384xf32>
    %c1_43 = arith.constant 1 : index
    %c0_44 = arith.constant 0 : index
    %c0_45 = arith.constant 0 : index
    %24 = vector.load %arg2[%c1_43, %c0_44, %c0_45] : memref<3x384x128xf32, #tpu.memory_space<vmem>>, vector<1x384x128xf32>
    %25 = vector.shape_cast %24 : vector<1x384x128xf32> to vector<384x128xf32>
    %cst_46 = arith.constant dense<0.000000e+00> : vector<256x128xf32>
    %26 = tpu.matmul %23, %25, %cst_46 {dimension_numbers = #tpu.dot_dimension_numbers<[1], [0], [0], [1], [0, 0, 1, 1], [], []>} : vector<256x384xf32>, vector<384x128xf32>, vector<256x128xf32> -> vector<256x128xf32>
    %27 = arith.addf %21, %26 : vector<256x128xf32>
    %c2_47 = arith.constant 2 : index
    %c0_48 = arith.constant 0 : index
    %c0_49 = arith.constant 0 : index
    %28 = vector.load %arg8[%c2_47, %c0_48, %c0_49] : memref<18x16x384xf32, #tpu.memory_space<vmem>>, vector<16x16x384xf32>
    %29 = vector.shape_cast %28 : vector<16x16x384xf32> to vector<256x384xf32>
    %c2_50 = arith.constant 2 : index
    %c0_51 = arith.constant 0 : index
    %c0_52 = arith.constant 0 : index
    %30 = vector.load %arg2[%c2_50, %c0_51, %c0_52] : memref<3x384x128xf32, #tpu.memory_space<vmem>>, vector<1x384x128xf32>
    %31 = vector.shape_cast %30 : vector<1x384x128xf32> to vector<384x128xf32>
    %cst_53 = arith.constant dense<0.000000e+00> : vector<256x128xf32>
    %32 = tpu.matmul %29, %31, %cst_53 {dimension_numbers = #tpu.dot_dimension_numbers<[1], [0], [0], [1], [0, 0, 1, 1], [], []>} : vector<256x384xf32>, vector<384x128xf32>, vector<256x128xf32> -> vector<256x128xf32>
    %33 = arith.addf %27, %32 : vector<256x128xf32>
    %34 = vector.shape_cast %33 : vector<256x128xf32> to vector<16x16x128xf32>
    %c0_54 = arith.constant 0 : index
    %c0_55 = arith.constant 0 : index
    %c0_56 = arith.constant 0 : index
    %c0_57 = arith.constant 0 : index
    %35 = vector.load %arg5[%c0_54, %c0_55, %c0_56, %c0_57] : memref<1x16x16x128xf32, #tpu.memory_space<vmem>>, vector<1x16x16x128xf32>
    %36 = vector.shape_cast %35 : vector<1x16x16x128xf32> to vector<16x16x128xf32>
    %37 = vector.shape_cast %34 : vector<16x16x128xf32> to vector<1x16x16x128xf32>
    tpu.vector_store %arg5[%c0_54, %c0_55, %c0_56, %c0_57], %37 {strides = array<i32>} : memref<1x16x16x128xf32, #tpu.memory_space<vmem>>, vector<1x16x16x128xf32>,
    %cst_58 = arith.constant dense<0.000000e+00> : vector<128xf32>
    %38 = vector.multi_reduction <add>, %33, %cst_58 [0] : vector<256x128xf32> to vector<128xf32>
    %39 = vector.shape_cast %38 : vector<128xf32> to vector<1x128xf32>
    %40 = arith.mulf %33, %33 : vector<256x128xf32>
    %cst_59 = arith.constant dense<0.000000e+00> : vector<128xf32>
    %41 = vector.multi_reduction <add>, %40, %cst_59 [0] : vector<256x128xf32> to vector<128xf32>
    %42 = vector.shape_cast %41 : vector<128xf32> to vector<1x128xf32>
    %43 = tpu.concatenate %39, %42 in 0 : vector<1x128xf32>, vector<1x128xf32> -> vector<2x128xf32>
    %c0_60 = arith.constant 0 : index
    %c0_61 = arith.constant 0 : index
    %c0_62 = arith.constant 0 : index
    %44 = vector.load %arg6[%c0_60, %c0_61, %c0_62] : memref<1x2x128xf32, #tpu.memory_space<vmem>>, vector<1x2x128xf32>
    %45 = vector.shape_cast %44 : vector<1x2x128xf32> to vector<2x128xf32>
    %46 = vector.shape_cast %43 : vector<2x128xf32> to vector<1x2x128xf32>
    tpu.vector_store %arg6[%c0_60, %c0_61, %c0_62], %46 {strides = array<i32>} : memref<1x2x128xf32, #tpu.memory_space<vmem>>, vector<1x2x128xf32>,
    return
  }
  func.func @transform_0(%arg0: i32) -> (i32, i32, i32, i32) {
    %c0_i32 = arith.constant 0 : i32
    %c0_i32_0 = arith.constant 0 : i32
    %c0_i32_1 = arith.constant 0 : i32
    %c0_i32_2 = arith.constant 0 : i32
    return %arg0, %c0_i32, %c0_i32_0, %c0_i32_1 : i32, i32, i32, i32
  }
  func.func @transform_1(%arg0: i32) -> (i32, i32, i32) {
    %c0_i32 = arith.constant 0 : i32
    %c0_i32_0 = arith.constant 0 : i32
    %c0_i32_1 = arith.constant 0 : i32
    %c0_i32_2 = arith.constant 0 : i32
    return %c0_i32, %c0_i32_0, %c0_i32_1 : i32, i32, i32
  }
  func.func @transform_2(%arg0: i32) -> (i32, i32) {
    %c0_i32 = arith.constant 0 : i32
    %c0_i32_0 = arith.constant 0 : i32
    %c0_i32_1 = arith.constant 0 : i32
    return %c0_i32, %c0_i32_0 : i32, i32
  }
  func.func @transform_3(%arg0: i32) -> (i32, i32) {
    %c0_i32 = arith.constant 0 : i32
    %c0_i32_0 = arith.constant 0 : i32
    %c0_i32_1 = arith.constant 0 : i32
    return %c0_i32, %c0_i32_0 : i32, i32
  }
  func.func @transform_4(%arg0: i32) -> (i32, i32, i32, i32) {
    %c0_i32 = arith.constant 0 : i32
    %c0_i32_0 = arith.constant 0 : i32
    %c0_i32_1 = arith.constant 0 : i32
    %c0_i32_2 = arith.constant 0 : i32
    return %arg0, %c0_i32, %c0_i32_0, %c0_i32_1 : i32, i32, i32, i32
  }
  func.func @transform_5(%arg0: i32) -> (i32, i32, i32) {
    %c0_i32 = arith.constant 0 : i32
    %c0_i32_0 = arith.constant 0 : i32
    %c0_i32_1 = arith.constant 0 : i32
    return %arg0, %c0_i32, %c0_i32_0 : i32, i32, i32
  }
}

</mosaic_0001>

<llo_original>
// kernel: tpu_custom_call.1
$region0: #{tpu_custom_call.1}
  #allocation0 [shape = 'u32[]', space=smem, size = 0x4, offset = 0x4, fixed_abs, tag = 'smem constant byte address 0x4 - core index']
  #allocation1 [shape = 'u32[144,128]{1,0:T(1,128)}', space=vmem, size = 0x12000, scoped, tag = 'internal scratch']
  #allocation2 [shape = 'f32[18,18,128]{2,1,0:T(8,128)}', space=vmem, size = 0x36000, scoped, tag = 'scratch operand']
  #allocation3 [shape = 'f32[18,16,384]{2,1,0:T(8,128)}', space=vmem, size = 0x6c000, scoped, tag = 'scratch operand']
  %s0 = inlined_call_operand.hbm [shape: f32[2,16,16,128], index: 0, kind: input, shape index: {}]
  %s1 = inlined_call_operand.hbm [shape: f32[3,384,128], index: 1, kind: input, shape index: {}]
  %s2 = inlined_call_operand.vmem [shape: f32[1,128], index: 2, kind: input, shape index: {}]
  %s3 = inlined_call_operand.vmem [shape: f32[1,128], index: 3, kind: input, shape index: {}]
  %s4 = inlined_call_operand.hbm [shape: f32[2,16,16,128], index: 4, kind: output, shape index: {0}]
  %s5 = inlined_call_operand.hbm [shape: f32[2,2,128], index: 5, kind: output, shape index: {1}]
  %6 = xla_tuple %s4, %s5
  %s7 = sld [smem:[#allocation0]]
  $region65: #{tpu_custom_call.1} parent=0
    _
  %s9 = ssub.s32 1, %s7
  %s10 = scalar_select 0, %s9, %s7
  $region1: #{tpu_custom_call.1} parent=0
    #allocation4 [shape = 'u8[262144]{0}', space=vmem, size = 0x40000, scoped, tag = 'input window, operand 0']
    #allocation5 [shape = 's32[2]{0}', space=sflag, size = 0x8, scoped, tag = 'scoped memory for tpu_custom_call.1']
    #allocation6 [shape = 's32[2]{0}', space=sflag, size = 0x8, scoped, tag = 'scoped memory for tpu_custom_call.1']
    #allocation7 [shape = 'u8[589824]{0}', space=vmem, size = 0x90000, scoped, tag = 'input window, operand 1, single buffered']
    #allocation8 [shape = 's32[1]{0}', space=sflag, size = 0x4, scoped, tag = 'scoped memory for tpu_custom_call.1']
    #allocation9 [shape = 'u8[262144]{0}', space=vmem, size = 0x40000, scoped, tag = 'output window, operand 0']
    #allocation10 [shape = 'u8[2048]{0}', space=vmem, size = 0x800, scoped, tag = 'output window, operand 1']
    #allocation11 [shape = 's32[2]{0}', space=sflag, size = 0x8, scoped, tag = 'scoped memory for tpu_custom_call.1']
    %11 = vsyncpa [#allocation5], 0
    %s12 = scalar_lea.sflag [#allocation5], 1
    %13 = vsyncpa %s12, 0
    %14 = vsyncpa [#allocation8], 0
    %15 = vsyncpa [#allocation6], 0
    %s16 = scalar_lea.sflag [#allocation6], 1
    %17 = vsyncpa %s16, 0
    %18 = vsyncpa [#allocation11], 0
    %s19 = scalar_lea.sflag [#allocation11], 1
    %20 = vsyncpa %s19, 0
    loop: start=0, step=1, limit=4
    $region2: #{tpu_custom_call.1} parent=1 // loop_pre_header
      _
    $region3: #{tpu_custom_call.1} parent=1 // loop_header
      %s22 = sphi 0, %s26
      %p23 = scmp.ge.s32.totalorder %s22, 4
      %s32 = sphi 0, %s34
      %s35 = sphi 0, %s32
      %s36 = sphi 0, %s35
      %s52 = sphi 0, %s36
      %s56 = sphi 0, %s56
      %s58 = sphi 0, %s56
      %s59 = sphi 0, %s58
      %s73 = sphi 0, %s59
      %s77 = sphi 0, %s77
      %s79 = sphi 0, %s77
      %s80 = sphi 0, %s79
      %s94 = sphi 0, %s80
      %s98 = sphi 0, %s98
      %s100 = sphi 0, %s98
      %s101 = sphi 0, %s100
      %s115 = sphi 0, %s101
      %s121 = sphi 0, %s123
      %s124 = sphi 0, %s121
      %s125 = sphi 0, %s124
      %s141 = sphi 0, %s125
      %s147 = sphi 0, %s149
      %s150 = sphi 0, %s147
      %s151 = sphi 0, %s150
      %s167 = sphi 0, %s151
    $region4: #{tpu_custom_call.1} parent=1 // loop_header_branch
      %25 = sbr.rel (%p23) target = $region8
    $region5: #{tpu_custom_call.1} parent=1 // loop_body
      %s27 = ssub.s32 %s22, 1
      %s28 = ssub.s32 %s22, 2
      %s29 = sadd.s32 %s22, 1
      %s30 = ssub.s32 %s22, %s29
      %p31 = scmp.eq.s32.totalorder %s30, 0
      %s33 = sadd.s32 %s32, 1
      %s34 = scalar_select %p31, %s32, %s33
      %p37 = pneg %p31
      %p38 = scmp.eq.s32.totalorder %s22, 1
      %p39 = por %p37, %p38
      %p40 = scmp.ne.s32.totalorder %s32, %s35
      %p41 = scmp.eq.s32.totalorder %s22, 0
      %p42 = por %p40, %p41
      %p43 = scmp.ne.s32.totalorder %s32, %s35
      %p44 = scmp.eq.s32.totalorder %s27, 1
      %p45 = por %p43, %p44
      %p46 = scmp.ne.s32.totalorder %s35, %s36
      %p47 = scmp.eq.s32.totalorder %s27, 0
      %p48 = por %p46, %p47
      %p49 = scmp.ne.s32.totalorder %s35, %s36
      %p50 = scmp.eq.s32.totalorder %s28, 1
      %p51 = por %p49, %p50
      %p53 = scmp.ne.s32.totalorder %s36, %s52
      %p54 = scmp.eq.s32.totalorder %s28, 0
      %p55 = por %p53, %p54
      %s57 = sadd.s32 %s56, 1
      %p60 = scmp.eq.s32.totalorder %s22, 1
      %p61 = scmp.ne.s32.totalorder %s56, %s58
      %p62 = scmp.eq.s32.totalorder %s22, 0
      %p63 = por %p61, %p62
      %p64 = scmp.ne.s32.totalorder %s56, %s58
      %p65 = scmp.eq.s32.totalorder %s27, 1
      %p66 = por %p64, %p65
      %p67 = scmp.ne.s32.totalorder %s58, %s59
      %p68 = scmp.eq.s32.totalorder %s27, 0
      %p69 = por %p67, %p68
      %p70 = scmp.ne.s32.totalorder %s58, %s59
      %p71 = scmp.eq.s32.totalorder %s28, 1
      %p72 = por %p70, %p71
      %p74 = scmp.ne.s32.totalorder %s59, %s73
      %p75 = scmp.eq.s32.totalorder %s28, 0
      %p76 = por %p74, %p75
      %s78 = sadd.s32 %s77, 1
      %p81 = scmp.eq.s32.totalorder %s22, 1
      %p82 = scmp.ne.s32.totalorder %s77, %s79
      %p83 = scmp.eq.s32.totalorder %s22, 0
      %p84 = por %p82, %p83
      %p85 = scmp.ne.s32.totalorder %s77, %s79
      %p86 = scmp.eq.s32.totalorder %s27, 1
      %p87 = por %p85, %p86
      %p88 = scmp.ne.s32.totalorder %s79, %s80
      %p89 = scmp.eq.s32.totalorder %s27, 0
      %p90 = por %p88, %p89
      %p91 = scmp.ne.s32.totalorder %s79, %s80
      %p92 = scmp.eq.s32.totalorder %s28, 1
      %p93 = por %p91, %p92
      %p95 = scmp.ne.s32.totalorder %s80, %s94
      %p96 = scmp.eq.s32.totalorder %s28, 0
      %p97 = por %p95, %p96
      %s99 = sadd.s32 %s98, 1
      %p102 = scmp.eq.s32.totalorder %s22, 1
      %p103 = scmp.ne.s32.totalorder %s98, %s100
      %p104 = scmp.eq.s32.totalorder %s22, 0
      %p105 = por %p103, %p104
      %p106 = scmp.ne.s32.totalorder %s98, %s100
      %p107 = scmp.eq.s32.totalorder %s27, 1
      %p108 = por %p106, %p107
      %p109 = scmp.ne.s32.totalorder %s100, %s101
      %p110 = scmp.eq.s32.totalorder %s27, 0
      %p111 = por %p109, %p110
      %p112 = scmp.ne.s32.totalorder %s100, %s101
      %p113 = scmp.eq.s32.totalorder %s28, 1
      %p114 = por %p112, %p113
      %p116 = scmp.ne.s32.totalorder %s101, %s115
      %p117 = scmp.eq.s32.totalorder %s28, 0
      %p118 = por %p116, %p117
      %s119 = ssub.s32 %s22, %s29
      %p120 = scmp.eq.s32.totalorder %s119, 0
      %s122 = sadd.s32 %s121, 1
      %s123 = scalar_select %p120, %s121, %s122
      %p126 = pneg %p120
      %p127 = scmp.eq.s32.totalorder %s22, 1
      %p128 = por %p126, %p127
      %p129 = scmp.ne.s32.totalorder %s121, %s124
      %p130 = scmp.eq.s32.totalorder %s22, 0
      %p131 = por %p129, %p130
      %p132 = scmp.ne.s32.totalorder %s121, %s124
      %p133 = scmp.eq.s32.totalorder %s27, 1
      %p134 = por %p132, %p133
      %p135 = scmp.ne.s32.totalorder %s124, %s125
      %p136 = scmp.eq.s32.totalorder %s27, 0
      %p137 = por %p135, %p136
      %p138 = scmp.ne.s32.totalorder %s124, %s125
      %p139 = scmp.eq.s32.totalorder %s28, 1
      %p140 = por %p138, %p139
      %p142 = scmp.ne.s32.totalorder %s125, %s141
      %p143 = scmp.eq.s32.totalorder %s28, 0
      %p144 = por %p142, %p143
      %s145 = ssub.s32 %s22, %s29
      %p146 = scmp.eq.s32.totalorder %s145, 0
      %s148 = sadd.s32 %s147, 1
      %s149 = scalar_select %p146, %s147, %s148
      %p152 = pneg %p146
      %p153 = scmp.eq.s32.totalorder %s22, 1
      %p154 = por %p152, %p153
      %p155 = scmp.ne.s32.totalorder %s147, %s150
      %p156 = scmp.eq.s32.totalorder %s22, 0
      %p157 = por %p155, %p156
      %p158 = scmp.ne.s32.totalorder %s147, %s150
      %p159 = scmp.eq.s32.totalorder %s27, 1
      %p160 = por %p158, %p159
      %p161 = scmp.ne.s32.totalorder %s150, %s151
      %p162 = scmp.eq.s32.totalorder %s27, 0
      %p163 = por %p161, %p162
      %p164 = scmp.ne.s32.totalorder %s150, %s151
      %p165 = scmp.eq.s32.totalorder %s28, 1
      %p166 = por %p164, %p165
      %p168 = scmp.ne.s32.totalorder %s151, %s167
      %p169 = scmp.eq.s32.totalorder %s28, 0
      %p170 = por %p168, %p169
      %p171 = scmp.le.s32.totalorder 1, %s22
      %p172 = scmp.lt.s32.totalorder %s22, 3
      %p173 = pnand %p171, %p172
      %p174 = pneg %p173
      // Predicated region
      $region9: #{tpu_custom_call.1} parent=5 // pred_check
        _
      $region10: #{tpu_custom_call.1} parent=5 // pred_check_branch
        %176 = sbr.rel (%p173) target = $region12
      $region11: #{tpu_custom_call.1} parent=5 // pred_region
        %s177 = ssub.s32 %s22, 1
        // Predicated region
        $region13: #{tpu_custom_call.1} parent=11 // pred_check
          %p178 = pneg %p69
        $region14: #{tpu_custom_call.1} parent=11 // pred_check_branch
          %180 = sbr.rel (%p178) target = $region16
        $region15: #{tpu_custom_call.1} parent=11 // pred_region
          %s182 = ssub.s32 18432, 18432
          %183 = vsyncadd [#allocation8], %s182
          %s184 = sshll.u32 [#allocation7], 4
          %s185 = int_to_ptr.vmem [resolvable:$true] %s184
          %190 = dma.hbm_to_vmem [thread:$0]  %s1, 18432, %s185, [#allocation8], 128, 128, 8
        $region16: #{tpu_custom_call.1} parent=11 // pred_fallthru
          _
        // Predicated region
        $region17: #{tpu_custom_call.1} parent=11 // pred_check
          %p191 = pneg %p90
        $region18: #{tpu_custom_call.1} parent=11 // pred_check_branch
          %193 = sbr.rel (%p191) target = $region20
        $region19: #{tpu_custom_call.1} parent=11 // pred_region
          _
        $region20: #{tpu_custom_call.1} parent=11 // pred_fallthru
          _
        // Predicated region
        $region21: #{tpu_custom_call.1} parent=11 // pred_check
          %p194 = pneg %p111
        $region22: #{tpu_custom_call.1} parent=11 // pred_check_branch
          %196 = sbr.rel (%p194) target = $region24
        $region23: #{tpu_custom_call.1} parent=11 // pred_region
          _
        $region24: #{tpu_custom_call.1} parent=11 // pred_fallthru
          _
      $region12: #{tpu_custom_call.1} parent=5 // pred_fallthru
        _
      %p197 = scmp.lt.s32.totalorder %s22, 2
      // Predicated region
      $region25: #{tpu_custom_call.1} parent=5 // pred_check
        %p198 = pneg %p197
      $region26: #{tpu_custom_call.1} parent=5 // pred_check_branch
        %200 = sbr.rel (%p198) target = $region28
      $region27: #{tpu_custom_call.1} parent=5 // pred_region
        // Predicated region
        $region29: #{tpu_custom_call.1} parent=27 // pred_check
          %p201 = pneg %p42
        $region30: #{tpu_custom_call.1} parent=27 // pred_check_branch
          %203 = sbr.rel (%p201) target = $region32
        $region31: #{tpu_custom_call.1} parent=27 // pred_region
          %s204 = sand.u32 %s32, 1
          %s205 = scalar_lea.sflag [#allocation5], %s204
          %s206 = sand.u32 %s32, 1
          %s207 = smul.addr %s206, 256
          %s208 = scalar_lea.vmem [#allocation4], %s207
          %s210 = ssub.s32 4096, 4096
          %211 = vsyncadd %s205, %s210
          %s212 = smul.addr %s22, 32
          %s213 = smul.addr %s212, 128
          %s214 = scalar_lea.hbm %s0, %s213
          %s215 = sshll.u32 %s208, 4
          %s216 = int_to_ptr.vmem [resolvable:$true] %s215
          %221 = dma.hbm_to_vmem [thread:$0]  %s214, 4096, %s216, %s205, 128, 128, 8
        $region32: #{tpu_custom_call.1} parent=27 // pred_fallthru
          _
      $region28: #{tpu_custom_call.1} parent=5 // pred_fallthru
        _
      %p222 = scmp.le.s32.totalorder 1, %s22
      %p223 = scmp.lt.s32.totalorder %s22, 3
      %p224 = pnand %p222, %p223
      %p225 = pneg %p224
      // Predicated region
      $region33: #{tpu_custom_call.1} parent=5 // pred_check
        _
      $region34: #{tpu_custom_call.1} parent=5 // pred_check_branch
        %227 = sbr.rel (%p224) target = $region36
      $region35: #{tpu_custom_call.1} parent=5 // pred_region
        %s228 = ssub.s32 %s22, 1
        %s229 = sand.u32 %s35, 1
        %s230 = scalar_lea.sflag [#allocation5], %s229
        %s231 = sand.u32 %s35, 1
        %s232 = smul.addr %s231, 256
        %s233 = scalar_lea.vmem [#allocation4], %s232
        // Predicated region
        $region37: #{tpu_custom_call.1} parent=35 // pred_check
          %p234 = pneg %p48
        $region38: #{tpu_custom_call.1} parent=35 // pred_check_branch
          %236 = sbr.rel (%p234) target = $region40
        $region39: #{tpu_custom_call.1} parent=35 // pred_region
          %237 = dma.done %s230, 4096
        $region40: #{tpu_custom_call.1} parent=35 // pred_fallthru
          _
        // Predicated region
        $region41: #{tpu_custom_call.1} parent=35 // pred_check
          %p238 = pneg %p69
        $region42: #{tpu_custom_call.1} parent=35 // pred_check_branch
          %240 = sbr.rel (%p238) target = $region44
        $region43: #{tpu_custom_call.1} parent=35 // pred_region
          %241 = dma.done [#allocation8], 18432
        $region44: #{tpu_custom_call.1} parent=35 // pred_fallthru
          _
        %s242 = sand.u32 %s35, 1
        %s243 = scalar_lea.sflag [#allocation5], %s242
        %s244 = sand.u32 %s35, 1
        %s245 = smul.addr %s244, 256
        %s246 = scalar_lea.vmem [#allocation4], %s245
        %p247 = pneg %p48
        %p248 = pneg %p45
        %p249 = pneg %p69
        %p250 = pneg %p66
        %p251 = pneg %p90
        %p252 = pneg %p87
        %p253 = pneg %p111
        %p254 = pneg %p108
        %p255 = pneg %p137
        %p256 = pneg %p134
        %s257 = sand.u32 %s124, 1
        %s258 = scalar_lea.sflag [#allocation6], %s257
        %s259 = sand.u32 %s124, 1
        %s260 = smul.addr %s259, 256
        %s261 = scalar_lea.vmem [#allocation9], %s260
        %p262 = pneg %p163
        %p263 = pneg %p160
        %s264 = sand.u32 %s150, 1
        %s265 = scalar_lea.sflag [#allocation11], %s264
        %s266 = sand.u32 %s150, 1
        %s267 = smul.addr %s266, 2
        %s268 = scalar_lea.vmem [#allocation10], %s267
        %v269 = vld [vmem:[%s233] sm:$0xff]
        %v270 = vld [vmem:[%s233 + $0x8] sm:$0xff]
        %v271 = vld [vmem:[%s233 + $0x10] sm:$0xff]
        %v272 = vld [vmem:[%s233 + $0x18] sm:$0xff]
        %v273 = vld [vmem:[%s233 + $0x20] sm:$0xff]
        %v274 = vld [vmem:[%s233 + $0x28] sm:$0xff]
        %v275 = vld [vmem:[%s233 + $0x30] sm:$0xff]
        %v276 = vld [vmem:[%s233 + $0x38] sm:$0xff]
        %v277 = vld [vmem:[%s233 + $0x40] sm:$0xff]
        %v278 = vld [vmem:[%s233 + $0x48] sm:$0xff]
        %v279 = vld [vmem:[%s233 + $0x50] sm:$0xff]
        %v280 = vld [vmem:[%s233 + $0x58] sm:$0xff]
        %v281 = vld [vmem:[%s233 + $0x60] sm:$0xff]
        %v282 = vld [vmem:[%s233 + $0x68] sm:$0xff]
        %v283 = vld [vmem:[%s233 + $0x70] sm:$0xff]
        %v284 = vld [vmem:[%s233 + $0x78] sm:$0xff]
        %v285 = vld [vmem:[%s233 + $0x80] sm:$0xff]
        %v286 = vld [vmem:[%s233 + $0x88] sm:$0xff]
        %v287 = vld [vmem:[%s233 + $0x90] sm:$0xff]
        %v288 = vld [vmem:[%s233 + $0x98] sm:$0xff]
        %v289 = vld [vmem:[%s233 + $0xa0] sm:$0xff]
        %v290 = vld [vmem:[%s233 + $0xa8] sm:$0xff]
        %v291 = vld [vmem:[%s233 + $0xb0] sm:$0xff]
        %v292 = vld [vmem:[%s233 + $0xb8] sm:$0xff]
        %v293 = vld [vmem:[%s233 + $0xc0] sm:$0xff]
        %v294 = vld [vmem:[%s233 + $0xc8] sm:$0xff]
        %v295 = vld [vmem:[%s233 + $0xd0] sm:$0xff]
        %v296 = vld [vmem:[%s233 + $0xd8] sm:$0xff]
        %v297 = vld [vmem:[%s233 + $0xe0] sm:$0xff]
        %v298 = vld [vmem:[%s233 + $0xe8] sm:$0xff]
        %v299 = vld [vmem:[%s233 + $0xf0] sm:$0xff]
        %v300 = vld [vmem:[%s233 + $0xf8] sm:$0xff]
        %301 = vst [vmem:[#allocation2] sm:$0xff] 0.0
        %302 = vst [vmem:[#allocation2 + $0x8] sm:$0xff] 0.0
        %303 = vst [vmem:[#allocation2 + $0x10] sm:$0x3] 0.0
        %s304 = scalar_lea.vmem [#allocation2], 408
        %305 = vst [vmem:[%s304] sm:$0xff] 0.0
        %306 = vst [vmem:[%s304 + $0x8] sm:$0xff] 0.0
        %307 = vst [vmem:[%s304 + $0x10] sm:$0x3] 0.0
        %308 = vst [vmem:[#allocation2] sm:$0x1] 0.0
        %309 = vst [vmem:[#allocation2 + $0x18] sm:$0x1] 0.0
        %310 = vst [vmem:[#allocation2 + $0x30] sm:$0x1] 0.0
        %311 = vst [vmem:[#allocation2 + $0x48] sm:$0x1] 0.0
        %312 = vst [vmem:[#allocation2 + $0x60] sm:$0x1] 0.0
        %313 = vst [vmem:[#allocation2 + $0x78] sm:$0x1] 0.0
        %314 = vst [vmem:[#allocation2 + $0x90] sm:$0x1] 0.0
        %315 = vst [vmem:[#allocation2 + $0xa8] sm:$0x1] 0.0
        %316 = vst [vmem:[#allocation2 + $0xc0] sm:$0x1] 0.0
        %317 = vst [vmem:[#allocation2 + $0xd8] sm:$0x1] 0.0
        %318 = vst [vmem:[#allocation2 + $0xf0] sm:$0x1] 0.0
        %319 = vst [vmem:[#allocation2 + $0x108] sm:$0x1] 0.0
        %320 = vst [vmem:[#allocation2 + $0x120] sm:$0x1] 0.0
        %321 = vst [vmem:[#allocation2 + $0x138] sm:$0x1] 0.0
        %322 = vst [vmem:[#allocation2 + $0x150] sm:$0x1] 0.0
        %323 = vst [vmem:[#allocation2 + $0x168] sm:$0x1] 0.0
        %324 = vst [vmem:[#allocation2 + $0x180] sm:$0x1] 0.0
        %325 = vst [vmem:[#allocation2 + $0x198] sm:$0x1] 0.0
        %326 = vst [vmem:[#allocation2 + $0x11] sm:$0x1] 0.0
        %327 = vst [vmem:[#allocation2 + $0x29] sm:$0x1] 0.0
        %328 = vst [vmem:[#allocation2 + $0x41] sm:$0x1] 0.0
        %329 = vst [vmem:[#allocation2 + $0x59] sm:$0x1] 0.0
        %330 = vst [vmem:[#allocation2 + $0x71] sm:$0x1] 0.0
        %331 = vst [vmem:[#allocation2 + $0x89] sm:$0x1] 0.0
        %332 = vst [vmem:[#allocation2 + $0xa1] sm:$0x1] 0.0
        %333 = vst [vmem:[#allocation2 + $0xb9] sm:$0x1] 0.0
        %334 = vst [vmem:[#allocation2 + $0xd1] sm:$0x1] 0.0
        %335 = vst [vmem:[#allocation2 + $0xe9] sm:$0x1] 0.0
        %336 = vst [vmem:[#allocation2 + $0x101] sm:$0x1] 0.0
        %337 = vst [vmem:[#allocation2 + $0x119] sm:$0x1] 0.0
        %338 = vst [vmem:[#allocation2 + $0x131] sm:$0x1] 0.0
        %339 = vst [vmem:[#allocation2 + $0x149] sm:$0x1] 0.0
        %340 = vst [vmem:[#allocation2 + $0x161] sm:$0x1] 0.0
        %341 = vst [vmem:[#allocation2 + $0x179] sm:$0x1] 0.0
        %342 = vst [vmem:[#allocation2 + $0x191] sm:$0x1] 0.0
        %343 = vst [vmem:[#allocation2 + $0x1a9] sm:$0x1] 0.0
        %s344 = scalar_lea.vmem [#allocation2], 24
        %345 = vst [vmem:[%s344 + $0x1] sm:$0xff] %v269
        %346 = vst [vmem:[%s344 + $0x9] sm:$0xff] %v270
        %347 = vst [vmem:[%s344 + $0x19] sm:$0xff] %v271
        %348 = vst [vmem:[%s344 + $0x21] sm:$0xff] %v272
        %349 = vst [vmem:[%s344 + $0x31] sm:$0xff] %v273
        %350 = vst [vmem:[%s344 + $0x39] sm:$0xff] %v274
        %351 = vst [vmem:[%s344 + $0x49] sm:$0xff] %v275
        %352 = vst [vmem:[%s344 + $0x51] sm:$0xff] %v276
        %353 = vst [vmem:[%s344 + $0x61] sm:$0xff] %v277
        %354 = vst [vmem:[%s344 + $0x69] sm:$0xff] %v278
        %355 = vst [vmem:[%s344 + $0x79] sm:$0xff] %v279
        %356 = vst [vmem:[%s344 + $0x81] sm:$0xff] %v280
        %357 = vst [vmem:[%s344 + $0x91] sm:$0xff] %v281
        %358 = vst [vmem:[%s344 + $0x99] sm:$0xff] %v282
        %359 = vst [vmem:[%s344 + $0xa9] sm:$0xff] %v283
        %360 = vst [vmem:[%s344 + $0xb1] sm:$0xff] %v284
        %361 = vst [vmem:[%s344 + $0xc1] sm:$0xff] %v285
        %362 = vst [vmem:[%s344 + $0xc9] sm:$0xff] %v286
        %363 = vst [vmem:[%s344 + $0xd9] sm:$0xff] %v287
        %364 = vst [vmem:[%s344 + $0xe1] sm:$0xff] %v288
        %365 = vst [vmem:[%s344 + $0xf1] sm:$0xff] %v289
        %366 = vst [vmem:[%s344 + $0xf9] sm:$0xff] %v290
        %367 = vst [vmem:[%s344 + $0x109] sm:$0xff] %v291
        %368 = vst [vmem:[%s344 + $0x111] sm:$0xff] %v292
        %369 = vst [vmem:[%s344 + $0x121] sm:$0xff] %v293
        %370 = vst [vmem:[%s344 + $0x129] sm:$0xff] %v294
        %371 = vst [vmem:[%s344 + $0x139] sm:$0xff] %v295
        %372 = vst [vmem:[%s344 + $0x141] sm:$0xff] %v296
        %373 = vst [vmem:[%s344 + $0x151] sm:$0xff] %v297
        %374 = vst [vmem:[%s344 + $0x159] sm:$0xff] %v298
        %375 = vst [vmem:[%s344 + $0x169] sm:$0xff] %v299
        %376 = vst [vmem:[%s344 + $0x171] sm:$0xff] %v300
        %v377 = vld [vmem:[#allocation2] sm:$0xff]
        %v378 = vld [vmem:[#allocation2 + $0x8] sm:$0xff]
        %v379 = vld [vmem:[#allocation2 + $0x18] sm:$0xff]
        %v380 = vld [vmem:[#allocation2 + $0x20] sm:$0xff]
        %v381 = vld [vmem:[#allocation2 + $0x30] sm:$0xff]
        %v382 = vld [vmem:[#allocation2 + $0x38] sm:$0xff]
        %v383 = vld [vmem:[#allocation2 + $0x48] sm:$0xff]
        %v384 = vld [vmem:[#allocation2 + $0x50] sm:$0xff]
        %v385 = vld [vmem:[#allocation2 + $0x60] sm:$0xff]
        %v386 = vld [vmem:[#allocation2 + $0x68] sm:$0xff]
        %v387 = vld [vmem:[#allocation2 + $0x78] sm:$0xff]
        %v388 = vld [vmem:[#allocation2 + $0x80] sm:$0xff]
        %v389 = vld [vmem:[#allocation2 + $0x90] sm:$0xff]
        %v390 = vld [vmem:[#allocation2 + $0x98] sm:$0xff]
        %v391 = vld [vmem:[#allocation2 + $0xa8] sm:$0xff]
        %v392 = vld [vmem:[#allocation2 + $0xb0] sm:$0xff]
        %v393 = vld [vmem:[#allocation2 + $0xc0] sm:$0xff]
        %v394 = vld [vmem:[#allocation2 + $0xc8] sm:$0xff]
        %v395 = vld [vmem:[#allocation2 + $0xd8] sm:$0xff]
        %v396 = vld [vmem:[#allocation2 + $0xe0] sm:$0xff]
        %v397 = vld [vmem:[#allocation2 + $0xf0] sm:$0xff]
        %v398 = vld [vmem:[#allocation2 + $0xf8] sm:$0xff]
        %v399 = vld [vmem:[#allocation2 + $0x108] sm:$0xff]
        %v400 = vld [vmem:[#allocation2 + $0x110] sm:$0xff]
        %v401 = vld [vmem:[#allocation2 + $0x120] sm:$0xff]
        %v402 = vld [vmem:[#allocation2 + $0x128] sm:$0xff]
        %v403 = vld [vmem:[#allocation2 + $0x138] sm:$0xff]
        %v404 = vld [vmem:[#allocation2 + $0x140] sm:$0xff]
        %v405 = vld [vmem:[#allocation2 + $0x150] sm:$0xff]
        %v406 = vld [vmem:[#allocation2 + $0x158] sm:$0xff]
        %v407 = vld [vmem:[#allocation2 + $0x168] sm:$0xff]
        %v408 = vld [vmem:[#allocation2 + $0x170] sm:$0xff]
        %v409 = vld [vmem:[#allocation2 + $0x180] sm:$0xff]
        %v410 = vld [vmem:[#allocation2 + $0x188] sm:$0xff]
        %v411 = vld [vmem:[#allocation2 + $0x198] sm:$0xff]
        %v412 = vld [vmem:[#allocation2 + $0x1a0] sm:$0xff]
        %413 = vst [vmem:[#allocation3] sm:$0xff] %v377
        %414 = vst [vmem:[#allocation3 + $0x18] sm:$0xff] %v378
        %415 = vst [vmem:[#allocation3 + $0x30] sm:$0xff] %v379
        %416 = vst [vmem:[#allocation3 + $0x48] sm:$0xff] %v380
        %417 = vst [vmem:[#allocation3 + $0x60] sm:$0xff] %v381
        %418 = vst [vmem:[#allocation3 + $0x78] sm:$0xff] %v382
        %419 = vst [vmem:[#allocation3 + $0x90] sm:$0xff] %v383
        %420 = vst [vmem:[#allocation3 + $0xa8] sm:$0xff] %v384
        %421 = vst [vmem:[#allocation3 + $0xc0] sm:$0xff] %v385
        %422 = vst [vmem:[#allocation3 + $0xd8] sm:$0xff] %v386
        %423 = vst [vmem:[#allocation3 + $0xf0] sm:$0xff] %v387
        %424 = vst [vmem:[#allocation3 + $0x108] sm:$0xff] %v388
        %425 = vst [vmem:[#allocation3 + $0x120] sm:$0xff] %v389
        %426 = vst [vmem:[#allocation3 + $0x138] sm:$0xff] %v390
        %427 = vst [vmem:[#allocation3 + $0x150] sm:$0xff] %v391
        %428 = vst [vmem:[#allocation3 + $0x168] sm:$0xff] %v392
        %429 = vst [vmem:[#allocation3 + $0x180] sm:$0xff] %v393
        %430 = vst [vmem:[#allocation3 + $0x198] sm:$0xff] %v394
        %431 = vst [vmem:[#allocation3 + $0x1b0] sm:$0xff] %v395
        %432 = vst [vmem:[#allocation3 + $0x1c8] sm:$0xff] %v396
        %433 = vst [vmem:[#allocation3 + $0x1e0] sm:$0xff] %v397
        %434 = vst [vmem:[#allocation3 + $0x1f8] sm:$0xff] %v398
        %435 = vst [vmem:[#allocation3 + $0x210] sm:$0xff] %v399
        %436 = vst [vmem:[#allocation3 + $0x228] sm:$0xff] %v400
        %437 = vst [vmem:[#allocation3 + $0x240] sm:$0xff] %v401
        %438 = vst [vmem:[#allocation3 + $0x258] sm:$0xff] %v402
        %439 = vst [vmem:[#allocation3 + $0x270] sm:$0xff] %v403
        %440 = vst [vmem:[#allocation3 + $0x288] sm:$0xff] %v404
        %441 = vst [vmem:[#allocation3 + $0x2a0] sm:$0xff] %v405
        %442 = vst [vmem:[#allocation3 + $0x2b8] sm:$0xff] %v406
        %443 = vst [vmem:[#allocation3 + $0x2d0] sm:$0xff] %v407
        %444 = vst [vmem:[#allocation3 + $0x2e8] sm:$0xff] %v408
        %445 = vst [vmem:[#allocation3 + $0x300] sm:$0xff] %v409
        %446 = vst [vmem:[#allocation3 + $0x318] sm:$0xff] %v410
        %447 = vst [vmem:[#allocation3 + $0x330] sm:$0xff] %v411
        %448 = vst [vmem:[#allocation3 + $0x348] sm:$0xff] %v412
        %v449 = vld [vmem:[#allocation2 + $0x1] sm:$0xff]
        %v450 = vld [vmem:[#allocation2 + $0x9] sm:$0xff]
        %v451 = vld [vmem:[#allocation2 + $0x19] sm:$0xff]
        %v452 = vld [vmem:[#allocation2 + $0x21] sm:$0xff]
        %v453 = vld [vmem:[#allocation2 + $0x31] sm:$0xff]
        %v454 = vld [vmem:[#allocation2 + $0x39] sm:$0xff]
        %v455 = vld [vmem:[#allocation2 + $0x49] sm:$0xff]
        %v456 = vld [vmem:[#allocation2 + $0x51] sm:$0xff]
        %v457 = vld [vmem:[#allocation2 + $0x61] sm:$0xff]
        %v458 = vld [vmem:[#allocation2 + $0x69] sm:$0xff]
        %v459 = vld [vmem:[#allocation2 + $0x79] sm:$0xff]
        %v460 = vld [vmem:[#allocation2 + $0x81] sm:$0xff]
        %v461 = vld [vmem:[#allocation2 + $0x91] sm:$0xff]
        %v462 = vld [vmem:[#allocation2 + $0x99] sm:$0xff]
        %v463 = vld [vmem:[#allocation2 + $0xa9] sm:$0xff]
        %v464 = vld [vmem:[#allocation2 + $0xb1] sm:$0xff]
        %v465 = vld [vmem:[#allocation2 + $0xc1] sm:$0xff]
        %v466 = vld [vmem:[#allocation2 + $0xc9] sm:$0xff]
        %v467 = vld [vmem:[#allocation2 + $0xd9] sm:$0xff]
        %v468 = vld [vmem:[#allocation2 + $0xe1] sm:$0xff]
        %v469 = vld [vmem:[#allocation2 + $0xf1] sm:$0xff]
        %v470 = vld [vmem:[#allocation2 + $0xf9] sm:$0xff]
        %v471 = vld [vmem:[#allocation2 + $0x109] sm:$0xff]
        %v472 = vld [vmem:[#allocation2 + $0x111] sm:$0xff]
        %v473 = vld [vmem:[#allocation2 + $0x121] sm:$0xff]
        %v474 = vld [vmem:[#allocation2 + $0x129] sm:$0xff]
        %v475 = vld [vmem:[#allocation2 + $0x139] sm:$0xff]
        %v476 = vld [vmem:[#allocation2 + $0x141] sm:$0xff]
        %v477 = vld [vmem:[#allocation2 + $0x151] sm:$0xff]
        %v478 = vld [vmem:[#allocation2 + $0x159] sm:$0xff]
        %v479 = vld [vmem:[#allocation2 + $0x169] sm:$0xff]
        %v480 = vld [vmem:[#allocation2 + $0x171] sm:$0xff]
        %v481 = vld [vmem:[#allocation2 + $0x181] sm:$0xff]
        %v482 = vld [vmem:[#allocation2 + $0x189] sm:$0xff]
        %v483 = vld [vmem:[#allocation2 + $0x199] sm:$0xff]
        %v484 = vld [vmem:[#allocation2 + $0x1a1] sm:$0xff]
        %485 = vst [vmem:[#allocation3 + $0x8] sm:$0xff] %v449
        %486 = vst [vmem:[#allocation3 + $0x20] sm:$0xff] %v450
        %487 = vst [vmem:[#allocation3 + $0x38] sm:$0xff] %v451
        %488 = vst [vmem:[#allocation3 + $0x50] sm:$0xff] %v452
        %489 = vst [vmem:[#allocation3 + $0x68] sm:$0xff] %v453
        %490 = vst [vmem:[#allocation3 + $0x80] sm:$0xff] %v454
        %491 = vst [vmem:[#allocation3 + $0x98] sm:$0xff] %v455
        %492 = vst [vmem:[#allocation3 + $0xb0] sm:$0xff] %v456
        %493 = vst [vmem:[#allocation3 + $0xc8] sm:$0xff] %v457
        %494 = vst [vmem:[#allocation3 + $0xe0] sm:$0xff] %v458
        %495 = vst [vmem:[#allocation3 + $0xf8] sm:$0xff] %v459
        %496 = vst [vmem:[#allocation3 + $0x110] sm:$0xff] %v460
        %497 = vst [vmem:[#allocation3 + $0x128] sm:$0xff] %v461
        %498 = vst [vmem:[#allocation3 + $0x140] sm:$0xff] %v462
        %499 = vst [vmem:[#allocation3 + $0x158] sm:$0xff] %v463
        %500 = vst [vmem:[#allocation3 + $0x170] sm:$0xff] %v464
        %501 = vst [vmem:[#allocation3 + $0x188] sm:$0xff] %v465
        %502 = vst [vmem:[#allocation3 + $0x1a0] sm:$0xff] %v466
        %503 = vst [vmem:[#allocation3 + $0x1b8] sm:$0xff] %v467
        %504 = vst [vmem:[#allocation3 + $0x1d0] sm:$0xff] %v468
        %505 = vst [vmem:[#allocation3 + $0x1e8] sm:$0xff] %v469
        %506 = vst [vmem:[#allocation3 + $0x200] sm:$0xff] %v470
        %507 = vst [vmem:[#allocation3 + $0x218] sm:$0xff] %v471
        %508 = vst [vmem:[#allocation3 + $0x230] sm:$0xff] %v472
        %509 = vst [vmem:[#allocation3 + $0x248] sm:$0xff] %v473
        %510 = vst [vmem:[#allocation3 + $0x260] sm:$0xff] %v474
        %511 = vst [vmem:[#allocation3 + $0x278] sm:$0xff] %v475
        %512 = vst [vmem:[#allocation3 + $0x290] sm:$0xff] %v476
        %513 = vst [vmem:[#allocation3 + $0x2a8] sm:$0xff] %v477
        %514 = vst [vmem:[#allocation3 + $0x2c0] sm:$0xff] %v478
        %515 = vst [vmem:[#allocation3 + $0x2d8] sm:$0xff] %v479
        %516 = vst [vmem:[#allocation3 + $0x2f0] sm:$0xff] %v480
        %517 = vst [vmem:[#allocation3 + $0x308] sm:$0xff] %v481
        %518 = vst [vmem:[#allocation3 + $0x320] sm:$0xff] %v482
        %519 = vst [vmem:[#allocation3 + $0x338] sm:$0xff] %v483
        %520 = vst [vmem:[#allocation3 + $0x350] sm:$0xff] %v484
        %v521 = vld [vmem:[#allocation2 + $0x2] sm:$0xff]
        %v522 = vld [vmem:[#allocation2 + $0xa] sm:$0xff]
        %v523 = vld [vmem:[#allocation2 + $0x1a] sm:$0xff]
        %v524 = vld [vmem:[#allocation2 + $0x22] sm:$0xff]
        %v525 = vld [vmem:[#allocation2 + $0x32] sm:$0xff]
        %v526 = vld [vmem:[#allocation2 + $0x3a] sm:$0xff]
        %v527 = vld [vmem:[#allocation2 + $0x4a] sm:$0xff]
        %v528 = vld [vmem:[#allocation2 + $0x52] sm:$0xff]
        %v529 = vld [vmem:[#allocation2 + $0x62] sm:$0xff]
        %v530 = vld [vmem:[#allocation2 + $0x6a] sm:$0xff]
        %v531 = vld [vmem:[#allocation2 + $0x7a] sm:$0xff]
        %v532 = vld [vmem:[#allocation2 + $0x82] sm:$0xff]
        %v533 = vld [vmem:[#allocation2 + $0x92] sm:$0xff]
        %v534 = vld [vmem:[#allocation2 + $0x9a] sm:$0xff]
        %v535 = vld [vmem:[#allocation2 + $0xaa] sm:$0xff]
        %v536 = vld [vmem:[#allocation2 + $0xb2] sm:$0xff]
        %v537 = vld [vmem:[#allocation2 + $0xc2] sm:$0xff]
        %v538 = vld [vmem:[#allocation2 + $0xca] sm:$0xff]
        %v539 = vld [vmem:[#allocation2 + $0xda] sm:$0xff]
        %v540 = vld [vmem:[#allocation2 + $0xe2] sm:$0xff]
        %v541 = vld [vmem:[#allocation2 + $0xf2] sm:$0xff]
        %v542 = vld [vmem:[#allocation2 + $0xfa] sm:$0xff]
        %v543 = vld [vmem:[#allocation2 + $0x10a] sm:$0xff]
        %v544 = vld [vmem:[#allocation2 + $0x112] sm:$0xff]
        %v545 = vld [vmem:[#allocation2 + $0x122] sm:$0xff]
        %v546 = vld [vmem:[#allocation2 + $0x12a] sm:$0xff]
        %v547 = vld [vmem:[#allocation2 + $0x13a] sm:$0xff]
        %v548 = vld [vmem:[#allocation2 + $0x142] sm:$0xff]
        %v549 = vld [vmem:[#allocation2 + $0x152] sm:$0xff]
        %v550 = vld [vmem:[#allocation2 + $0x15a] sm:$0xff]
        %v551 = vld [vmem:[#allocation2 + $0x16a] sm:$0xff]
        %v552 = vld [vmem:[#allocation2 + $0x172] sm:$0xff]
        %v553 = vld [vmem:[#allocation2 + $0x182] sm:$0xff]
        %v554 = vld [vmem:[#allocation2 + $0x18a] sm:$0xff]
        %v555 = vld [vmem:[#allocation2 + $0x19a] sm:$0xff]
        %v556 = vld [vmem:[#allocation2 + $0x1a2] sm:$0xff]
        %557 = vst [vmem:[#allocation3 + $0x10] sm:$0xff] %v521
        %558 = vst [vmem:[#allocation3 + $0x28] sm:$0xff] %v522
        %559 = vst [vmem:[#allocation3 + $0x40] sm:$0xff] %v523
        %560 = vst [vmem:[#allocation3 + $0x58] sm:$0xff] %v524
        %561 = vst [vmem:[#allocation3 + $0x70] sm:$0xff] %v525
        %562 = vst [vmem:[#allocation3 + $0x88] sm:$0xff] %v526
        %563 = vst [vmem:[#allocation3 + $0xa0] sm:$0xff] %v527
        %564 = vst [vmem:[#allocation3 + $0xb8] sm:$0xff] %v528
        %565 = vst [vmem:[#allocation3 + $0xd0] sm:$0xff] %v529
        %566 = vst [vmem:[#allocation3 + $0xe8] sm:$0xff] %v530
        %567 = vst [vmem:[#allocation3 + $0x100] sm:$0xff] %v531
        %568 = vst [vmem:[#allocation3 + $0x118] sm:$0xff] %v532
        %569 = vst [vmem:[#allocation3 + $0x130] sm:$0xff] %v533
        %570 = vst [vmem:[#allocation3 + $0x148] sm:$0xff] %v534
        %571 = vst [vmem:[#allocation3 + $0x160] sm:$0xff] %v535
        %572 = vst [vmem:[#allocation3 + $0x178] sm:$0xff] %v536
        %573 = vst [vmem:[#allocation3 + $0x190] sm:$0xff] %v537
        %574 = vst [vmem:[#allocation3 + $0x1a8] sm:$0xff] %v538
        %575 = vst [vmem:[#allocation3 + $0x1c0] sm:$0xff] %v539
        %576 = vst [vmem:[#allocation3 + $0x1d8] sm:$0xff] %v540
        %577 = vst [vmem:[#allocation3 + $0x1f0] sm:$0xff] %v541
        %578 = vst [vmem:[#allocation3 + $0x208] sm:$0xff] %v542
        %579 = vst [vmem:[#allocation3 + $0x220] sm:$0xff] %v543
        %580 = vst [vmem:[#allocation3 + $0x238] sm:$0xff] %v544
        %581 = vst [vmem:[#allocation3 + $0x250] sm:$0xff] %v545
        %582 = vst [vmem:[#allocation3 + $0x268] sm:$0xff] %v546
        %583 = vst [vmem:[#allocation3 + $0x280] sm:$0xff] %v547
        %584 = vst [vmem:[#allocation3 + $0x298] sm:$0xff] %v548
        %585 = vst [vmem:[#allocation3 + $0x2b0] sm:$0xff] %v549
        %586 = vst [vmem:[#allocation3 + $0x2c8] sm:$0xff] %v550
        %587 = vst [vmem:[#allocation3 + $0x2e0] sm:$0xff] %v551
        %588 = vst [vmem:[#allocation3 + $0x2f8] sm:$0xff] %v552
        %589 = vst [vmem:[#allocation3 + $0x310] sm:$0xff] %v553
        %590 = vst [vmem:[#allocation3 + $0x328] sm:$0xff] %v554
        %591 = vst [vmem:[#allocation3 + $0x340] sm:$0xff] %v555
        %592 = vst [vmem:[#allocation3 + $0x358] sm:$0xff] %v556
        %v593 = vld [vmem:[#allocation3] sm:$0xff]
        %v594 = vld [vmem:[#allocation3 + $0x8] sm:$0xff]
        %v595 = vld [vmem:[#allocation3 + $0x10] sm:$0xff]
        %v596 = vld [vmem:[#allocation3 + $0x18] sm:$0xff]
        %v597 = vld [vmem:[#allocation3 + $0x20] sm:$0xff]
        %v598 = vld [vmem:[#allocation3 + $0x28] sm:$0xff]
        %v599 = vld [vmem:[#allocation3 + $0x30] sm:$0xff]
        %v600 = vld [vmem:[#allocation3 + $0x38] sm:$0xff]
        %v601 = vld [vmem:[#allocation3 + $0x40] sm:$0xff]
        %v602 = vld [vmem:[#allocation3 + $0x48] sm:$0xff]
        %v603 = vld [vmem:[#allocation3 + $0x50] sm:$0xff]
        %v604 = vld [vmem:[#allocation3 + $0x58] sm:$0xff]
        %v605 = vld [vmem:[#allocation3 + $0x60] sm:$0xff]
        %v606 = vld [vmem:[#allocation3 + $0x68] sm:$0xff]
        %v607 = vld [vmem:[#allocation3 + $0x70] sm:$0xff]
        %v608 = vld [vmem:[#allocation3 + $0x78] sm:$0xff]
        %v609 = vld [vmem:[#allocation3 + $0x80] sm:$0xff]
        %v610 = vld [vmem:[#allocation3 + $0x88] sm:$0xff]
        %v611 = vld [vmem:[#allocation3 + $0x90] sm:$0xff]
        %v612 = vld [vmem:[#allocation3 + $0x98] sm:$0xff]
        %v613 = vld [vmem:[#allocation3 + $0xa0] sm:$0xff]
        %v614 = vld [vmem:[#allocation3 + $0xa8] sm:$0xff]
        %v615 = vld [vmem:[#allocation3 + $0xb0] sm:$0xff]
        %v616 = vld [vmem:[#allocation3 + $0xb8] sm:$0xff]
        %v617 = vld [vmem:[#allocation3 + $0xc0] sm:$0xff]
        %v618 = vld [vmem:[#allocation3 + $0xc8] sm:$0xff]
        %v619 = vld [vmem:[#allocation3 + $0xd0] sm:$0xff]
        %v620 = vld [vmem:[#allocation3 + $0xd8] sm:$0xff]
        %v621 = vld [vmem:[#allocation3 + $0xe0] sm:$0xff]
        %v622 = vld [vmem:[#allocation3 + $0xe8] sm:$0xff]
        %v623 = vld [vmem:[#allocation3 + $0xf0] sm:$0xff]
        %v624 = vld [vmem:[#allocation3 + $0xf8] sm:$0xff]
        %v625 = vld [vmem:[#allocation3 + $0x100] sm:$0xff]
        %v626 = vld [vmem:[#allocation3 + $0x108] sm:$0xff]
        %v627 = vld [vmem:[#allocation3 + $0x110] sm:$0xff]
        %v628 = vld [vmem:[#allocation3 + $0x118] sm:$0xff]
        %v629 = vld [vmem:[#allocation3 + $0x120] sm:$0xff]
        %v630 = vld [vmem:[#allocation3 + $0x128] sm:$0xff]
        %v631 = vld [vmem:[#allocation3 + $0x130] sm:$0xff]
        %v632 = vld [vmem:[#allocation3 + $0x138] sm:$0xff]
        %v633 = vld [vmem:[#allocation3 + $0x140] sm:$0xff]
        %v634 = vld [vmem:[#allocation3 + $0x148] sm:$0xff]
        %v635 = vld [vmem:[#allocation3 + $0x150] sm:$0xff]
        %v636 = vld [vmem:[#allocation3 + $0x158] sm:$0xff]
        %v637 = vld [vmem:[#allocation3 + $0x160] sm:$0xff]
        %v638 = vld [vmem:[#allocation3 + $0x168] sm:$0xff]
        %v639 = vld [vmem:[#allocation3 + $0x170] sm:$0xff]
        %v640 = vld [vmem:[#allocation3 + $0x178] sm:$0xff]
        %v641 = vld [vmem:[#allocation3 + $0x180] sm:$0xff]
        %v642 = vld [vmem:[#allocation3 + $0x188] sm:$0xff]
        %v643 = vld [vmem:[#allocation3 + $0x190] sm:$0xff]
        %v644 = vld [vmem:[#allocation3 + $0x198] sm:$0xff]
        %v645 = vld [vmem:[#allocation3 + $0x1a0] sm:$0xff]
        %v646 = vld [vmem:[#allocation3 + $0x1a8] sm:$0xff]
        %v647 = vld [vmem:[#allocation3 + $0x1b0] sm:$0xff]
        %v648 = vld [vmem:[#allocation3 + $0x1b8] sm:$0xff]
        %v649 = vld [vmem:[#allocation3 + $0x1c0] sm:$0xff]
        %v650 = vld [vmem:[#allocation3 + $0x1c8] sm:$0xff]
        %v651 = vld [vmem:[#allocation3 + $0x1d0] sm:$0xff]
        %v652 = vld [vmem:[#allocation3 + $0x1d8] sm:$0xff]
        %v653 = vld [vmem:[#allocation3 + $0x1e0] sm:$0xff]
        %v654 = vld [vmem:[#allocation3 + $0x1e8] sm:$0xff]
        %v655 = vld [vmem:[#allocation3 + $0x1f0] sm:$0xff]
        %v656 = vld [vmem:[#allocation3 + $0x1f8] sm:$0xff]
        %v657 = vld [vmem:[#allocation3 + $0x200] sm:$0xff]
        %v658 = vld [vmem:[#allocation3 + $0x208] sm:$0xff]
        %v659 = vld [vmem:[#allocation3 + $0x210] sm:$0xff]
        %v660 = vld [vmem:[#allocation3 + $0x218] sm:$0xff]
        %v661 = vld [vmem:[#allocation3 + $0x220] sm:$0xff]
        %v662 = vld [vmem:[#allocation3 + $0x228] sm:$0xff]
        %v663 = vld [vmem:[#allocation3 + $0x230] sm:$0xff]
        %v664 = vld [vmem:[#allocation3 + $0x238] sm:$0xff]
        %v665 = vld [vmem:[#allocation3 + $0x240] sm:$0xff]
        %v666 = vld [vmem:[#allocation3 + $0x248] sm:$0xff]
        %v667 = vld [vmem:[#allocation3 + $0x250] sm:$0xff]
        %v668 = vld [vmem:[#allocation3 + $0x258] sm:$0xff]
        %v669 = vld [vmem:[#allocation3 + $0x260] sm:$0xff]
        %v670 = vld [vmem:[#allocation3 + $0x268] sm:$0xff]
        %v671 = vld [vmem:[#allocation3 + $0x270] sm:$0xff]
        %v672 = vld [vmem:[#allocation3 + $0x278] sm:$0xff]
        %v673 = vld [vmem:[#allocation3 + $0x280] sm:$0xff]
        %v674 = vld [vmem:[#allocation3 + $0x288] sm:$0xff]
        %v675 = vld [vmem:[#allocation3 + $0x290] sm:$0xff]
        %v676 = vld [vmem:[#allocation3 + $0x298] sm:$0xff]
        %v677 = vld [vmem:[#allocation3 + $0x2a0] sm:$0xff]
        %v678 = vld [vmem:[#allocation3 + $0x2a8] sm:$0xff]
        %v679 = vld [vmem:[#allocation3 + $0x2b0] sm:$0xff]
        %v680 = vld [vmem:[#allocation3 + $0x2b8] sm:$0xff]
        %v681 = vld [vmem:[#allocation3 + $0x2c0] sm:$0xff]
        %v682 = vld [vmem:[#allocation3 + $0x2c8] sm:$0xff]
        %v683 = vld [vmem:[#allocation3 + $0x2d0] sm:$0xff]
        %v684 = vld [vmem:[#allocation3 + $0x2d8] sm:$0xff]
        %v685 = vld [vmem:[#allocation3 + $0x2e0] sm:$0xff]
        %v686 = vld [vmem:[#allocation3 + $0x2e8] sm:$0xff]
        %v687 = vld [vmem:[#allocation3 + $0x2f0] sm:$0xff]
        %v688 = vld [vmem:[#allocation3 + $0x2f8] sm:$0xff]
        %v689 = vld [vmem:[#allocation7] sm:$0xff]
        %v690 = vld [vmem:[#allocation7 + $0x8] sm:$0xff]
        %v691 = vld [vmem:[#allocation7 + $0x10] sm:$0xff]
        %v692 = vld [vmem:[#allocation7 + $0x18] sm:$0xff]
        %v693 = vld [vmem:[#allocation7 + $0x20] sm:$0xff]
        %v694 = vld [vmem:[#allocation7 + $0x28] sm:$0xff]
        %v695 = vld [vmem:[#allocation7 + $0x30] sm:$0xff]
        %v696 = vld [vmem:[#allocation7 + $0x38] sm:$0xff]
        %v697 = vld [vmem:[#allocation7 + $0x40] sm:$0xff]
        %v698 = vld [vmem:[#allocation7 + $0x48] sm:$0xff]
        %v699 = vld [vmem:[#allocation7 + $0x50] sm:$0xff]
        %v700 = vld [vmem:[#allocation7 + $0x58] sm:$0xff]
        %v701 = vld [vmem:[#allocation7 + $0x60] sm:$0xff]
        %v702 = vld [vmem:[#allocation7 + $0x68] sm:$0xff]
        %v703 = vld [vmem:[#allocation7 + $0x70] sm:$0xff]
        %v704 = vld [vmem:[#allocation7 + $0x78] sm:$0xff]
        %v705 = vld [vmem:[#allocation7 + $0x80] sm:$0xff]
        %v706 = vld [vmem:[#allocation7 + $0x88] sm:$0xff]
        %v707 = vld [vmem:[#allocation7 + $0x90] sm:$0xff]
        %v708 = vld [vmem:[#allocation7 + $0x98] sm:$0xff]
        %v709 = vld [vmem:[#allocation7 + $0xa0] sm:$0xff]
        %v710 = vld [vmem:[#allocation7 + $0xa8] sm:$0xff]
        %v711 = vld [vmem:[#allocation7 + $0xb0] sm:$0xff]
        %v712 = vld [vmem:[#allocation7 + $0xb8] sm:$0xff]
        %v713 = vld [vmem:[#allocation7 + $0xc0] sm:$0xff]
        %v714 = vld [vmem:[#allocation7 + $0xc8] sm:$0xff]
        %v715 = vld [vmem:[#allocation7 + $0xd0] sm:$0xff]
        %v716 = vld [vmem:[#allocation7 + $0xd8] sm:$0xff]
        %v717 = vld [vmem:[#allocation7 + $0xe0] sm:$0xff]
        %v718 = vld [vmem:[#allocation7 + $0xe8] sm:$0xff]
        %v719 = vld [vmem:[#allocation7 + $0xf0] sm:$0xff]
        %v720 = vld [vmem:[#allocation7 + $0xf8] sm:$0xff]
        %v721 = vld [vmem:[#allocation7 + $0x100] sm:$0xff]
        %v722 = vld [vmem:[#allocation7 + $0x108] sm:$0xff]
        %v723 = vld [vmem:[#allocation7 + $0x110] sm:$0xff]
        %v724 = vld [vmem:[#allocation7 + $0x118] sm:$0xff]
        %v725 = vld [vmem:[#allocation7 + $0x120] sm:$0xff]
        %v726 = vld [vmem:[#allocation7 + $0x128] sm:$0xff]
        %v727 = vld [vmem:[#allocation7 + $0x130] sm:$0xff]
        %v728 = vld [vmem:[#allocation7 + $0x138] sm:$0xff]
        %v729 = vld [vmem:[#allocation7 + $0x140] sm:$0xff]
        %v730 = vld [vmem:[#allocation7 + $0x148] sm:$0xff]
        %v731 = vld [vmem:[#allocation7 + $0x150] sm:$0xff]
        %v732 = vld [vmem:[#allocation7 + $0x158] sm:$0xff]
        %v733 = vld [vmem:[#allocation7 + $0x160] sm:$0xff]
        %v734 = vld [vmem:[#allocation7 + $0x168] sm:$0xff]
        %v735 = vld [vmem:[#allocation7 + $0x170] sm:$0xff]
        %v736 = vld [vmem:[#allocation7 + $0x178] sm:$0xff]
        %s737 = scalar_lea.vmem [#allocation3], 48
        %v738 = vld [vmem:[%s737] sm:$0xff]
        %v739 = vld [vmem:[%s737 + $0x8] sm:$0xff]
        %v740 = vld [vmem:[%s737 + $0x10] sm:$0xff]
        %v741 = vld [vmem:[%s737 + $0x18] sm:$0xff]
        %v742 = vld [vmem:[%s737 + $0x20] sm:$0xff]
        %v743 = vld [vmem:[%s737 + $0x28] sm:$0xff]
        %v744 = vld [vmem:[%s737 + $0x30] sm:$0xff]
        %v745 = vld [vmem:[%s737 + $0x38] sm:$0xff]
        %v746 = vld [vmem:[%s737 + $0x40] sm:$0xff]
        %v747 = vld [vmem:[%s737 + $0x48] sm:$0xff]
        %v748 = vld [vmem:[%s737 + $0x50] sm:$0xff]
        %v749 = vld [vmem:[%s737 + $0x58] sm:$0xff]
        %v750 = vld [vmem:[%s737 + $0x60] sm:$0xff]
        %v751 = vld [vmem:[%s737 + $0x68] sm:$0xff]
        %v752 = vld [vmem:[%s737 + $0x70] sm:$0xff]
        %v753 = vld [vmem:[%s737 + $0x78] sm:$0xff]
        %v754 = vld [vmem:[%s737 + $0x80] sm:$0xff]
        %v755 = vld [vmem:[%s737 + $0x88] sm:$0xff]
        %v756 = vld [vmem:[%s737 + $0x90] sm:$0xff]
        %v757 = vld [vmem:[%s737 + $0x98] sm:$0xff]
        %v758 = vld [vmem:[%s737 + $0xa0] sm:$0xff]
        %v759 = vld [vmem:[%s737 + $0xa8] sm:$0xff]
        %v760 = vld [vmem:[%s737 + $0xb0] sm:$0xff]
        %v761 = vld [vmem:[%s737 + $0xb8] sm:$0xff]
        %v762 = vld [vmem:[%s737 + $0xc0] sm:$0xff]
        %v763 = vld [vmem:[%s737 + $0xc8] sm:$0xff]
        %v764 = vld [vmem:[%s737 + $0xd0] sm:$0xff]
        %v765 = vld [vmem:[%s737 + $0xd8] sm:$0xff]
        %v766 = vld [vmem:[%s737 + $0xe0] sm:$0xff]
        %v767 = vld [vmem:[%s737 + $0xe8] sm:$0xff]
        %v768 = vld [vmem:[%s737 + $0xf0] sm:$0xff]
        %v769 = vld [vmem:[%s737 + $0xf8] sm:$0xff]
        %v770 = vld [vmem:[%s737 + $0x100] sm:$0xff]
        %v771 = vld [vmem:[%s737 + $0x108] sm:$0xff]
        %v772 = vld [vmem:[%s737 + $0x110] sm:$0xff]
        %v773 = vld [vmem:[%s737 + $0x118] sm:$0xff]
        %v774 = vld [vmem:[%s737 + $0x120] sm:$0xff]
        %v775 = vld [vmem:[%s737 + $0x128] sm:$0xff]
        %v776 = vld [vmem:[%s737 + $0x130] sm:$0xff]
        %v777 = vld [vmem:[%s737 + $0x138] sm:$0xff]
        %v778 = vld [vmem:[%s737 + $0x140] sm:$0xff]
        %v779 = vld [vmem:[%s737 + $0x148] sm:$0xff]
        %v780 = vld [vmem:[%s737 + $0x150] sm:$0xff]
        %v781 = vld [vmem:[%s737 + $0x158] sm:$0xff]
        %v782 = vld [vmem:[%s737 + $0x160] sm:$0xff]
        %v783 = vld [vmem:[%s737 + $0x168] sm:$0xff]
        %v784 = vld [vmem:[%s737 + $0x170] sm:$0xff]
        %v785 = vld [vmem:[%s737 + $0x178] sm:$0xff]
        %v786 = vld [vmem:[%s737 + $0x180] sm:$0xff]
        %v787 = vld [vmem:[%s737 + $0x188] sm:$0xff]
        %v788 = vld [vmem:[%s737 + $0x190] sm:$0xff]
        %v789 = vld [vmem:[%s737 + $0x198] sm:$0xff]
        %v790 = vld [vmem:[%s737 + $0x1a0] sm:$0xff]
        %v791 = vld [vmem:[%s737 + $0x1a8] sm:$0xff]
        %v792 = vld [vmem:[%s737 + $0x1b0] sm:$0xff]
        %v793 = vld [vmem:[%s737 + $0x1b8] sm:$0xff]
        %v794 = vld [vmem:[%s737 + $0x1c0] sm:$0xff]
        %v795 = vld [vmem:[%s737 + $0x1c8] sm:$0xff]
        %v796 = vld [vmem:[%s737 + $0x1d0] sm:$0xff]
        %v797 = vld [vmem:[%s737 + $0x1d8] sm:$0xff]
        %v798 = vld [vmem:[%s737 + $0x1e0] sm:$0xff]
        %v799 = vld [vmem:[%s737 + $0x1e8] sm:$0xff]
        %v800 = vld [vmem:[%s737 + $0x1f0] sm:$0xff]
        %v801 = vld [vmem:[%s737 + $0x1f8] sm:$0xff]
        %v802 = vld [vmem:[%s737 + $0x200] sm:$0xff]
        %v803 = vld [vmem:[%s737 + $0x208] sm:$0xff]
        %v804 = vld [vmem:[%s737 + $0x210] sm:$0xff]
        %v805 = vld [vmem:[%s737 + $0x218] sm:$0xff]
        %v806 = vld [vmem:[%s737 + $0x220] sm:$0xff]
        %v807 = vld [vmem:[%s737 + $0x228] sm:$0xff]
        %v808 = vld [vmem:[%s737 + $0x230] sm:$0xff]
        %v809 = vld [vmem:[%s737 + $0x238] sm:$0xff]
        %v810 = vld [vmem:[%s737 + $0x240] sm:$0xff]
        %v811 = vld [vmem:[%s737 + $0x248] sm:$0xff]
        %v812 = vld [vmem:[%s737 + $0x250] sm:$0xff]
        %v813 = vld [vmem:[%s737 + $0x258] sm:$0xff]
        %v814 = vld [vmem:[%s737 + $0x260] sm:$0xff]
        %v815 = vld [vmem:[%s737 + $0x268] sm:$0xff]
        %v816 = vld [vmem:[%s737 + $0x270] sm:$0xff]
        %v817 = vld [vmem:[%s737 + $0x278] sm:$0xff]
        %v818 = vld [vmem:[%s737 + $0x280] sm:$0xff]
        %v819 = vld [vmem:[%s737 + $0x288] sm:$0xff]
        %v820 = vld [vmem:[%s737 + $0x290] sm:$0xff]
        %v821 = vld [vmem:[%s737 + $0x298] sm:$0xff]
        %v822 = vld [vmem:[%s737 + $0x2a0] sm:$0xff]
        %v823 = vld [vmem:[%s737 + $0x2a8] sm:$0xff]
        %v824 = vld [vmem:[%s737 + $0x2b0] sm:$0xff]
        %v825 = vld [vmem:[%s737 + $0x2b8] sm:$0xff]
        %v826 = vld [vmem:[%s737 + $0x2c0] sm:$0xff]
        %v827 = vld [vmem:[%s737 + $0x2c8] sm:$0xff]
        %v828 = vld [vmem:[%s737 + $0x2d0] sm:$0xff]
        %v829 = vld [vmem:[%s737 + $0x2d8] sm:$0xff]
        %v830 = vld [vmem:[%s737 + $0x2e0] sm:$0xff]
        %v831 = vld [vmem:[%s737 + $0x2e8] sm:$0xff]
        %v832 = vld [vmem:[%s737 + $0x2f0] sm:$0xff]
        %v833 = vld [vmem:[%s737 + $0x2f8] sm:$0xff]
        %s834 = scalar_lea.vmem [#allocation7], 384
        %v835 = vld [vmem:[%s834] sm:$0xff]
        %v836 = vld [vmem:[%s834 + $0x8] sm:$0xff]
        %v837 = vld [vmem:[%s834 + $0x10] sm:$0xff]
        %v838 = vld [vmem:[%s834 + $0x18] sm:$0xff]
        %v839 = vld [vmem:[%s834 + $0x20] sm:$0xff]
        %v840 = vld [vmem:[%s834 + $0x28] sm:$0xff]
        %v841 = vld [vmem:[%s834 + $0x30] sm:$0xff]
        %v842 = vld [vmem:[%s834 + $0x38] sm:$0xff]
        %v843 = vld [vmem:[%s834 + $0x40] sm:$0xff]
        %v844 = vld [vmem:[%s834 + $0x48] sm:$0xff]
        %v845 = vld [vmem:[%s834 + $0x50] sm:$0xff]
        %v846 = vld [vmem:[%s834 + $0x58] sm:$0xff]
        %v847 = vld [vmem:[%s834 + $0x60] sm:$0xff]
        %v848 = vld [vmem:[%s834 + $0x68] sm:$0xff]
        %v849 = vld [vmem:[%s834 + $0x70] sm:$0xff]
        %v850 = vld [vmem:[%s834 + $0x78] sm:$0xff]
        %v851 = vld [vmem:[%s834 + $0x80] sm:$0xff]
        %v852 = vld [vmem:[%s834 + $0x88] sm:$0xff]
        %v853 = vld [vmem:[%s834 + $0x90] sm:$0xff]
        %v854 = vld [vmem:[%s834 + $0x98] sm:$0xff]
        %v855 = vld [vmem:[%s834 + $0xa0] sm:$0xff]
        %v856 = vld [vmem:[%s834 + $0xa8] sm:$0xff]
        %v857 = vld [vmem:[%s834 + $0xb0] sm:$0xff]
        %v858 = vld [vmem:[%s834 + $0xb8] sm:$0xff]
        %v859 = vld [vmem:[%s834 + $0xc0] sm:$0xff]
        %v860 = vld [vmem:[%s834 + $0xc8] sm:$0xff]
        %v861 = vld [vmem:[%s834 + $0xd0] sm:$0xff]
        %v862 = vld [vmem:[%s834 + $0xd8] sm:$0xff]
        %v863 = vld [vmem:[%s834 + $0xe0] sm:$0xff]
        %v864 = vld [vmem:[%s834 + $0xe8] sm:$0xff]
        %v865 = vld [vmem:[%s834 + $0xf0] sm:$0xff]
        %v866 = vld [vmem:[%s834 + $0xf8] sm:$0xff]
        %v867 = vld [vmem:[%s834 + $0x100] sm:$0xff]
        %v868 = vld [vmem:[%s834 + $0x108] sm:$0xff]
        %v869 = vld [vmem:[%s834 + $0x110] sm:$0xff]
        %v870 = vld [vmem:[%s834 + $0x118] sm:$0xff]
        %v871 = vld [vmem:[%s834 + $0x120] sm:$0xff]
        %v872 = vld [vmem:[%s834 + $0x128] sm:$0xff]
        %v873 = vld [vmem:[%s834 + $0x130] sm:$0xff]
        %v874 = vld [vmem:[%s834 + $0x138] sm:$0xff]
        %v875 = vld [vmem:[%s834 + $0x140] sm:$0xff]
        %v876 = vld [vmem:[%s834 + $0x148] sm:$0xff]
        %v877 = vld [vmem:[%s834 + $0x150] sm:$0xff]
        %v878 = vld [vmem:[%s834 + $0x158] sm:$0xff]
        %v879 = vld [vmem:[%s834 + $0x160] sm:$0xff]
        %v880 = vld [vmem:[%s834 + $0x168] sm:$0xff]
        %v881 = vld [vmem:[%s834 + $0x170] sm:$0xff]
        %v882 = vld [vmem:[%s834 + $0x178] sm:$0xff]
        %883 = vmatprep.subr.mxu0 0.0
        %884 = vmatpush1.msra.mxu0 %v850
        %885 = vmatprep.subr.mxu0 0.0
        %886 = vmatpush1.msra.mxu0 %v849
        %887 = vmatprep.subr.mxu0 0.0
        %888 = vmatpush1.msra.mxu0 %v848
        %889 = vmatprep.subr.mxu0 0.0
        %890 = vmatpush1.msra.mxu0 %v847
        %891 = vmatprep.subr.mxu0 0.0
        %892 = vmatpush1.msra.mxu0 %v846
        %893 = vmatprep.subr.mxu0 0.0
        %894 = vmatpush1.msra.mxu0 %v845
        %895 = vmatprep.subr.mxu0 0.0
        %896 = vmatpush1.msra.mxu0 %v844
        %897 = vmatprep.subr.mxu0 0.0
        %898 = vmatpush1.msra.mxu0 %v843
        %899 = vmatprep.subr.mxu0 0.0
        %900 = vmatpush1.msra.mxu0 %v842
        %901 = vmatprep.subr.mxu0 0.0
        %902 = vmatpush1.msra.mxu0 %v841
        %903 = vmatprep.subr.mxu0 0.0
        %904 = vmatpush1.msra.mxu0 %v840
        %905 = vmatprep.subr.mxu0 0.0
        %906 = vmatpush1.msra.mxu0 %v839
        %907 = vmatprep.subr.mxu0 0.0
        %908 = vmatpush1.msra.mxu0 %v838
        %909 = vmatprep.subr.mxu0 0.0
        %910 = vmatpush1.msra.mxu0 %v837
        %911 = vmatprep.subr.mxu0 0.0
        %912 = vmatpush1.msra.mxu0 %v836
        %913 = vmatprep.subr.mxu0 0.0
        %914 = vmatpush1.msra.mxu0 %v835
        %915 = vmatprep.subr.mxu0 0.0
        %916 = vmatpush2.msra.mxu0 %v866
        %917 = vmatprep.subr.mxu0 0.0
        %918 = vmatpush2.msra.mxu0 %v865
        %919 = vmatprep.subr.mxu0 0.0
        %920 = vmatpush2.msra.mxu0 %v864
        %921 = vmatprep.subr.mxu0 0.0
        %922 = vmatpush2.msra.mxu0 %v863
        %923 = vmatprep.subr.mxu0 0.0
        %924 = vmatpush2.msra.mxu0 %v862
        %925 = vmatprep.subr.mxu0 0.0
        %926 = vmatpush2.msra.mxu0 %v861
        %927 = vmatprep.subr.mxu0 0.0
        %928 = vmatpush2.msra.mxu0 %v860
        %929 = vmatprep.subr.mxu0 0.0
        %930 = vmatpush2.msra.mxu0 %v859
        %931 = vmatprep.subr.mxu0 0.0
        %932 = vmatpush2.msra.mxu0 %v858
        %933 = vmatprep.subr.mxu0 0.0
        %934 = vmatpush2.msra.mxu0 %v857
        %935 = vmatprep.subr.mxu0 0.0
        %936 = vmatpush2.msra.mxu0 %v856
        %937 = vmatprep.subr.mxu0 0.0
        %938 = vmatpush2.msra.mxu0 %v855
        %939 = vmatprep.subr.mxu0 0.0
        %940 = vmatpush2.msra.mxu0 %v854
        %941 = vmatprep.subr.mxu0 0.0
        %942 = vmatpush2.msra.mxu0 %v853
        %943 = vmatprep.subr.mxu0 0.0
        %944 = vmatpush2.msra.mxu0 %v852
        %945 = vmatprep.subr.mxu0 0.0
        %946 = vmatpush2.msra.mxu0 %v851
        %947 = vmatprep.mubr.f32.mxu0 %v739
        %948 = vmatmul.mubr.f32.gmra.mxu0 %v738
        %v949 = vpop.f32.mrf.mxu0
        %v950 = vadd.f32 0.0, %v949
        %v951 = vpop.f32.mrf.mxu0
        %952 = vmatprep.mubr.f32.mxu0 %v742
        %953 = vmatmul.mubr.f32.gmra.mxu0 %v741
        %v954 = vpop.f32.mrf.mxu0
        %v955 = vadd.f32 0.0, %v954
        %v956 = vpop.f32.mrf.mxu0
        %957 = vmatprep.mubr.f32.mxu0 %v745
        %958 = vmatmul.mubr.f32.gmra.mxu0 %v744
        %v959 = vpop.f32.mrf.mxu0
        %v960 = vadd.f32 0.0, %v959
        %v961 = vpop.f32.mrf.mxu0
        %962 = vmatprep.mubr.f32.mxu0 %v748
        %963 = vmatmul.mubr.f32.gmra.mxu0 %v747
        %v964 = vpop.f32.mrf.mxu0
        %v965 = vadd.f32 0.0, %v964
        %v966 = vpop.f32.mrf.mxu0
        %967 = vmatprep.mubr.f32.mxu0 %v751
        %968 = vmatmul.mubr.f32.gmra.mxu0 %v750
        %v969 = vpop.f32.mrf.mxu0
        %v970 = vadd.f32 0.0, %v969
        %v971 = vpop.f32.mrf.mxu0
        %972 = vmatprep.mubr.f32.mxu0 %v754
        %973 = vmatmul.mubr.f32.gmra.mxu0 %v753
        %v974 = vpop.f32.mrf.mxu0
        %v975 = vadd.f32 0.0, %v974
        %v976 = vpop.f32.mrf.mxu0
        %977 = vmatprep.mubr.f32.mxu0 %v757
        %978 = vmatmul.mubr.f32.gmra.mxu0 %v756
        %v979 = vpop.f32.mrf.mxu0
        %v980 = vadd.f32 0.0, %v979
        %v981 = vpop.f32.mrf.mxu0
        %982 = vmatprep.mubr.f32.mxu0 %v760
        %983 = vmatmul.mubr.f32.gmra.mxu0 %v759
        %v984 = vpop.f32.mrf.mxu0
        %v985 = vadd.f32 0.0, %v984
        %v986 = vpop.f32.mrf.mxu0
        %987 = vmatprep.mubr.f32.mxu0 %v763
        %988 = vmatmul.mubr.f32.gmra.mxu0 %v762
        %v989 = vpop.f32.mrf.mxu0
        %v990 = vadd.f32 0.0, %v989
        %v991 = vpop.f32.mrf.mxu0
        %992 = vmatprep.mubr.f32.mxu0 %v766
        %993 = vmatmul.mubr.f32.gmra.mxu0 %v765
        %v994 = vpop.f32.mrf.mxu0
        %v995 = vadd.f32 0.0, %v994
        %v996 = vpop.f32.mrf.mxu0
        %997 = vmatprep.mubr.f32.mxu0 %v769
        %998 = vmatmul.mubr.f32.gmra.mxu0 %v768
        %v999 = vpop.f32.mrf.mxu0
        %v1000 = vadd.f32 0.0, %v999
        %v1001 = vpop.f32.mrf.mxu0
        %1002 = vmatprep.mubr.f32.mxu0 %v772
        %1003 = vmatmul.mubr.f32.gmra.mxu0 %v771
        %v1004 = vpop.f32.mrf.mxu0
        %v1005 = vadd.f32 0.0, %v1004
        %v1006 = vpop.f32.mrf.mxu0
        %1007 = vmatprep.mubr.f32.mxu0 %v775
        %1008 = vmatmul.mubr.f32.gmra.mxu0 %v774
        %v1009 = vpop.f32.mrf.mxu0
        %v1010 = vadd.f32 0.0, %v1009
        %v1011 = vpop.f32.mrf.mxu0
        %1012 = vmatprep.mubr.f32.mxu0 %v778
        %1013 = vmatmul.mubr.f32.gmra.mxu0 %v777
        %v1014 = vpop.f32.mrf.mxu0
        %v1015 = vadd.f32 0.0, %v1014
        %v1016 = vpop.f32.mrf.mxu0
        %1017 = vmatprep.mubr.f32.mxu0 %v781
        %1018 = vmatmul.mubr.f32.gmra.mxu0 %v780
        %v1019 = vpop.f32.mrf.mxu0
        %v1020 = vadd.f32 0.0, %v1019
        %v1021 = vpop.f32.mrf.mxu0
        %1022 = vmatprep.mubr.f32.mxu0 %v784
        %1023 = vmatmul.mubr.f32.gmra.mxu0 %v783
        %v1024 = vpop.f32.mrf.mxu0
        %v1025 = vadd.f32 0.0, %v1024
        %v1026 = vpop.f32.mrf.mxu0
        %1027 = vmatprep.mubr.f32.mxu0 %v787
        %1028 = vmatmul.mubr.f32.gmra.mxu0 %v786
        %v1029 = vpop.f32.mrf.mxu0
        %v1030 = vadd.f32 0.0, %v1029
        %v1031 = vpop.f32.mrf.mxu0
        %1032 = vmatprep.mubr.f32.mxu0 %v790
        %1033 = vmatmul.mubr.f32.gmra.mxu0 %v789
        %v1034 = vpop.f32.mrf.mxu0
        %v1035 = vadd.f32 0.0, %v1034
        %v1036 = vpop.f32.mrf.mxu0
        %1037 = vmatprep.mubr.f32.mxu0 %v793
        %1038 = vmatmul.mubr.f32.gmra.mxu0 %v792
        %v1039 = vpop.f32.mrf.mxu0
        %v1040 = vadd.f32 0.0, %v1039
        %v1041 = vpop.f32.mrf.mxu0
        %1042 = vmatprep.mubr.f32.mxu0 %v796
        %1043 = vmatmul.mubr.f32.gmra.mxu0 %v795
        %v1044 = vpop.f32.mrf.mxu0
        %v1045 = vadd.f32 0.0, %v1044
        %v1046 = vpop.f32.mrf.mxu0
        %1047 = vmatprep.mubr.f32.mxu0 %v799
        %1048 = vmatmul.mubr.f32.gmra.mxu0 %v798
        %v1049 = vpop.f32.mrf.mxu0
        %v1050 = vadd.f32 0.0, %v1049
        %v1051 = vpop.f32.mrf.mxu0
        %1052 = vmatprep.mubr.f32.mxu0 %v802
        %1053 = vmatmul.mubr.f32.gmra.mxu0 %v801
        %v1054 = vpop.f32.mrf.mxu0
        %v1055 = vadd.f32 0.0, %v1054
        %v1056 = vpop.f32.mrf.mxu0
        %1057 = vmatprep.mubr.f32.mxu0 %v805
        %1058 = vmatmul.mubr.f32.gmra.mxu0 %v804
        %v1059 = vpop.f32.mrf.mxu0
        %v1060 = vadd.f32 0.0, %v1059
        %v1061 = vpop.f32.mrf.mxu0
        %1062 = vmatprep.mubr.f32.mxu0 %v808
        %1063 = vmatmul.mubr.f32.gmra.mxu0 %v807
        %v1064 = vpop.f32.mrf.mxu0
        %v1065 = vadd.f32 0.0, %v1064
        %v1066 = vpop.f32.mrf.mxu0
        %1067 = vmatprep.mubr.f32.mxu0 %v811
        %1068 = vmatmul.mubr.f32.gmra.mxu0 %v810
        %v1069 = vpop.f32.mrf.mxu0
        %v1070 = vadd.f32 0.0, %v1069
        %v1071 = vpop.f32.mrf.mxu0
        %1072 = vmatprep.mubr.f32.mxu0 %v814
        %1073 = vmatmul.mubr.f32.gmra.mxu0 %v813
        %v1074 = vpop.f32.mrf.mxu0
        %v1075 = vadd.f32 0.0, %v1074
        %v1076 = vpop.f32.mrf.mxu0
        %1077 = vmatprep.mubr.f32.mxu0 %v817
        %1078 = vmatmul.mubr.f32.gmra.mxu0 %v816
        %v1079 = vpop.f32.mrf.mxu0
        %v1080 = vadd.f32 0.0, %v1079
        %v1081 = vpop.f32.mrf.mxu0
        %1082 = vmatprep.mubr.f32.mxu0 %v820
        %1083 = vmatmul.mubr.f32.gmra.mxu0 %v819
        %v1084 = vpop.f32.mrf.mxu0
        %v1085 = vadd.f32 0.0, %v1084
        %v1086 = vpop.f32.mrf.mxu0
        %1087 = vmatprep.mubr.f32.mxu0 %v823
        %1088 = vmatmul.mubr.f32.gmra.mxu0 %v822
        %v1089 = vpop.f32.mrf.mxu0
        %v1090 = vadd.f32 0.0, %v1089
        %v1091 = vpop.f32.mrf.mxu0
        %1092 = vmatprep.mubr.f32.mxu0 %v826
        %1093 = vmatmul.mubr.f32.gmra.mxu0 %v825
        %v1094 = vpop.f32.mrf.mxu0
        %v1095 = vadd.f32 0.0, %v1094
        %v1096 = vpop.f32.mrf.mxu0
        %1097 = vmatprep.mubr.f32.mxu0 %v829
        %1098 = vmatmul.mubr.f32.gmra.mxu0 %v828
        %v1099 = vpop.f32.mrf.mxu0
        %v1100 = vadd.f32 0.0, %v1099
        %v1101 = vpop.f32.mrf.mxu0
        %1102 = vmatprep.mubr.f32.mxu0 %v832
        %1103 = vmatmul.mubr.f32.gmra.mxu0 %v831
        %v1104 = vpop.f32.mrf.mxu0
        %v1105 = vadd.f32 0.0, %v1104
        %v1106 = vpop.f32.mrf.mxu0
        %1107 = vdwg.mxu0
        %1108 = vmatprep.subr.mxu0 0.0
        %1109 = vmatpush1.msra.mxu0 %v882
        %1110 = vmatprep.subr.mxu0 0.0
        %1111 = vmatpush1.msra.mxu0 %v881
        %1112 = vmatprep.subr.mxu0 0.0
        %1113 = vmatpush1.msra.mxu0 %v880
        %1114 = vmatprep.subr.mxu0 0.0
        %1115 = vmatpush1.msra.mxu0 %v879
        %1116 = vmatprep.subr.mxu0 0.0
        %1117 = vmatpush1.msra.mxu0 %v878
        %1118 = vmatprep.subr.mxu0 0.0
        %1119 = vmatpush1.msra.mxu0 %v877
        %1120 = vmatprep.subr.mxu0 0.0
        %1121 = vmatpush1.msra.mxu0 %v876
        %1122 = vmatprep.subr.mxu0 0.0
        %1123 = vmatpush1.msra.mxu0 %v875
        %1124 = vmatprep.subr.mxu0 0.0
        %1125 = vmatpush1.msra.mxu0 %v874
        %1126 = vmatprep.subr.mxu0 0.0
        %1127 = vmatpush1.msra.mxu0 %v873
        %1128 = vmatprep.subr.mxu0 0.0
        %1129 = vmatpush1.msra.mxu0 %v872
        %1130 = vmatprep.subr.mxu0 0.0
        %1131 = vmatpush1.msra.mxu0 %v871
        %1132 = vmatprep.subr.mxu0 0.0
        %1133 = vmatpush1.msra.mxu0 %v870
        %1134 = vmatprep.subr.mxu0 0.0
        %1135 = vmatpush1.msra.mxu0 %v869
        %1136 = vmatprep.subr.mxu0 0.0
        %1137 = vmatpush1.msra.mxu0 %v868
        %1138 = vmatprep.subr.mxu0 0.0
        %1139 = vmatpush1.msra.mxu0 %v867
        %1140 = vmatprep.subr.mxu0 0.0
        %1141 = vmatpush2.msra.mxu0 0.0
        %1142 = vmatprep.subr.mxu0 0.0
        %1143 = vmatpush2.msra.mxu0 0.0
        %1144 = vmatprep.subr.mxu0 0.0
        %1145 = vmatpush2.msra.mxu0 0.0
        %1146 = vmatprep.subr.mxu0 0.0
        %1147 = vmatpush2.msra.mxu0 0.0
        %1148 = vmatprep.subr.mxu0 0.0
        %1149 = vmatpush2.msra.mxu0 0.0
        %1150 = vmatprep.subr.mxu0 0.0
        %1151 = vmatpush2.msra.mxu0 0.0
        %1152 = vmatprep.subr.mxu0 0.0
        %1153 = vmatpush2.msra.mxu0 0.0
        %1154 = vmatprep.subr.mxu0 0.0
        %1155 = vmatpush2.msra.mxu0 0.0
        %1156 = vmatprep.subr.mxu0 0.0
        %1157 = vmatpush2.msra.mxu0 0.0
        %1158 = vmatprep.subr.mxu0 0.0
        %1159 = vmatpush2.msra.mxu0 0.0
        %1160 = vmatprep.subr.mxu0 0.0
        %1161 = vmatpush2.msra.mxu0 0.0
        %1162 = vmatprep.subr.mxu0 0.0
        %1163 = vmatpush2.msra.mxu0 0.0
        %1164 = vmatprep.subr.mxu0 0.0
        %1165 = vmatpush2.msra.mxu0 0.0
        %1166 = vmatprep.subr.mxu0 0.0
        %1167 = vmatpush2.msra.mxu0 0.0
        %1168 = vmatprep.subr.mxu0 0.0
        %1169 = vmatpush2.msra.mxu0 0.0
        %1170 = vmatprep.subr.mxu0 0.0
        %1171 = vmatpush2.msra.mxu0 0.0
        %1172 = vmatprep.mubr.f32.mxu0 0.0
        %1173 = vmatmul.mubr.f32.gmra.mxu0 %v740
        %v1174 = vpop.f32.mrf.mxu0
        %v1175 = vadd.f32 %v950, %v1174
        %v1176 = vpop.f32.mrf.mxu0
        %1177 = vmatprep.mubr.f32.mxu0 0.0
        %1178 = vmatmul.mubr.f32.gmra.mxu0 %v743
        %v1179 = vpop.f32.mrf.mxu0
        %v1180 = vadd.f32 %v955, %v1179
        %v1181 = vpop.f32.mrf.mxu0
        %1182 = vmatprep.mubr.f32.mxu0 0.0
        %1183 = vmatmul.mubr.f32.gmra.mxu0 %v746
        %v1184 = vpop.f32.mrf.mxu0
        %v1185 = vadd.f32 %v960, %v1184
        %v1186 = vpop.f32.mrf.mxu0
        %1187 = vmatprep.mubr.f32.mxu0 0.0
        %1188 = vmatmul.mubr.f32.gmra.mxu0 %v749
        %v1189 = vpop.f32.mrf.mxu0
        %v1190 = vadd.f32 %v965, %v1189
        %v1191 = vpop.f32.mrf.mxu0
        %1192 = vmatprep.mubr.f32.mxu0 0.0
        %1193 = vmatmul.mubr.f32.gmra.mxu0 %v752
        %v1194 = vpop.f32.mrf.mxu0
        %v1195 = vadd.f32 %v970, %v1194
        %v1196 = vpop.f32.mrf.mxu0
        %1197 = vmatprep.mubr.f32.mxu0 0.0
        %1198 = vmatmul.mubr.f32.gmra.mxu0 %v755
        %v1199 = vpop.f32.mrf.mxu0
        %v1200 = vadd.f32 %v975, %v1199
        %v1201 = vpop.f32.mrf.mxu0
        %1202 = vmatprep.mubr.f32.mxu0 0.0
        %1203 = vmatmul.mubr.f32.gmra.mxu0 %v758
        %v1204 = vpop.f32.mrf.mxu0
        %v1205 = vadd.f32 %v980, %v1204
        %v1206 = vpop.f32.mrf.mxu0
        %1207 = vmatprep.mubr.f32.mxu0 0.0
        %1208 = vmatmul.mubr.f32.gmra.mxu0 %v761
        %v1209 = vpop.f32.mrf.mxu0
        %v1210 = vadd.f32 %v985, %v1209
        %v1211 = vpop.f32.mrf.mxu0
        %1212 = vmatprep.mubr.f32.mxu0 0.0
        %1213 = vmatmul.mubr.f32.gmra.mxu0 %v764
        %v1214 = vpop.f32.mrf.mxu0
        %v1215 = vadd.f32 %v990, %v1214
        %v1216 = vpop.f32.mrf.mxu0
        %1217 = vmatprep.mubr.f32.mxu0 0.0
        %1218 = vmatmul.mubr.f32.gmra.mxu0 %v767
        %v1219 = vpop.f32.mrf.mxu0
        %v1220 = vadd.f32 %v995, %v1219
        %v1221 = vpop.f32.mrf.mxu0
        %1222 = vmatprep.mubr.f32.mxu0 0.0
        %1223 = vmatmul.mubr.f32.gmra.mxu0 %v770
        %v1224 = vpop.f32.mrf.mxu0
        %v1225 = vadd.f32 %v1000, %v1224
        %v1226 = vpop.f32.mrf.mxu0
        %1227 = vmatprep.mubr.f32.mxu0 0.0
        %1228 = vmatmul.mubr.f32.gmra.mxu0 %v773
        %v1229 = vpop.f32.mrf.mxu0
        %v1230 = vadd.f32 %v1005, %v1229
        %v1231 = vpop.f32.mrf.mxu0
        %1232 = vmatprep.mubr.f32.mxu0 0.0
        %1233 = vmatmul.mubr.f32.gmra.mxu0 %v776
        %v1234 = vpop.f32.mrf.mxu0
        %v1235 = vadd.f32 %v1010, %v1234
        %v1236 = vpop.f32.mrf.mxu0
        %1237 = vmatprep.mubr.f32.mxu0 0.0
        %1238 = vmatmul.mubr.f32.gmra.mxu0 %v779
        %v1239 = vpop.f32.mrf.mxu0
        %v1240 = vadd.f32 %v1015, %v1239
        %v1241 = vpop.f32.mrf.mxu0
        %1242 = vmatprep.mubr.f32.mxu0 0.0
        %1243 = vmatmul.mubr.f32.gmra.mxu0 %v782
        %v1244 = vpop.f32.mrf.mxu0
        %v1245 = vadd.f32 %v1020, %v1244
        %v1246 = vpop.f32.mrf.mxu0
        %1247 = vmatprep.mubr.f32.mxu0 0.0
        %1248 = vmatmul.mubr.f32.gmra.mxu0 %v785
        %v1249 = vpop.f32.mrf.mxu0
        %v1250 = vadd.f32 %v1025, %v1249
        %v1251 = vpop.f32.mrf.mxu0
        %1252 = vmatprep.mubr.f32.mxu0 0.0
        %1253 = vmatmul.mubr.f32.gmra.mxu0 %v788
        %v1254 = vpop.f32.mrf.mxu0
        %v1255 = vadd.f32 %v1030, %v1254
        %v1256 = vpop.f32.mrf.mxu0
        %1257 = vmatprep.mubr.f32.mxu0 0.0
        %1258 = vmatmul.mubr.f32.gmra.mxu0 %v791
        %v1259 = vpop.f32.mrf.mxu0
        %v1260 = vadd.f32 %v1035, %v1259
        %v1261 = vpop.f32.mrf.mxu0
        %1262 = vmatprep.mubr.f32.mxu0 0.0
        %1263 = vmatmul.mubr.f32.gmra.mxu0 %v794
        %v1264 = vpop.f32.mrf.mxu0
        %v1265 = vadd.f32 %v1040, %v1264
        %v1266 = vpop.f32.mrf.mxu0
        %1267 = vmatprep.mubr.f32.mxu0 0.0
        %1268 = vmatmul.mubr.f32.gmra.mxu0 %v797
        %v1269 = vpop.f32.mrf.mxu0
        %v1270 = vadd.f32 %v1045, %v1269
        %v1271 = vpop.f32.mrf.mxu0
        %1272 = vmatprep.mubr.f32.mxu0 0.0
        %1273 = vmatmul.mubr.f32.gmra.mxu0 %v800
        %v1274 = vpop.f32.mrf.mxu0
        %v1275 = vadd.f32 %v1050, %v1274
        %v1276 = vpop.f32.mrf.mxu0
        %1277 = vmatprep.mubr.f32.mxu0 0.0
        %1278 = vmatmul.mubr.f32.gmra.mxu0 %v803
        %v1279 = vpop.f32.mrf.mxu0
        %v1280 = vadd.f32 %v1055, %v1279
        %v1281 = vpop.f32.mrf.mxu0
        %1282 = vmatprep.mubr.f32.mxu0 0.0
        %1283 = vmatmul.mubr.f32.gmra.mxu0 %v806
        %v1284 = vpop.f32.mrf.mxu0
        %v1285 = vadd.f32 %v1060, %v1284
        %v1286 = vpop.f32.mrf.mxu0
        %1287 = vmatprep.mubr.f32.mxu0 0.0
        %1288 = vmatmul.mubr.f32.gmra.mxu0 %v809
        %v1289 = vpop.f32.mrf.mxu0
        %v1290 = vadd.f32 %v1065, %v1289
        %v1291 = vpop.f32.mrf.mxu0
        %1292 = vmatprep.mubr.f32.mxu0 0.0
        %1293 = vmatmul.mubr.f32.gmra.mxu0 %v812
        %v1294 = vpop.f32.mrf.mxu0
        %v1295 = vadd.f32 %v1070, %v1294
        %v1296 = vpop.f32.mrf.mxu0
        %1297 = vmatprep.mubr.f32.mxu0 0.0
        %1298 = vmatmul.mubr.f32.gmra.mxu0 %v815
        %v1299 = vpop.f32.mrf.mxu0
        %v1300 = vadd.f32 %v1075, %v1299
        %v1301 = vpop.f32.mrf.mxu0
        %1302 = vmatprep.mubr.f32.mxu0 0.0
        %1303 = vmatmul.mubr.f32.gmra.mxu0 %v818
        %v1304 = vpop.f32.mrf.mxu0
        %v1305 = vadd.f32 %v1080, %v1304
        %v1306 = vpop.f32.mrf.mxu0
        %1307 = vmatprep.mubr.f32.mxu0 0.0
        %1308 = vmatmul.mubr.f32.gmra.mxu0 %v821
        %v1309 = vpop.f32.mrf.mxu0
        %v1310 = vadd.f32 %v1085, %v1309
        %v1311 = vpop.f32.mrf.mxu0
        %1312 = vmatprep.mubr.f32.mxu0 0.0
        %1313 = vmatmul.mubr.f32.gmra.mxu0 %v824
        %v1314 = vpop.f32.mrf.mxu0
        %v1315 = vadd.f32 %v1090, %v1314
        %v1316 = vpop.f32.mrf.mxu0
        %1317 = vmatprep.mubr.f32.mxu0 0.0
        %1318 = vmatmul.mubr.f32.gmra.mxu0 %v827
        %v1319 = vpop.f32.mrf.mxu0
        %v1320 = vadd.f32 %v1095, %v1319
        %v1321 = vpop.f32.mrf.mxu0
        %1322 = vmatprep.mubr.f32.mxu0 0.0
        %1323 = vmatmul.mubr.f32.gmra.mxu0 %v830
        %v1324 = vpop.f32.mrf.mxu0
        %v1325 = vadd.f32 %v1100, %v1324
        %v1326 = vpop.f32.mrf.mxu0
        %1327 = vmatprep.mubr.f32.mxu0 0.0
        %1328 = vmatmul.mubr.f32.gmra.mxu0 %v833
        %v1329 = vpop.f32.mrf.mxu0
        %v1330 = vadd.f32 %v1105, %v1329
        %v1331 = vpop.f32.mrf.mxu0
        %1332 = vdwg.mxu0
        %1333 = vmatprep.subr.mxu0 0.0
        %1334 = vmatpush1.msra.mxu0 %v704
        %1335 = vmatprep.subr.mxu0 0.0
        %1336 = vmatpush1.msra.mxu0 %v703
        %1337 = vmatprep.subr.mxu0 0.0
        %1338 = vmatpush1.msra.mxu0 %v702
        %1339 = vmatprep.subr.mxu0 0.0
        %1340 = vmatpush1.msra.mxu0 %v701
        %1341 = vmatprep.subr.mxu0 0.0
        %1342 = vmatpush1.msra.mxu0 %v700
        %1343 = vmatprep.subr.mxu0 0.0
        %1344 = vmatpush1.msra.mxu0 %v699
        %1345 = vmatprep.subr.mxu0 0.0
        %1346 = vmatpush1.msra.mxu0 %v698
        %1347 = vmatprep.subr.mxu0 0.0
        %1348 = vmatpush1.msra.mxu0 %v697
        %1349 = vmatprep.subr.mxu0 0.0
        %1350 = vmatpush1.msra.mxu0 %v696
        %1351 = vmatprep.subr.mxu0 0.0
        %1352 = vmatpush1.msra.mxu0 %v695
        %1353 = vmatprep.subr.mxu0 0.0
        %1354 = vmatpush1.msra.mxu0 %v694
        %1355 = vmatprep.subr.mxu0 0.0
        %1356 = vmatpush1.msra.mxu0 %v693
        %1357 = vmatprep.subr.mxu0 0.0
        %1358 = vmatpush1.msra.mxu0 %v692
        %1359 = vmatprep.subr.mxu0 0.0
        %1360 = vmatpush1.msra.mxu0 %v691
        %1361 = vmatprep.subr.mxu0 0.0
        %1362 = vmatpush1.msra.mxu0 %v690
        %1363 = vmatprep.subr.mxu0 0.0
        %1364 = vmatpush1.msra.mxu0 %v689
        %1365 = vmatprep.subr.mxu0 0.0
        %1366 = vmatpush2.msra.mxu0 %v720
        %1367 = vmatprep.subr.mxu0 0.0
        %1368 = vmatpush2.msra.mxu0 %v719
        %1369 = vmatprep.subr.mxu0 0.0
        %1370 = vmatpush2.msra.mxu0 %v718
        %1371 = vmatprep.subr.mxu0 0.0
        %1372 = vmatpush2.msra.mxu0 %v717
        %1373 = vmatprep.subr.mxu0 0.0
        %1374 = vmatpush2.msra.mxu0 %v716
        %1375 = vmatprep.subr.mxu0 0.0
        %1376 = vmatpush2.msra.mxu0 %v715
        %1377 = vmatprep.subr.mxu0 0.0
        %1378 = vmatpush2.msra.mxu0 %v714
        %1379 = vmatprep.subr.mxu0 0.0
        %1380 = vmatpush2.msra.mxu0 %v713
        %1381 = vmatprep.subr.mxu0 0.0
        %1382 = vmatpush2.msra.mxu0 %v712
        %1383 = vmatprep.subr.mxu0 0.0
        %1384 = vmatpush2.msra.mxu0 %v711
        %1385 = vmatprep.subr.mxu0 0.0
        %1386 = vmatpush2.msra.mxu0 %v710
        %1387 = vmatprep.subr.mxu0 0.0
        %1388 = vmatpush2.msra.mxu0 %v709
        %1389 = vmatprep.subr.mxu0 0.0
        %1390 = vmatpush2.msra.mxu0 %v708
        %1391 = vmatprep.subr.mxu0 0.0
        %1392 = vmatpush2.msra.mxu0 %v707
        %1393 = vmatprep.subr.mxu0 0.0
        %1394 = vmatpush2.msra.mxu0 %v706
        %1395 = vmatprep.subr.mxu0 0.0
        %1396 = vmatpush2.msra.mxu0 %v705
        %1397 = vmatprep.mubr.f32.mxu0 %v594
        %1398 = vmatmul.mubr.f32.gmra.mxu0 %v593
        %v1399 = vpop.f32.mrf.mxu0
        %v1400 = vadd.f32 %v1175, %v1399
        %v1401 = vpop.f32.mrf.mxu0
        %1402 = vmatprep.mubr.f32.mxu0 %v597
        %1403 = vmatmul.mubr.f32.gmra.mxu0 %v596
        %v1404 = vpop.f32.mrf.mxu0
        %v1405 = vadd.f32 %v1180, %v1404
        %v1406 = vpop.f32.mrf.mxu0
        %1407 = vmatprep.mubr.f32.mxu0 %v600
        %1408 = vmatmul.mubr.f32.gmra.mxu0 %v599
        %v1409 = vpop.f32.mrf.mxu0
        %v1410 = vadd.f32 %v1185, %v1409
        %v1411 = vpop.f32.mrf.mxu0
        %1412 = vmatprep.mubr.f32.mxu0 %v603
        %1413 = vmatmul.mubr.f32.gmra.mxu0 %v602
        %v1414 = vpop.f32.mrf.mxu0
        %v1415 = vadd.f32 %v1190, %v1414
        %v1416 = vpop.f32.mrf.mxu0
        %1417 = vmatprep.mubr.f32.mxu0 %v606
        %1418 = vmatmul.mubr.f32.gmra.mxu0 %v605
        %v1419 = vpop.f32.mrf.mxu0
        %v1420 = vadd.f32 %v1195, %v1419
        %v1421 = vpop.f32.mrf.mxu0
        %1422 = vmatprep.mubr.f32.mxu0 %v609
        %1423 = vmatmul.mubr.f32.gmra.mxu0 %v608
        %v1424 = vpop.f32.mrf.mxu0
        %v1425 = vadd.f32 %v1200, %v1424
        %v1426 = vpop.f32.mrf.mxu0
        %1427 = vmatprep.mubr.f32.mxu0 %v612
        %1428 = vmatmul.mubr.f32.gmra.mxu0 %v611
        %v1429 = vpop.f32.mrf.mxu0
        %v1430 = vadd.f32 %v1205, %v1429
        %v1431 = vpop.f32.mrf.mxu0
        %1432 = vmatprep.mubr.f32.mxu0 %v615
        %1433 = vmatmul.mubr.f32.gmra.mxu0 %v614
        %v1434 = vpop.f32.mrf.mxu0
        %v1435 = vadd.f32 %v1210, %v1434
        %v1436 = vpop.f32.mrf.mxu0
        %1437 = vmatprep.mubr.f32.mxu0 %v618
        %1438 = vmatmul.mubr.f32.gmra.mxu0 %v617
        %v1439 = vpop.f32.mrf.mxu0
        %v1440 = vadd.f32 %v1215, %v1439
        %v1441 = vpop.f32.mrf.mxu0
        %1442 = vmatprep.mubr.f32.mxu0 %v621
        %1443 = vmatmul.mubr.f32.gmra.mxu0 %v620
        %v1444 = vpop.f32.mrf.mxu0
        %v1445 = vadd.f32 %v1220, %v1444
        %v1446 = vpop.f32.mrf.mxu0
        %1447 = vmatprep.mubr.f32.mxu0 %v624
        %1448 = vmatmul.mubr.f32.gmra.mxu0 %v623
        %v1449 = vpop.f32.mrf.mxu0
        %v1450 = vadd.f32 %v1225, %v1449
        %v1451 = vpop.f32.mrf.mxu0
        %1452 = vmatprep.mubr.f32.mxu0 %v627
        %1453 = vmatmul.mubr.f32.gmra.mxu0 %v626
        %v1454 = vpop.f32.mrf.mxu0
        %v1455 = vadd.f32 %v1230, %v1454
        %v1456 = vpop.f32.mrf.mxu0
        %1457 = vmatprep.mubr.f32.mxu0 %v630
        %1458 = vmatmul.mubr.f32.gmra.mxu0 %v629
        %v1459 = vpop.f32.mrf.mxu0
        %v1460 = vadd.f32 %v1235, %v1459
        %v1461 = vpop.f32.mrf.mxu0
        %1462 = vmatprep.mubr.f32.mxu0 %v633
        %1463 = vmatmul.mubr.f32.gmra.mxu0 %v632
        %v1464 = vpop.f32.mrf.mxu0
        %v1465 = vadd.f32 %v1240, %v1464
        %v1466 = vpop.f32.mrf.mxu0
        %1467 = vmatprep.mubr.f32.mxu0 %v636
        %1468 = vmatmul.mubr.f32.gmra.mxu0 %v635
        %v1469 = vpop.f32.mrf.mxu0
        %v1470 = vadd.f32 %v1245, %v1469
        %v1471 = vpop.f32.mrf.mxu0
        %1472 = vmatprep.mubr.f32.mxu0 %v639
        %1473 = vmatmul.mubr.f32.gmra.mxu0 %v638
        %v1474 = vpop.f32.mrf.mxu0
        %v1475 = vadd.f32 %v1250, %v1474
        %v1476 = vpop.f32.mrf.mxu0
        %1477 = vmatprep.mubr.f32.mxu0 %v642
        %1478 = vmatmul.mubr.f32.gmra.mxu0 %v641
        %v1479 = vpop.f32.mrf.mxu0
        %v1480 = vadd.f32 %v1255, %v1479
        %v1481 = vpop.f32.mrf.mxu0
        %1482 = vmatprep.mubr.f32.mxu0 %v645
        %1483 = vmatmul.mubr.f32.gmra.mxu0 %v644
        %v1484 = vpop.f32.mrf.mxu0
        %v1485 = vadd.f32 %v1260, %v1484
        %v1486 = vpop.f32.mrf.mxu0
        %1487 = vmatprep.mubr.f32.mxu0 %v648
        %1488 = vmatmul.mubr.f32.gmra.mxu0 %v647
        %v1489 = vpop.f32.mrf.mxu0
        %v1490 = vadd.f32 %v1265, %v1489
        %v1491 = vpop.f32.mrf.mxu0
        %1492 = vmatprep.mubr.f32.mxu0 %v651
        %1493 = vmatmul.mubr.f32.gmra.mxu0 %v650
        %v1494 = vpop.f32.mrf.mxu0
        %v1495 = vadd.f32 %v1270, %v1494
        %v1496 = vpop.f32.mrf.mxu0
        %1497 = vmatprep.mubr.f32.mxu0 %v654
        %1498 = vmatmul.mubr.f32.gmra.mxu0 %v653
        %v1499 = vpop.f32.mrf.mxu0
        %v1500 = vadd.f32 %v1275, %v1499
        %v1501 = vpop.f32.mrf.mxu0
        %1502 = vmatprep.mubr.f32.mxu0 %v657
        %1503 = vmatmul.mubr.f32.gmra.mxu0 %v656
        %v1504 = vpop.f32.mrf.mxu0
        %v1505 = vadd.f32 %v1280, %v1504
        %v1506 = vpop.f32.mrf.mxu0
        %1507 = vmatprep.mubr.f32.mxu0 %v660
        %1508 = vmatmul.mubr.f32.gmra.mxu0 %v659
        %v1509 = vpop.f32.mrf.mxu0
        %v1510 = vadd.f32 %v1285, %v1509
        %v1511 = vpop.f32.mrf.mxu0
        %1512 = vmatprep.mubr.f32.mxu0 %v663
        %1513 = vmatmul.mubr.f32.gmra.mxu0 %v662
        %v1514 = vpop.f32.mrf.mxu0
        %v1515 = vadd.f32 %v1290, %v1514
        %v1516 = vpop.f32.mrf.mxu0
        %1517 = vmatprep.mubr.f32.mxu0 %v666
        %1518 = vmatmul.mubr.f32.gmra.mxu0 %v665
        %v1519 = vpop.f32.mrf.mxu0
        %v1520 = vadd.f32 %v1295, %v1519
        %v1521 = vpop.f32.mrf.mxu0
        %1522 = vmatprep.mubr.f32.mxu0 %v669
        %1523 = vmatmul.mubr.f32.gmra.mxu0 %v668
        %v1524 = vpop.f32.mrf.mxu0
        %v1525 = vadd.f32 %v1300, %v1524
        %v1526 = vpop.f32.mrf.mxu0
        %1527 = vmatprep.mubr.f32.mxu0 %v672
        %1528 = vmatmul.mubr.f32.gmra.mxu0 %v671
        %v1529 = vpop.f32.mrf.mxu0
        %v1530 = vadd.f32 %v1305, %v1529
        %v1531 = vpop.f32.mrf.mxu0
        %1532 = vmatprep.mubr.f32.mxu0 %v675
        %1533 = vmatmul.mubr.f32.gmra.mxu0 %v674
        %v1534 = vpop.f32.mrf.mxu0
        %v1535 = vadd.f32 %v1310, %v1534
        %v1536 = vpop.f32.mrf.mxu0
        %1537 = vmatprep.mubr.f32.mxu0 %v678
        %1538 = vmatmul.mubr.f32.gmra.mxu0 %v677
        %v1539 = vpop.f32.mrf.mxu0
        %v1540 = vadd.f32 %v1315, %v1539
        %v1541 = vpop.f32.mrf.mxu0
        %1542 = vmatprep.mubr.f32.mxu0 %v681
        %1543 = vmatmul.mubr.f32.gmra.mxu0 %v680
        %v1544 = vpop.f32.mrf.mxu0
        %v1545 = vadd.f32 %v1320, %v1544
        %v1546 = vpop.f32.mrf.mxu0
        %1547 = vmatprep.mubr.f32.mxu0 %v684
        %1548 = vmatmul.mubr.f32.gmra.mxu0 %v683
        %v1549 = vpop.f32.mrf.mxu0
        %v1550 = vadd.f32 %v1325, %v1549
        %v1551 = vpop.f32.mrf.mxu0
        %1552 = vmatprep.mubr.f32.mxu0 %v687
        %1553 = vmatmul.mubr.f32.gmra.mxu0 %v686
        %v1554 = vpop.f32.mrf.mxu0
        %v1555 = vadd.f32 %v1330, %v1554
        %v1556 = vpop.f32.mrf.mxu0
        %1557 = vdwg.mxu0
        %1558 = vmatprep.subr.mxu0 0.0
        %1559 = vmatpush1.msra.mxu0 %v736
        %1560 = vmatprep.subr.mxu0 0.0
        %1561 = vmatpush1.msra.mxu0 %v735
        %1562 = vmatprep.subr.mxu0 0.0
        %1563 = vmatpush1.msra.mxu0 %v734
        %1564 = vmatprep.subr.mxu0 0.0
        %1565 = vmatpush1.msra.mxu0 %v733
        %1566 = vmatprep.subr.mxu0 0.0
        %1567 = vmatpush1.msra.mxu0 %v732
        %1568 = vmatprep.subr.mxu0 0.0
        %1569 = vmatpush1.msra.mxu0 %v731
        %1570 = vmatprep.subr.mxu0 0.0
        %1571 = vmatpush1.msra.mxu0 %v730
        %1572 = vmatprep.subr.mxu0 0.0
        %1573 = vmatpush1.msra.mxu0 %v729
        %1574 = vmatprep.subr.mxu0 0.0
        %1575 = vmatpush1.msra.mxu0 %v728
        %1576 = vmatprep.subr.mxu0 0.0
        %1577 = vmatpush1.msra.mxu0 %v727
        %1578 = vmatprep.subr.mxu0 0.0
        %1579 = vmatpush1.msra.mxu0 %v726
        %1580 = vmatprep.subr.mxu0 0.0
        %1581 = vmatpush1.msra.mxu0 %v725
        %1582 = vmatprep.subr.mxu0 0.0
        %1583 = vmatpush1.msra.mxu0 %v724
        %1584 = vmatprep.subr.mxu0 0.0
        %1585 = vmatpush1.msra.mxu0 %v723
        %1586 = vmatprep.subr.mxu0 0.0
        %1587 = vmatpush1.msra.mxu0 %v722
        %1588 = vmatprep.subr.mxu0 0.0
        %1589 = vmatpush1.msra.mxu0 %v721
        %1590 = vmatprep.subr.mxu0 0.0
        %1591 = vmatpush2.msra.mxu0 0.0
        %1592 = vmatprep.subr.mxu0 0.0
        %1593 = vmatpush2.msra.mxu0 0.0
        %1594 = vmatprep.subr.mxu0 0.0
        %1595 = vmatpush2.msra.mxu0 0.0
        %1596 = vmatprep.subr.mxu0 0.0
        %1597 = vmatpush2.msra.mxu0 0.0
        %1598 = vmatprep.subr.mxu0 0.0
        %1599 = vmatpush2.msra.mxu0 0.0
        %1600 = vmatprep.subr.mxu0 0.0
        %1601 = vmatpush2.msra.mxu0 0.0
        %1602 = vmatprep.subr.mxu0 0.0
        %1603 = vmatpush2.msra.mxu0 0.0
        %1604 = vmatprep.subr.mxu0 0.0
        %1605 = vmatpush2.msra.mxu0 0.0
        %1606 = vmatprep.subr.mxu0 0.0
        %1607 = vmatpush2.msra.mxu0 0.0
        %1608 = vmatprep.subr.mxu0 0.0
        %1609 = vmatpush2.msra.mxu0 0.0
        %1610 = vmatprep.subr.mxu0 0.0
        %1611 = vmatpush2.msra.mxu0 0.0
        %1612 = vmatprep.subr.mxu0 0.0
        %1613 = vmatpush2.msra.mxu0 0.0
        %1614 = vmatprep.subr.mxu0 0.0
        %1615 = vmatpush2.msra.mxu0 0.0
        %1616 = vmatprep.subr.mxu0 0.0
        %1617 = vmatpush2.msra.mxu0 0.0
        %1618 = vmatprep.subr.mxu0 0.0
        %1619 = vmatpush2.msra.mxu0 0.0
        %1620 = vmatprep.subr.mxu0 0.0
        %1621 = vmatpush2.msra.mxu0 0.0
        %1622 = vmatprep.mubr.f32.mxu0 0.0
        %1623 = vmatmul.mubr.f32.gmra.mxu0 %v595
        %v1624 = vpop.f32.mrf.mxu0
        %v1625 = vadd.f32 %v1400, %v1624
        %v1626 = vpop.f32.mrf.mxu0
        %1627 = vmatprep.mubr.f32.mxu0 0.0
        %1628 = vmatmul.mubr.f32.gmra.mxu0 %v598
        %v1629 = vpop.f32.mrf.mxu0
        %v1630 = vadd.f32 %v1405, %v1629
        %v1631 = vpop.f32.mrf.mxu0
        %1632 = vmatprep.mubr.f32.mxu0 0.0
        %1633 = vmatmul.mubr.f32.gmra.mxu0 %v601
        %v1634 = vpop.f32.mrf.mxu0
        %v1635 = vadd.f32 %v1410, %v1634
        %v1636 = vpop.f32.mrf.mxu0
        %1637 = vmatprep.mubr.f32.mxu0 0.0
        %1638 = vmatmul.mubr.f32.gmra.mxu0 %v604
        %v1639 = vpop.f32.mrf.mxu0
        %v1640 = vadd.f32 %v1415, %v1639
        %v1641 = vpop.f32.mrf.mxu0
        %1642 = vmatprep.mubr.f32.mxu0 0.0
        %1643 = vmatmul.mubr.f32.gmra.mxu0 %v607
        %v1644 = vpop.f32.mrf.mxu0
        %v1645 = vadd.f32 %v1420, %v1644
        %v1646 = vpop.f32.mrf.mxu0
        %1647 = vmatprep.mubr.f32.mxu0 0.0
        %1648 = vmatmul.mubr.f32.gmra.mxu0 %v610
        %v1649 = vpop.f32.mrf.mxu0
        %v1650 = vadd.f32 %v1425, %v1649
        %v1651 = vpop.f32.mrf.mxu0
        %1652 = vmatprep.mubr.f32.mxu0 0.0
        %1653 = vmatmul.mubr.f32.gmra.mxu0 %v613
        %v1654 = vpop.f32.mrf.mxu0
        %v1655 = vadd.f32 %v1430, %v1654
        %v1656 = vpop.f32.mrf.mxu0
        %1657 = vmatprep.mubr.f32.mxu0 0.0
        %1658 = vmatmul.mubr.f32.gmra.mxu0 %v616
        %v1659 = vpop.f32.mrf.mxu0
        %v1660 = vadd.f32 %v1435, %v1659
        %v1661 = vpop.f32.mrf.mxu0
        %1662 = vmatprep.mubr.f32.mxu0 0.0
        %1663 = vmatmul.mubr.f32.gmra.mxu0 %v619
        %v1664 = vpop.f32.mrf.mxu0
        %v1665 = vadd.f32 %v1440, %v1664
        %v1666 = vpop.f32.mrf.mxu0
        %1667 = vmatprep.mubr.f32.mxu0 0.0
        %1668 = vmatmul.mubr.f32.gmra.mxu0 %v622
        %v1669 = vpop.f32.mrf.mxu0
        %v1670 = vadd.f32 %v1445, %v1669
        %v1671 = vpop.f32.mrf.mxu0
        %1672 = vmatprep.mubr.f32.mxu0 0.0
        %1673 = vmatmul.mubr.f32.gmra.mxu0 %v625
        %v1674 = vpop.f32.mrf.mxu0
        %v1675 = vadd.f32 %v1450, %v1674
        %v1676 = vpop.f32.mrf.mxu0
        %1677 = vmatprep.mubr.f32.mxu0 0.0
        %1678 = vmatmul.mubr.f32.gmra.mxu0 %v628
        %v1679 = vpop.f32.mrf.mxu0
        %v1680 = vadd.f32 %v1455, %v1679
        %v1681 = vpop.f32.mrf.mxu0
        %1682 = vmatprep.mubr.f32.mxu0 0.0
        %1683 = vmatmul.mubr.f32.gmra.mxu0 %v631
        %v1684 = vpop.f32.mrf.mxu0
        %v1685 = vadd.f32 %v1460, %v1684
        %v1686 = vpop.f32.mrf.mxu0
        %1687 = vmatprep.mubr.f32.mxu0 0.0
        %1688 = vmatmul.mubr.f32.gmra.mxu0 %v634
        %v1689 = vpop.f32.mrf.mxu0
        %v1690 = vadd.f32 %v1465, %v1689
        %v1691 = vpop.f32.mrf.mxu0
        %1692 = vmatprep.mubr.f32.mxu0 0.0
        %1693 = vmatmul.mubr.f32.gmra.mxu0 %v637
        %v1694 = vpop.f32.mrf.mxu0
        %v1695 = vadd.f32 %v1470, %v1694
        %v1696 = vpop.f32.mrf.mxu0
        %1697 = vmatprep.mubr.f32.mxu0 0.0
        %1698 = vmatmul.mubr.f32.gmra.mxu0 %v640
        %v1699 = vpop.f32.mrf.mxu0
        %v1700 = vadd.f32 %v1475, %v1699
        %v1701 = vpop.f32.mrf.mxu0
        %1702 = vmatprep.mubr.f32.mxu0 0.0
        %1703 = vmatmul.mubr.f32.gmra.mxu0 %v643
        %v1704 = vpop.f32.mrf.mxu0
        %v1705 = vadd.f32 %v1480, %v1704
        %v1706 = vpop.f32.mrf.mxu0
        %1707 = vmatprep.mubr.f32.mxu0 0.0
        %1708 = vmatmul.mubr.f32.gmra.mxu0 %v646
        %v1709 = vpop.f32.mrf.mxu0
        %v1710 = vadd.f32 %v1485, %v1709
        %v1711 = vpop.f32.mrf.mxu0
        %1712 = vmatprep.mubr.f32.mxu0 0.0
        %1713 = vmatmul.mubr.f32.gmra.mxu0 %v649
        %v1714 = vpop.f32.mrf.mxu0
        %v1715 = vadd.f32 %v1490, %v1714
        %v1716 = vpop.f32.mrf.mxu0
        %1717 = vmatprep.mubr.f32.mxu0 0.0
        %1718 = vmatmul.mubr.f32.gmra.mxu0 %v652
        %v1719 = vpop.f32.mrf.mxu0
        %v1720 = vadd.f32 %v1495, %v1719
        %v1721 = vpop.f32.mrf.mxu0
        %1722 = vmatprep.mubr.f32.mxu0 0.0
        %1723 = vmatmul.mubr.f32.gmra.mxu0 %v655
        %v1724 = vpop.f32.mrf.mxu0
        %v1725 = vadd.f32 %v1500, %v1724
        %v1726 = vpop.f32.mrf.mxu0
        %1727 = vmatprep.mubr.f32.mxu0 0.0
        %1728 = vmatmul.mubr.f32.gmra.mxu0 %v658
        %v1729 = vpop.f32.mrf.mxu0
        %v1730 = vadd.f32 %v1505, %v1729
        %v1731 = vpop.f32.mrf.mxu0
        %1732 = vmatprep.mubr.f32.mxu0 0.0
        %1733 = vmatmul.mubr.f32.gmra.mxu0 %v661
        %v1734 = vpop.f32.mrf.mxu0
        %v1735 = vadd.f32 %v1510, %v1734
        %v1736 = vpop.f32.mrf.mxu0
        %1737 = vmatprep.mubr.f32.mxu0 0.0
        %1738 = vmatmul.mubr.f32.gmra.mxu0 %v664
        %v1739 = vpop.f32.mrf.mxu0
        %v1740 = vadd.f32 %v1515, %v1739
        %v1741 = vpop.f32.mrf.mxu0
        %1742 = vmatprep.mubr.f32.mxu0 0.0
        %1743 = vmatmul.mubr.f32.gmra.mxu0 %v667
        %v1744 = vpop.f32.mrf.mxu0
        %v1745 = vadd.f32 %v1520, %v1744
        %v1746 = vpop.f32.mrf.mxu0
        %1747 = vmatprep.mubr.f32.mxu0 0.0
        %1748 = vmatmul.mubr.f32.gmra.mxu0 %v670
        %v1749 = vpop.f32.mrf.mxu0
        %v1750 = vadd.f32 %v1525, %v1749
        %v1751 = vpop.f32.mrf.mxu0
        %1752 = vmatprep.mubr.f32.mxu0 0.0
        %1753 = vmatmul.mubr.f32.gmra.mxu0 %v673
        %v1754 = vpop.f32.mrf.mxu0
        %v1755 = vadd.f32 %v1530, %v1754
        %v1756 = vpop.f32.mrf.mxu0
        %1757 = vmatprep.mubr.f32.mxu0 0.0
        %1758 = vmatmul.mubr.f32.gmra.mxu0 %v676
        %v1759 = vpop.f32.mrf.mxu0
        %v1760 = vadd.f32 %v1535, %v1759
        %v1761 = vpop.f32.mrf.mxu0
        %1762 = vmatprep.mubr.f32.mxu0 0.0
        %1763 = vmatmul.mubr.f32.gmra.mxu0 %v679
        %v1764 = vpop.f32.mrf.mxu0
        %v1765 = vadd.f32 %v1540, %v1764
        %v1766 = vpop.f32.mrf.mxu0
        %1767 = vmatprep.mubr.f32.mxu0 0.0
        %1768 = vmatmul.mubr.f32.gmra.mxu0 %v682
        %v1769 = vpop.f32.mrf.mxu0
        %v1770 = vadd.f32 %v1545, %v1769
        %v1771 = vpop.f32.mrf.mxu0
        %1772 = vmatprep.mubr.f32.mxu0 0.0
        %1773 = vmatmul.mubr.f32.gmra.mxu0 %v685
        %v1774 = vpop.f32.mrf.mxu0
        %v1775 = vadd.f32 %v1550, %v1774
        %v1776 = vpop.f32.mrf.mxu0
        %1777 = vmatprep.mubr.f32.mxu0 0.0
        %1778 = vmatmul.mubr.f32.gmra.mxu0 %v688
        %v1779 = vpop.f32.mrf.mxu0
        %v1780 = vadd.f32 %v1555, %v1779
        %v1781 = vpop.f32.mrf.mxu0
        %1782 = vdwg.mxu0
        %s1783 = scalar_lea.vmem [#allocation3], 96
        %v1784 = vld [vmem:[%s1783] sm:$0xff]
        %v1785 = vld [vmem:[%s1783 + $0x8] sm:$0xff]
        %v1786 = vld [vmem:[%s1783 + $0x10] sm:$0xff]
        %v1787 = vld [vmem:[%s1783 + $0x18] sm:$0xff]
        %v1788 = vld [vmem:[%s1783 + $0x20] sm:$0xff]
        %v1789 = vld [vmem:[%s1783 + $0x28] sm:$0xff]
        %v1790 = vld [vmem:[%s1783 + $0x30] sm:$0xff]
        %v1791 = vld [vmem:[%s1783 + $0x38] sm:$0xff]
        %v1792 = vld [vmem:[%s1783 + $0x40] sm:$0xff]
        %v1793 = vld [vmem:[%s1783 + $0x48] sm:$0xff]
        %v1794 = vld [vmem:[%s1783 + $0x50] sm:$0xff]
        %v1795 = vld [vmem:[%s1783 + $0x58] sm:$0xff]
        %v1796 = vld [vmem:[%s1783 + $0x60] sm:$0xff]
        %v1797 = vld [vmem:[%s1783 + $0x68] sm:$0xff]
        %v1798 = vld [vmem:[%s1783 + $0x70] sm:$0xff]
        %v1799 = vld [vmem:[%s1783 + $0x78] sm:$0xff]
        %v1800 = vld [vmem:[%s1783 + $0x80] sm:$0xff]
        %v1801 = vld [vmem:[%s1783 + $0x88] sm:$0xff]
        %v1802 = vld [vmem:[%s1783 + $0x90] sm:$0xff]
        %v1803 = vld [vmem:[%s1783 + $0x98] sm:$0xff]
        %v1804 = vld [vmem:[%s1783 + $0xa0] sm:$0xff]
        %v1805 = vld [vmem:[%s1783 + $0xa8] sm:$0xff]
        %v1806 = vld [vmem:[%s1783 + $0xb0] sm:$0xff]
        %v1807 = vld [vmem:[%s1783 + $0xb8] sm:$0xff]
        %v1808 = vld [vmem:[%s1783 + $0xc0] sm:$0xff]
        %v1809 = vld [vmem:[%s1783 + $0xc8] sm:$0xff]
        %v1810 = vld [vmem:[%s1783 + $0xd0] sm:$0xff]
        %v1811 = vld [vmem:[%s1783 + $0xd8] sm:$0xff]
        %v1812 = vld [vmem:[%s1783 + $0xe0] sm:$0xff]
        %v1813 = vld [vmem:[%s1783 + $0xe8] sm:$0xff]
        %v1814 = vld [vmem:[%s1783 + $0xf0] sm:$0xff]
        %v1815 = vld [vmem:[%s1783 + $0xf8] sm:$0xff]
        %v1816 = vld [vmem:[%s1783 + $0x100] sm:$0xff]
        %v1817 = vld [vmem:[%s1783 + $0x108] sm:$0xff]
        %v1818 = vld [vmem:[%s1783 + $0x110] sm:$0xff]
        %v1819 = vld [vmem:[%s1783 + $0x118] sm:$0xff]
        %v1820 = vld [vmem:[%s1783 + $0x120] sm:$0xff]
        %v1821 = vld [vmem:[%s1783 + $0x128] sm:$0xff]
        %v1822 = vld [vmem:[%s1783 + $0x130] sm:$0xff]
        %v1823 = vld [vmem:[%s1783 + $0x138] sm:$0xff]
        %v1824 = vld [vmem:[%s1783 + $0x140] sm:$0xff]
        %v1825 = vld [vmem:[%s1783 + $0x148] sm:$0xff]
        %v1826 = vld [vmem:[%s1783 + $0x150] sm:$0xff]
        %v1827 = vld [vmem:[%s1783 + $0x158] sm:$0xff]
        %v1828 = vld [vmem:[%s1783 + $0x160] sm:$0xff]
        %v1829 = vld [vmem:[%s1783 + $0x168] sm:$0xff]
        %v1830 = vld [vmem:[%s1783 + $0x170] sm:$0xff]
        %v1831 = vld [vmem:[%s1783 + $0x178] sm:$0xff]
        %v1832 = vld [vmem:[%s1783 + $0x180] sm:$0xff]
        %v1833 = vld [vmem:[%s1783 + $0x188] sm:$0xff]
        %v1834 = vld [vmem:[%s1783 + $0x190] sm:$0xff]
        %v1835 = vld [vmem:[%s1783 + $0x198] sm:$0xff]
        %v1836 = vld [vmem:[%s1783 + $0x1a0] sm:$0xff]
        %v1837 = vld [vmem:[%s1783 + $0x1a8] sm:$0xff]
        %v1838 = vld [vmem:[%s1783 + $0x1b0] sm:$0xff]
        %v1839 = vld [vmem:[%s1783 + $0x1b8] sm:$0xff]
        %v1840 = vld [vmem:[%s1783 + $0x1c0] sm:$0xff]
        %v1841 = vld [vmem:[%s1783 + $0x1c8] sm:$0xff]
        %v1842 = vld [vmem:[%s1783 + $0x1d0] sm:$0xff]
        %v1843 = vld [vmem:[%s1783 + $0x1d8] sm:$0xff]
        %v1844 = vld [vmem:[%s1783 + $0x1e0] sm:$0xff]
        %v1845 = vld [vmem:[%s1783 + $0x1e8] sm:$0xff]
        %v1846 = vld [vmem:[%s1783 + $0x1f0] sm:$0xff]
        %v1847 = vld [vmem:[%s1783 + $0x1f8] sm:$0xff]
        %v1848 = vld [vmem:[%s1783 + $0x200] sm:$0xff]
        %v1849 = vld [vmem:[%s1783 + $0x208] sm:$0xff]
        %v1850 = vld [vmem:[%s1783 + $0x210] sm:$0xff]
        %v1851 = vld [vmem:[%s1783 + $0x218] sm:$0xff]
        %v1852 = vld [vmem:[%s1783 + $0x220] sm:$0xff]
        %v1853 = vld [vmem:[%s1783 + $0x228] sm:$0xff]
        %v1854 = vld [vmem:[%s1783 + $0x230] sm:$0xff]
        %v1855 = vld [vmem:[%s1783 + $0x238] sm:$0xff]
        %v1856 = vld [vmem:[%s1783 + $0x240] sm:$0xff]
        %v1857 = vld [vmem:[%s1783 + $0x248] sm:$0xff]
        %v1858 = vld [vmem:[%s1783 + $0x250] sm:$0xff]
        %v1859 = vld [vmem:[%s1783 + $0x258] sm:$0xff]
        %v1860 = vld [vmem:[%s1783 + $0x260] sm:$0xff]
        %v1861 = vld [vmem:[%s1783 + $0x268] sm:$0xff]
        %v1862 = vld [vmem:[%s1783 + $0x270] sm:$0xff]
        %v1863 = vld [vmem:[%s1783 + $0x278] sm:$0xff]
        %v1864 = vld [vmem:[%s1783 + $0x280] sm:$0xff]
        %v1865 = vld [vmem:[%s1783 + $0x288] sm:$0xff]
        %v1866 = vld [vmem:[%s1783 + $0x290] sm:$0xff]
        %v1867 = vld [vmem:[%s1783 + $0x298] sm:$0xff]
        %v1868 = vld [vmem:[%s1783 + $0x2a0] sm:$0xff]
        %v1869 = vld [vmem:[%s1783 + $0x2a8] sm:$0xff]
        %v1870 = vld [vmem:[%s1783 + $0x2b0] sm:$0xff]
        %v1871 = vld [vmem:[%s1783 + $0x2b8] sm:$0xff]
        %v1872 = vld [vmem:[%s1783 + $0x2c0] sm:$0xff]
        %v1873 = vld [vmem:[%s1783 + $0x2c8] sm:$0xff]
        %v1874 = vld [vmem:[%s1783 + $0x2d0] sm:$0xff]
        %v1875 = vld [vmem:[%s1783 + $0x2d8] sm:$0xff]
        %v1876 = vld [vmem:[%s1783 + $0x2e0] sm:$0xff]
        %v1877 = vld [vmem:[%s1783 + $0x2e8] sm:$0xff]
        %v1878 = vld [vmem:[%s1783 + $0x2f0] sm:$0xff]
        %v1879 = vld [vmem:[%s1783 + $0x2f8] sm:$0xff]
        %s1880 = scalar_lea.vmem [#allocation7], 768
        %v1881 = vld [vmem:[%s1880] sm:$0xff]
        %v1882 = vld [vmem:[%s1880 + $0x8] sm:$0xff]
        %v1883 = vld [vmem:[%s1880 + $0x10] sm:$0xff]
        %v1884 = vld [vmem:[%s1880 + $0x18] sm:$0xff]
        %v1885 = vld [vmem:[%s1880 + $0x20] sm:$0xff]
        %v1886 = vld [vmem:[%s1880 + $0x28] sm:$0xff]
        %v1887 = vld [vmem:[%s1880 + $0x30] sm:$0xff]
        %v1888 = vld [vmem:[%s1880 + $0x38] sm:$0xff]
        %v1889 = vld [vmem:[%s1880 + $0x40] sm:$0xff]
        %v1890 = vld [vmem:[%s1880 + $0x48] sm:$0xff]
        %v1891 = vld [vmem:[%s1880 + $0x50] sm:$0xff]
        %v1892 = vld [vmem:[%s1880 + $0x58] sm:$0xff]
        %v1893 = vld [vmem:[%s1880 + $0x60] sm:$0xff]
        %v1894 = vld [vmem:[%s1880 + $0x68] sm:$0xff]
        %v1895 = vld [vmem:[%s1880 + $0x70] sm:$0xff]
        %v1896 = vld [vmem:[%s1880 + $0x78] sm:$0xff]
        %v1897 = vld [vmem:[%s1880 + $0x80] sm:$0xff]
        %v1898 = vld [vmem:[%s1880 + $0x88] sm:$0xff]
        %v1899 = vld [vmem:[%s1880 + $0x90] sm:$0xff]
        %v1900 = vld [vmem:[%s1880 + $0x98] sm:$0xff]
        %v1901 = vld [vmem:[%s1880 + $0xa0] sm:$0xff]
        %v1902 = vld [vmem:[%s1880 + $0xa8] sm:$0xff]
        %v1903 = vld [vmem:[%s1880 + $0xb0] sm:$0xff]
        %v1904 = vld [vmem:[%s1880 + $0xb8] sm:$0xff]
        %v1905 = vld [vmem:[%s1880 + $0xc0] sm:$0xff]
        %v1906 = vld [vmem:[%s1880 + $0xc8] sm:$0xff]
        %v1907 = vld [vmem:[%s1880 + $0xd0] sm:$0xff]
        %v1908 = vld [vmem:[%s1880 + $0xd8] sm:$0xff]
        %v1909 = vld [vmem:[%s1880 + $0xe0] sm:$0xff]
        %v1910 = vld [vmem:[%s1880 + $0xe8] sm:$0xff]
        %v1911 = vld [vmem:[%s1880 + $0xf0] sm:$0xff]
        %v1912 = vld [vmem:[%s1880 + $0xf8] sm:$0xff]
        %v1913 = vld [vmem:[%s1880 + $0x100] sm:$0xff]
        %v1914 = vld [vmem:[%s1880 + $0x108] sm:$0xff]
        %v1915 = vld [vmem:[%s1880 + $0x110] sm:$0xff]
        %v1916 = vld [vmem:[%s1880 + $0x118] sm:$0xff]
        %v1917 = vld [vmem:[%s1880 + $0x120] sm:$0xff]
        %v1918 = vld [vmem:[%s1880 + $0x128] sm:$0xff]
        %v1919 = vld [vmem:[%s1880 + $0x130] sm:$0xff]
        %v1920 = vld [vmem:[%s1880 + $0x138] sm:$0xff]
        %v1921 = vld [vmem:[%s1880 + $0x140] sm:$0xff]
        %v1922 = vld [vmem:[%s1880 + $0x148] sm:$0xff]
        %v1923 = vld [vmem:[%s1880 + $0x150] sm:$0xff]
        %v1924 = vld [vmem:[%s1880 + $0x158] sm:$0xff]
        %v1925 = vld [vmem:[%s1880 + $0x160] sm:$0xff]
        %v1926 = vld [vmem:[%s1880 + $0x168] sm:$0xff]
        %v1927 = vld [vmem:[%s1880 + $0x170] sm:$0xff]
        %v1928 = vld [vmem:[%s1880 + $0x178] sm:$0xff]
        %1929 = vmatprep.subr.mxu0 0.0
        %1930 = vmatpush1.msra.mxu0 %v1896
        %1931 = vmatprep.subr.mxu0 0.0
        %1932 = vmatpush1.msra.mxu0 %v1895
        %1933 = vmatprep.subr.mxu0 0.0
        %1934 = vmatpush1.msra.mxu0 %v1894
        %1935 = vmatprep.subr.mxu0 0.0
        %1936 = vmatpush1.msra.mxu0 %v1893
        %1937 = vmatprep.subr.mxu0 0.0
        %1938 = vmatpush1.msra.mxu0 %v1892
        %1939 = vmatprep.subr.mxu0 0.0
        %1940 = vmatpush1.msra.mxu0 %v1891
        %1941 = vmatprep.subr.mxu0 0.0
        %1942 = vmatpush1.msra.mxu0 %v1890
        %1943 = vmatprep.subr.mxu0 0.0
        %1944 = vmatpush1.msra.mxu0 %v1889
        %1945 = vmatprep.subr.mxu0 0.0
        %1946 = vmatpush1.msra.mxu0 %v1888
        %1947 = vmatprep.subr.mxu0 0.0
        %1948 = vmatpush1.msra.mxu0 %v1887
        %1949 = vmatprep.subr.mxu0 0.0
        %1950 = vmatpush1.msra.mxu0 %v1886
        %1951 = vmatprep.subr.mxu0 0.0
        %1952 = vmatpush1.msra.mxu0 %v1885
        %1953 = vmatprep.subr.mxu0 0.0
        %1954 = vmatpush1.msra.mxu0 %v1884
        %1955 = vmatprep.subr.mxu0 0.0
        %1956 = vmatpush1.msra.mxu0 %v1883
        %1957 = vmatprep.subr.mxu0 0.0
        %1958 = vmatpush1.msra.mxu0 %v1882
        %1959 = vmatprep.subr.mxu0 0.0
        %1960 = vmatpush1.msra.mxu0 %v1881
        %1961 = vmatprep.subr.mxu0 0.0
        %1962 = vmatpush2.msra.mxu0 %v1912
        %1963 = vmatprep.subr.mxu0 0.0
        %1964 = vmatpush2.msra.mxu0 %v1911
        %1965 = vmatprep.subr.mxu0 0.0
        %1966 = vmatpush2.msra.mxu0 %v1910
        %1967 = vmatprep.subr.mxu0 0.0
        %1968 = vmatpush2.msra.mxu0 %v1909
        %1969 = vmatprep.subr.mxu0 0.0
        %1970 = vmatpush2.msra.mxu0 %v1908
        %1971 = vmatprep.subr.mxu0 0.0
        %1972 = vmatpush2.msra.mxu0 %v1907
        %1973 = vmatprep.subr.mxu0 0.0
        %1974 = vmatpush2.msra.mxu0 %v1906
        %1975 = vmatprep.subr.mxu0 0.0
        %1976 = vmatpush2.msra.mxu0 %v1905
        %1977 = vmatprep.subr.mxu0 0.0
        %1978 = vmatpush2.msra.mxu0 %v1904
        %1979 = vmatprep.subr.mxu0 0.0
        %1980 = vmatpush2.msra.mxu0 %v1903
        %1981 = vmatprep.subr.mxu0 0.0
        %1982 = vmatpush2.msra.mxu0 %v1902
        %1983 = vmatprep.subr.mxu0 0.0
        %1984 = vmatpush2.msra.mxu0 %v1901
        %1985 = vmatprep.subr.mxu0 0.0
        %1986 = vmatpush2.msra.mxu0 %v1900
        %1987 = vmatprep.subr.mxu0 0.0
        %1988 = vmatpush2.msra.mxu0 %v1899
        %1989 = vmatprep.subr.mxu0 0.0
        %1990 = vmatpush2.msra.mxu0 %v1898
        %1991 = vmatprep.subr.mxu0 0.0
        %1992 = vmatpush2.msra.mxu0 %v1897
        %1993 = vmatprep.mubr.f32.mxu0 %v1785
        %1994 = vmatmul.mubr.f32.gmra.mxu0 %v1784
        %v1995 = vpop.f32.mrf.mxu0
        %v1996 = vadd.f32 0.0, %v1995
        %v1997 = vpop.f32.mrf.mxu0
        %1998 = vmatprep.mubr.f32.mxu0 %v1788
        %1999 = vmatmul.mubr.f32.gmra.mxu0 %v1787
        %v2000 = vpop.f32.mrf.mxu0
        %v2001 = vadd.f32 0.0, %v2000
        %v2002 = vpop.f32.mrf.mxu0
        %2003 = vmatprep.mubr.f32.mxu0 %v1791
        %2004 = vmatmul.mubr.f32.gmra.mxu0 %v1790
        %v2005 = vpop.f32.mrf.mxu0
        %v2006 = vadd.f32 0.0, %v2005
        %v2007 = vpop.f32.mrf.mxu0
        %2008 = vmatprep.mubr.f32.mxu0 %v1794
        %2009 = vmatmul.mubr.f32.gmra.mxu0 %v1793
        %v2010 = vpop.f32.mrf.mxu0
        %v2011 = vadd.f32 0.0, %v2010
        %v2012 = vpop.f32.mrf.mxu0
        %2013 = vmatprep.mubr.f32.mxu0 %v1797
        %2014 = vmatmul.mubr.f32.gmra.mxu0 %v1796
        %v2015 = vpop.f32.mrf.mxu0
        %v2016 = vadd.f32 0.0, %v2015
        %v2017 = vpop.f32.mrf.mxu0
        %2018 = vmatprep.mubr.f32.mxu0 %v1800
        %2019 = vmatmul.mubr.f32.gmra.mxu0 %v1799
        %v2020 = vpop.f32.mrf.mxu0
        %v2021 = vadd.f32 0.0, %v2020
        %v2022 = vpop.f32.mrf.mxu0
        %2023 = vmatprep.mubr.f32.mxu0 %v1803
        %2024 = vmatmul.mubr.f32.gmra.mxu0 %v1802
        %v2025 = vpop.f32.mrf.mxu0
        %v2026 = vadd.f32 0.0, %v2025
        %v2027 = vpop.f32.mrf.mxu0
        %2028 = vmatprep.mubr.f32.mxu0 %v1806
        %2029 = vmatmul.mubr.f32.gmra.mxu0 %v1805
        %v2030 = vpop.f32.mrf.mxu0
        %v2031 = vadd.f32 0.0, %v2030
        %v2032 = vpop.f32.mrf.mxu0
        %2033 = vmatprep.mubr.f32.mxu0 %v1809
        %2034 = vmatmul.mubr.f32.gmra.mxu0 %v1808
        %v2035 = vpop.f32.mrf.mxu0
        %v2036 = vadd.f32 0.0, %v2035
        %v2037 = vpop.f32.mrf.mxu0
        %2038 = vmatprep.mubr.f32.mxu0 %v1812
        %2039 = vmatmul.mubr.f32.gmra.mxu0 %v1811
        %v2040 = vpop.f32.mrf.mxu0
        %v2041 = vadd.f32 0.0, %v2040
        %v2042 = vpop.f32.mrf.mxu0
        %2043 = vmatprep.mubr.f32.mxu0 %v1815
        %2044 = vmatmul.mubr.f32.gmra.mxu0 %v1814
        %v2045 = vpop.f32.mrf.mxu0
        %v2046 = vadd.f32 0.0, %v2045
        %v2047 = vpop.f32.mrf.mxu0
        %2048 = vmatprep.mubr.f32.mxu0 %v1818
        %2049 = vmatmul.mubr.f32.gmra.mxu0 %v1817
        %v2050 = vpop.f32.mrf.mxu0
        %v2051 = vadd.f32 0.0, %v2050
        %v2052 = vpop.f32.mrf.mxu0
        %2053 = vmatprep.mubr.f32.mxu0 %v1821
        %2054 = vmatmul.mubr.f32.gmra.mxu0 %v1820
        %v2055 = vpop.f32.mrf.mxu0
        %v2056 = vadd.f32 0.0, %v2055
        %v2057 = vpop.f32.mrf.mxu0
        %2058 = vmatprep.mubr.f32.mxu0 %v1824
        %2059 = vmatmul.mubr.f32.gmra.mxu0 %v1823
        %v2060 = vpop.f32.mrf.mxu0
        %v2061 = vadd.f32 0.0, %v2060
        %v2062 = vpop.f32.mrf.mxu0
        %2063 = vmatprep.mubr.f32.mxu0 %v1827
        %2064 = vmatmul.mubr.f32.gmra.mxu0 %v1826
        %v2065 = vpop.f32.mrf.mxu0
        %v2066 = vadd.f32 0.0, %v2065
        %v2067 = vpop.f32.mrf.mxu0
        %2068 = vmatprep.mubr.f32.mxu0 %v1830
        %2069 = vmatmul.mubr.f32.gmra.mxu0 %v1829
        %v2070 = vpop.f32.mrf.mxu0
        %v2071 = vadd.f32 0.0, %v2070
        %v2072 = vpop.f32.mrf.mxu0
        %2073 = vmatprep.mubr.f32.mxu0 %v1833
        %2074 = vmatmul.mubr.f32.gmra.mxu0 %v1832
        %v2075 = vpop.f32.mrf.mxu0
        %v2076 = vadd.f32 0.0, %v2075
        %v2077 = vpop.f32.mrf.mxu0
        %2078 = vmatprep.mubr.f32.mxu0 %v1836
        %2079 = vmatmul.mubr.f32.gmra.mxu0 %v1835
        %v2080 = vpop.f32.mrf.mxu0
        %v2081 = vadd.f32 0.0, %v2080
        %v2082 = vpop.f32.mrf.mxu0
        %2083 = vmatprep.mubr.f32.mxu0 %v1839
        %2084 = vmatmul.mubr.f32.gmra.mxu0 %v1838
        %v2085 = vpop.f32.mrf.mxu0
        %v2086 = vadd.f32 0.0, %v2085
        %v2087 = vpop.f32.mrf.mxu0
        %2088 = vmatprep.mubr.f32.mxu0 %v1842
        %2089 = vmatmul.mubr.f32.gmra.mxu0 %v1841
        %v2090 = vpop.f32.mrf.mxu0
        %v2091 = vadd.f32 0.0, %v2090
        %v2092 = vpop.f32.mrf.mxu0
        %2093 = vmatprep.mubr.f32.mxu0 %v1845
        %2094 = vmatmul.mubr.f32.gmra.mxu0 %v1844
        %v2095 = vpop.f32.mrf.mxu0
        %v2096 = vadd.f32 0.0, %v2095
        %v2097 = vpop.f32.mrf.mxu0
        %2098 = vmatprep.mubr.f32.mxu0 %v1848
        %2099 = vmatmul.mubr.f32.gmra.mxu0 %v1847
        %v2100 = vpop.f32.mrf.mxu0
        %v2101 = vadd.f32 0.0, %v2100
        %v2102 = vpop.f32.mrf.mxu0
        %2103 = vmatprep.mubr.f32.mxu0 %v1851
        %2104 = vmatmul.mubr.f32.gmra.mxu0 %v1850
        %v2105 = vpop.f32.mrf.mxu0
        %v2106 = vadd.f32 0.0, %v2105
        %v2107 = vpop.f32.mrf.mxu0
        %2108 = vmatprep.mubr.f32.mxu0 %v1854
        %2109 = vmatmul.mubr.f32.gmra.mxu0 %v1853
        %v2110 = vpop.f32.mrf.mxu0
        %v2111 = vadd.f32 0.0, %v2110
        %v2112 = vpop.f32.mrf.mxu0
        %2113 = vmatprep.mubr.f32.mxu0 %v1857
        %2114 = vmatmul.mubr.f32.gmra.mxu0 %v1856
        %v2115 = vpop.f32.mrf.mxu0
        %v2116 = vadd.f32 0.0, %v2115
        %v2117 = vpop.f32.mrf.mxu0
        %2118 = vmatprep.mubr.f32.mxu0 %v1860
        %2119 = vmatmul.mubr.f32.gmra.mxu0 %v1859
        %v2120 = vpop.f32.mrf.mxu0
        %v2121 = vadd.f32 0.0, %v2120
        %v2122 = vpop.f32.mrf.mxu0
        %2123 = vmatprep.mubr.f32.mxu0 %v1863
        %2124 = vmatmul.mubr.f32.gmra.mxu0 %v1862
        %v2125 = vpop.f32.mrf.mxu0
        %v2126 = vadd.f32 0.0, %v2125
        %v2127 = vpop.f32.mrf.mxu0
        %2128 = vmatprep.mubr.f32.mxu0 %v1866
        %2129 = vmatmul.mubr.f32.gmra.mxu0 %v1865
        %v2130 = vpop.f32.mrf.mxu0
        %v2131 = vadd.f32 0.0, %v2130
        %v2132 = vpop.f32.mrf.mxu0
        %2133 = vmatprep.mubr.f32.mxu0 %v1869
        %2134 = vmatmul.mubr.f32.gmra.mxu0 %v1868
        %v2135 = vpop.f32.mrf.mxu0
        %v2136 = vadd.f32 0.0, %v2135
        %v2137 = vpop.f32.mrf.mxu0
        %2138 = vmatprep.mubr.f32.mxu0 %v1872
        %2139 = vmatmul.mubr.f32.gmra.mxu0 %v1871
        %v2140 = vpop.f32.mrf.mxu0
        %v2141 = vadd.f32 0.0, %v2140
        %v2142 = vpop.f32.mrf.mxu0
        %2143 = vmatprep.mubr.f32.mxu0 %v1875
        %2144 = vmatmul.mubr.f32.gmra.mxu0 %v1874
        %v2145 = vpop.f32.mrf.mxu0
        %v2146 = vadd.f32 0.0, %v2145
        %v2147 = vpop.f32.mrf.mxu0
        %2148 = vmatprep.mubr.f32.mxu0 %v1878
        %2149 = vmatmul.mubr.f32.gmra.mxu0 %v1877
        %v2150 = vpop.f32.mrf.mxu0
        %v2151 = vadd.f32 0.0, %v2150
        %v2152 = vpop.f32.mrf.mxu0
        %2153 = vdwg.mxu0
        %2154 = vmatprep.subr.mxu0 0.0
        %2155 = vmatpush1.msra.mxu0 %v1928
        %2156 = vmatprep.subr.mxu0 0.0
        %2157 = vmatpush1.msra.mxu0 %v1927
        %2158 = vmatprep.subr.mxu0 0.0
        %2159 = vmatpush1.msra.mxu0 %v1926
        %2160 = vmatprep.subr.mxu0 0.0
        %2161 = vmatpush1.msra.mxu0 %v1925
        %2162 = vmatprep.subr.mxu0 0.0
        %2163 = vmatpush1.msra.mxu0 %v1924
        %2164 = vmatprep.subr.mxu0 0.0
        %2165 = vmatpush1.msra.mxu0 %v1923
        %2166 = vmatprep.subr.mxu0 0.0
        %2167 = vmatpush1.msra.mxu0 %v1922
        %2168 = vmatprep.subr.mxu0 0.0
        %2169 = vmatpush1.msra.mxu0 %v1921
        %2170 = vmatprep.subr.mxu0 0.0
        %2171 = vmatpush1.msra.mxu0 %v1920
        %2172 = vmatprep.subr.mxu0 0.0
        %2173 = vmatpush1.msra.mxu0 %v1919
        %2174 = vmatprep.subr.mxu0 0.0
        %2175 = vmatpush1.msra.mxu0 %v1918
        %2176 = vmatprep.subr.mxu0 0.0
        %2177 = vmatpush1.msra.mxu0 %v1917
        %2178 = vmatprep.subr.mxu0 0.0
        %2179 = vmatpush1.msra.mxu0 %v1916
        %2180 = vmatprep.subr.mxu0 0.0
        %2181 = vmatpush1.msra.mxu0 %v1915
        %2182 = vmatprep.subr.mxu0 0.0
        %2183 = vmatpush1.msra.mxu0 %v1914
        %2184 = vmatprep.subr.mxu0 0.0
        %2185 = vmatpush1.msra.mxu0 %v1913
        %2186 = vmatprep.subr.mxu0 0.0
        %2187 = vmatpush2.msra.mxu0 0.0
        %2188 = vmatprep.subr.mxu0 0.0
        %2189 = vmatpush2.msra.mxu0 0.0
        %2190 = vmatprep.subr.mxu0 0.0
        %2191 = vmatpush2.msra.mxu0 0.0
        %2192 = vmatprep.subr.mxu0 0.0
        %2193 = vmatpush2.msra.mxu0 0.0
        %2194 = vmatprep.subr.mxu0 0.0
        %2195 = vmatpush2.msra.mxu0 0.0
        %2196 = vmatprep.subr.mxu0 0.0
        %2197 = vmatpush2.msra.mxu0 0.0
        %2198 = vmatprep.subr.mxu0 0.0
        %2199 = vmatpush2.msra.mxu0 0.0
        %2200 = vmatprep.subr.mxu0 0.0
        %2201 = vmatpush2.msra.mxu0 0.0
        %2202 = vmatprep.subr.mxu0 0.0
        %2203 = vmatpush2.msra.mxu0 0.0
        %2204 = vmatprep.subr.mxu0 0.0
        %2205 = vmatpush2.msra.mxu0 0.0
        %2206 = vmatprep.subr.mxu0 0.0
        %2207 = vmatpush2.msra.mxu0 0.0
        %2208 = vmatprep.subr.mxu0 0.0
        %2209 = vmatpush2.msra.mxu0 0.0
        %2210 = vmatprep.subr.mxu0 0.0
        %2211 = vmatpush2.msra.mxu0 0.0
        %2212 = vmatprep.subr.mxu0 0.0
        %2213 = vmatpush2.msra.mxu0 0.0
        %2214 = vmatprep.subr.mxu0 0.0
        %2215 = vmatpush2.msra.mxu0 0.0
        %2216 = vmatprep.subr.mxu0 0.0
        %2217 = vmatpush2.msra.mxu0 0.0
        %2218 = vmatprep.mubr.f32.mxu0 0.0
        %2219 = vmatmul.mubr.f32.gmra.mxu0 %v1786
        %v2220 = vpop.f32.mrf.mxu0
        %v2221 = vadd.f32 %v1996, %v2220
        %v2222 = vpop.f32.mrf.mxu0
        %2223 = vmatprep.mubr.f32.mxu0 0.0
        %2224 = vmatmul.mubr.f32.gmra.mxu0 %v1789
        %v2225 = vpop.f32.mrf.mxu0
        %v2226 = vadd.f32 %v2001, %v2225
        %v2227 = vpop.f32.mrf.mxu0
        %2228 = vmatprep.mubr.f32.mxu0 0.0
        %2229 = vmatmul.mubr.f32.gmra.mxu0 %v1792
        %v2230 = vpop.f32.mrf.mxu0
        %v2231 = vadd.f32 %v2006, %v2230
        %v2232 = vpop.f32.mrf.mxu0
        %2233 = vmatprep.mubr.f32.mxu0 0.0
        %2234 = vmatmul.mubr.f32.gmra.mxu0 %v1795
        %v2235 = vpop.f32.mrf.mxu0
        %v2236 = vadd.f32 %v2011, %v2235
        %v2237 = vpop.f32.mrf.mxu0
        %2238 = vmatprep.mubr.f32.mxu0 0.0
        %2239 = vmatmul.mubr.f32.gmra.mxu0 %v1798
        %v2240 = vpop.f32.mrf.mxu0
        %v2241 = vadd.f32 %v2016, %v2240
        %v2242 = vpop.f32.mrf.mxu0
        %2243 = vmatprep.mubr.f32.mxu0 0.0
        %2244 = vmatmul.mubr.f32.gmra.mxu0 %v1801
        %v2245 = vpop.f32.mrf.mxu0
        %v2246 = vadd.f32 %v2021, %v2245
        %v2247 = vpop.f32.mrf.mxu0
        %2248 = vmatprep.mubr.f32.mxu0 0.0
        %2249 = vmatmul.mubr.f32.gmra.mxu0 %v1804
        %v2250 = vpop.f32.mrf.mxu0
        %v2251 = vadd.f32 %v2026, %v2250
        %v2252 = vpop.f32.mrf.mxu0
        %2253 = vmatprep.mubr.f32.mxu0 0.0
        %2254 = vmatmul.mubr.f32.gmra.mxu0 %v1807
        %v2255 = vpop.f32.mrf.mxu0
        %v2256 = vadd.f32 %v2031, %v2255
        %v2257 = vpop.f32.mrf.mxu0
        %2258 = vmatprep.mubr.f32.mxu0 0.0
        %2259 = vmatmul.mubr.f32.gmra.mxu0 %v1810
        %v2260 = vpop.f32.mrf.mxu0
        %v2261 = vadd.f32 %v2036, %v2260
        %v2262 = vpop.f32.mrf.mxu0
        %2263 = vmatprep.mubr.f32.mxu0 0.0
        %2264 = vmatmul.mubr.f32.gmra.mxu0 %v1813
        %v2265 = vpop.f32.mrf.mxu0
        %v2266 = vadd.f32 %v2041, %v2265
        %v2267 = vpop.f32.mrf.mxu0
        %2268 = vmatprep.mubr.f32.mxu0 0.0
        %2269 = vmatmul.mubr.f32.gmra.mxu0 %v1816
        %v2270 = vpop.f32.mrf.mxu0
        %v2271 = vadd.f32 %v2046, %v2270
        %v2272 = vpop.f32.mrf.mxu0
        %2273 = vmatprep.mubr.f32.mxu0 0.0
        %2274 = vmatmul.mubr.f32.gmra.mxu0 %v1819
        %v2275 = vpop.f32.mrf.mxu0
        %v2276 = vadd.f32 %v2051, %v2275
        %v2277 = vpop.f32.mrf.mxu0
        %2278 = vmatprep.mubr.f32.mxu0 0.0
        %2279 = vmatmul.mubr.f32.gmra.mxu0 %v1822
        %v2280 = vpop.f32.mrf.mxu0
        %v2281 = vadd.f32 %v2056, %v2280
        %v2282 = vpop.f32.mrf.mxu0
        %2283 = vmatprep.mubr.f32.mxu0 0.0
        %2284 = vmatmul.mubr.f32.gmra.mxu0 %v1825
        %v2285 = vpop.f32.mrf.mxu0
        %v2286 = vadd.f32 %v2061, %v2285
        %v2287 = vpop.f32.mrf.mxu0
        %2288 = vmatprep.mubr.f32.mxu0 0.0
        %2289 = vmatmul.mubr.f32.gmra.mxu0 %v1828
        %v2290 = vpop.f32.mrf.mxu0
        %v2291 = vadd.f32 %v2066, %v2290
        %v2292 = vpop.f32.mrf.mxu0
        %2293 = vmatprep.mubr.f32.mxu0 0.0
        %2294 = vmatmul.mubr.f32.gmra.mxu0 %v1831
        %v2295 = vpop.f32.mrf.mxu0
        %v2296 = vadd.f32 %v2071, %v2295
        %v2297 = vpop.f32.mrf.mxu0
        %2298 = vmatprep.mubr.f32.mxu0 0.0
        %2299 = vmatmul.mubr.f32.gmra.mxu0 %v1834
        %v2300 = vpop.f32.mrf.mxu0
        %v2301 = vadd.f32 %v2076, %v2300
        %v2302 = vpop.f32.mrf.mxu0
        %2303 = vmatprep.mubr.f32.mxu0 0.0
        %2304 = vmatmul.mubr.f32.gmra.mxu0 %v1837
        %v2305 = vpop.f32.mrf.mxu0
        %v2306 = vadd.f32 %v2081, %v2305
        %v2307 = vpop.f32.mrf.mxu0
        %2308 = vmatprep.mubr.f32.mxu0 0.0
        %2309 = vmatmul.mubr.f32.gmra.mxu0 %v1840
        %v2310 = vpop.f32.mrf.mxu0
        %v2311 = vadd.f32 %v2086, %v2310
        %v2312 = vpop.f32.mrf.mxu0
        %2313 = vmatprep.mubr.f32.mxu0 0.0
        %2314 = vmatmul.mubr.f32.gmra.mxu0 %v1843
        %v2315 = vpop.f32.mrf.mxu0
        %v2316 = vadd.f32 %v2091, %v2315
        %v2317 = vpop.f32.mrf.mxu0
        %2318 = vmatprep.mubr.f32.mxu0 0.0
        %2319 = vmatmul.mubr.f32.gmra.mxu0 %v1846
        %v2320 = vpop.f32.mrf.mxu0
        %v2321 = vadd.f32 %v2096, %v2320
        %v2322 = vpop.f32.mrf.mxu0
        %2323 = vmatprep.mubr.f32.mxu0 0.0
        %2324 = vmatmul.mubr.f32.gmra.mxu0 %v1849
        %v2325 = vpop.f32.mrf.mxu0
        %v2326 = vadd.f32 %v2101, %v2325
        %v2327 = vpop.f32.mrf.mxu0
        %2328 = vmatprep.mubr.f32.mxu0 0.0
        %2329 = vmatmul.mubr.f32.gmra.mxu0 %v1852
        %v2330 = vpop.f32.mrf.mxu0
        %v2331 = vadd.f32 %v2106, %v2330
        %v2332 = vpop.f32.mrf.mxu0
        %2333 = vmatprep.mubr.f32.mxu0 0.0
        %2334 = vmatmul.mubr.f32.gmra.mxu0 %v1855
        %v2335 = vpop.f32.mrf.mxu0
        %v2336 = vadd.f32 %v2111, %v2335
        %v2337 = vpop.f32.mrf.mxu0
        %2338 = vmatprep.mubr.f32.mxu0 0.0
        %2339 = vmatmul.mubr.f32.gmra.mxu0 %v1858
        %v2340 = vpop.f32.mrf.mxu0
        %v2341 = vadd.f32 %v2116, %v2340
        %v2342 = vpop.f32.mrf.mxu0
        %2343 = vmatprep.mubr.f32.mxu0 0.0
        %2344 = vmatmul.mubr.f32.gmra.mxu0 %v1861
        %v2345 = vpop.f32.mrf.mxu0
        %v2346 = vadd.f32 %v2121, %v2345
        %v2347 = vpop.f32.mrf.mxu0
        %2348 = vmatprep.mubr.f32.mxu0 0.0
        %2349 = vmatmul.mubr.f32.gmra.mxu0 %v1864
        %v2350 = vpop.f32.mrf.mxu0
        %v2351 = vadd.f32 %v2126, %v2350
        %v2352 = vpop.f32.mrf.mxu0
        %2353 = vmatprep.mubr.f32.mxu0 0.0
        %2354 = vmatmul.mubr.f32.gmra.mxu0 %v1867
        %v2355 = vpop.f32.mrf.mxu0
        %v2356 = vadd.f32 %v2131, %v2355
        %v2357 = vpop.f32.mrf.mxu0
        %2358 = vmatprep.mubr.f32.mxu0 0.0
        %2359 = vmatmul.mubr.f32.gmra.mxu0 %v1870
        %v2360 = vpop.f32.mrf.mxu0
        %v2361 = vadd.f32 %v2136, %v2360
        %v2362 = vpop.f32.mrf.mxu0
        %2363 = vmatprep.mubr.f32.mxu0 0.0
        %2364 = vmatmul.mubr.f32.gmra.mxu0 %v1873
        %v2365 = vpop.f32.mrf.mxu0
        %v2366 = vadd.f32 %v2141, %v2365
        %v2367 = vpop.f32.mrf.mxu0
        %2368 = vmatprep.mubr.f32.mxu0 0.0
        %2369 = vmatmul.mubr.f32.gmra.mxu0 %v1876
        %v2370 = vpop.f32.mrf.mxu0
        %v2371 = vadd.f32 %v2146, %v2370
        %v2372 = vpop.f32.mrf.mxu0
        %2373 = vmatprep.mubr.f32.mxu0 0.0
        %2374 = vmatmul.mubr.f32.gmra.mxu0 %v1879
        %v2375 = vpop.f32.mrf.mxu0
        %v2376 = vadd.f32 %v2151, %v2375
        %v2377 = vpop.f32.mrf.mxu0
        %2378 = vdwg.mxu0
        %v2379 = vadd.f32 %v1625, %v2221
        %v2380 = vadd.f32 %v1630, %v2226
        %v2381 = vadd.f32 %v1635, %v2231
        %v2382 = vadd.f32 %v1640, %v2236
        %v2383 = vadd.f32 %v1645, %v2241
        %v2384 = vadd.f32 %v1650, %v2246
        %v2385 = vadd.f32 %v1655, %v2251
        %v2386 = vadd.f32 %v1660, %v2256
        %v2387 = vadd.f32 %v1665, %v2261
        %v2388 = vadd.f32 %v1670, %v2266
        %v2389 = vadd.f32 %v1675, %v2271
        %v2390 = vadd.f32 %v1680, %v2276
        %v2391 = vadd.f32 %v1685, %v2281
        %v2392 = vadd.f32 %v1690, %v2286
        %v2393 = vadd.f32 %v1695, %v2291
        %v2394 = vadd.f32 %v1700, %v2296
        %v2395 = vadd.f32 %v1705, %v2301
        %v2396 = vadd.f32 %v1710, %v2306
        %v2397 = vadd.f32 %v1715, %v2311
        %v2398 = vadd.f32 %v1720, %v2316
        %v2399 = vadd.f32 %v1725, %v2321
        %v2400 = vadd.f32 %v1730, %v2326
        %v2401 = vadd.f32 %v1735, %v2331
        %v2402 = vadd.f32 %v1740, %v2336
        %v2403 = vadd.f32 %v1745, %v2341
        %v2404 = vadd.f32 %v1750, %v2346
        %v2405 = vadd.f32 %v1755, %v2351
        %v2406 = vadd.f32 %v1760, %v2356
        %v2407 = vadd.f32 %v1765, %v2361
        %v2408 = vadd.f32 %v1770, %v2366
        %v2409 = vadd.f32 %v1775, %v2371
        %v2410 = vadd.f32 %v1780, %v2376
        %2411 = vst [vmem:[%s261] sm:$0xff] %v2379
        %2412 = vst [vmem:[%s261 + $0x8] sm:$0xff] %v2380
        %2413 = vst [vmem:[%s261 + $0x10] sm:$0xff] %v2381
        %2414 = vst [vmem:[%s261 + $0x18] sm:$0xff] %v2382
        %2415 = vst [vmem:[%s261 + $0x20] sm:$0xff] %v2383
        %2416 = vst [vmem:[%s261 + $0x28] sm:$0xff] %v2384
        %2417 = vst [vmem:[%s261 + $0x30] sm:$0xff] %v2385
        %2418 = vst [vmem:[%s261 + $0x38] sm:$0xff] %v2386
        %2419 = vst [vmem:[%s261 + $0x40] sm:$0xff] %v2387
        %2420 = vst [vmem:[%s261 + $0x48] sm:$0xff] %v2388
        %2421 = vst [vmem:[%s261 + $0x50] sm:$0xff] %v2389
        %2422 = vst [vmem:[%s261 + $0x58] sm:$0xff] %v2390
        %2423 = vst [vmem:[%s261 + $0x60] sm:$0xff] %v2391
        %2424 = vst [vmem:[%s261 + $0x68] sm:$0xff] %v2392
        %2425 = vst [vmem:[%s261 + $0x70] sm:$0xff] %v2393
        %2426 = vst [vmem:[%s261 + $0x78] sm:$0xff] %v2394
        %2427 = vst [vmem:[%s261 + $0x80] sm:$0xff] %v2395
        %2428 = vst [vmem:[%s261 + $0x88] sm:$0xff] %v2396
        %2429 = vst [vmem:[%s261 + $0x90] sm:$0xff] %v2397
        %2430 = vst [vmem:[%s261 + $0x98] sm:$0xff] %v2398
        %2431 = vst [vmem:[%s261 + $0xa0] sm:$0xff] %v2399
        %2432 = vst [vmem:[%s261 + $0xa8] sm:$0xff] %v2400
        %2433 = vst [vmem:[%s261 + $0xb0] sm:$0xff] %v2401
        %2434 = vst [vmem:[%s261 + $0xb8] sm:$0xff] %v2402
        %2435 = vst [vmem:[%s261 + $0xc0] sm:$0xff] %v2403
        %2436 = vst [vmem:[%s261 + $0xc8] sm:$0xff] %v2404
        %2437 = vst [vmem:[%s261 + $0xd0] sm:$0xff] %v2405
        %2438 = vst [vmem:[%s261 + $0xd8] sm:$0xff] %v2406
        %2439 = vst [vmem:[%s261 + $0xe0] sm:$0xff] %v2407
        %2440 = vst [vmem:[%s261 + $0xe8] sm:$0xff] %v2408
        %2441 = vst [vmem:[%s261 + $0xf0] sm:$0xff] %v2409
        %2442 = vst [vmem:[%s261 + $0xf8] sm:$0xff] %v2410
        %v2443 = vadd.f32 %v2379, %v2380
        %v2444 = vadd.f32 %v2443, %v2381
        %v2445 = vadd.f32 %v2444, %v2382
        %v2446 = vadd.f32 %v2445, %v2383
        %v2447 = vadd.f32 %v2446, %v2384
        %v2448 = vadd.f32 %v2447, %v2385
        %v2449 = vadd.f32 %v2448, %v2386
        %v2450 = vadd.f32 %v2449, %v2387
        %v2451 = vadd.f32 %v2450, %v2388
        %v2452 = vadd.f32 %v2451, %v2389
        %v2453 = vadd.f32 %v2452, %v2390
        %v2454 = vadd.f32 %v2453, %v2391
        %v2455 = vadd.f32 %v2454, %v2392
        %v2456 = vadd.f32 %v2455, %v2393
        %v2457 = vadd.f32 %v2456, %v2394
        %v2458 = vadd.f32 %v2457, %v2395
        %v2459 = vadd.f32 %v2458, %v2396
        %v2460 = vadd.f32 %v2459, %v2397
        %v2461 = vadd.f32 %v2460, %v2398
        %v2462 = vadd.f32 %v2461, %v2399
        %v2463 = vadd.f32 %v2462, %v2400
        %v2464 = vadd.f32 %v2463, %v2401
        %v2465 = vadd.f32 %v2464, %v2402
        %v2466 = vadd.f32 %v2465, %v2403
        %v2467 = vadd.f32 %v2466, %v2404
        %v2468 = vadd.f32 %v2467, %v2405
        %v2469 = vadd.f32 %v2468, %v2406
        %v2470 = vadd.f32 %v2469, %v2407
        %v2471 = vadd.f32 %v2470, %v2408
        %v2472 = vadd.f32 %v2471, %v2409
        %v2473 = vadd.f32 %v2472, %v2410
        %v2474 = vrot.slane %v2473, 4
        %v2475 = vadd.f32 %v2473, %v2474
        %v2476 = vrot.slane %v2475, 2
        %v2477 = vadd.f32 %v2475, %v2476
        %v2478 = vrot.slane %v2477, 1
        %v2479 = vadd.f32 %v2477, %v2478
        %v2480 = vmul.f32 %v2379, %v2379
        %v2481 = vmul.f32 %v2380, %v2380
        %v2482 = vmul.f32 %v2381, %v2381
        %v2483 = vmul.f32 %v2382, %v2382
        %v2484 = vmul.f32 %v2383, %v2383
        %v2485 = vmul.f32 %v2384, %v2384
        %v2486 = vmul.f32 %v2385, %v2385
        %v2487 = vmul.f32 %v2386, %v2386
        %v2488 = vmul.f32 %v2387, %v2387
        %v2489 = vmul.f32 %v2388, %v2388
        %v2490 = vmul.f32 %v2389, %v2389
        %v2491 = vmul.f32 %v2390, %v2390
        %v2492 = vmul.f32 %v2391, %v2391
        %v2493 = vmul.f32 %v2392, %v2392
        %v2494 = vmul.f32 %v2393, %v2393
        %v2495 = vmul.f32 %v2394, %v2394
        %v2496 = vmul.f32 %v2395, %v2395
        %v2497 = vmul.f32 %v2396, %v2396
        %v2498 = vmul.f32 %v2397, %v2397
        %v2499 = vmul.f32 %v2398, %v2398
        %v2500 = vmul.f32 %v2399, %v2399
        %v2501 = vmul.f32 %v2400, %v2400
        %v2502 = vmul.f32 %v2401, %v2401
        %v2503 = vmul.f32 %v2402, %v2402
        %v2504 = vmul.f32 %v2403, %v2403
        %v2505 = vmul.f32 %v2404, %v2404
        %v2506 = vmul.f32 %v2405, %v2405
        %v2507 = vmul.f32 %v2406, %v2406
        %v2508 = vmul.f32 %v2407, %v2407
        %v2509 = vmul.f32 %v2408, %v2408
        %v2510 = vmul.f32 %v2409, %v2409
        %v2511 = vmul.f32 %v2410, %v2410
        %v2512 = vadd.f32 %v2480, %v2481
        %v2513 = vadd.f32 %v2512, %v2482
        %v2514 = vadd.f32 %v2513, %v2483
        %v2515 = vadd.f32 %v2514, %v2484
        %v2516 = vadd.f32 %v2515, %v2485
        %v2517 = vadd.f32 %v2516, %v2486
        %v2518 = vadd.f32 %v2517, %v2487
        %v2519 = vadd.f32 %v2518, %v2488
        %v2520 = vadd.f32 %v2519, %v2489
        %v2521 = vadd.f32 %v2520, %v2490
        %v2522 = vadd.f32 %v2521, %v2491
        %v2523 = vadd.f32 %v2522, %v2492
        %v2524 = vadd.f32 %v2523, %v2493
        %v2525 = vadd.f32 %v2524, %v2494
        %v2526 = vadd.f32 %v2525, %v2495
        %v2527 = vadd.f32 %v2526, %v2496
        %v2528 = vadd.f32 %v2527, %v2497
        %v2529 = vadd.f32 %v2528, %v2498
        %v2530 = vadd.f32 %v2529, %v2499
        %v2531 = vadd.f32 %v2530, %v2500
        %v2532 = vadd.f32 %v2531, %v2501
        %v2533 = vadd.f32 %v2532, %v2502
        %v2534 = vadd.f32 %v2533, %v2503
        %v2535 = vadd.f32 %v2534, %v2504
        %v2536 = vadd.f32 %v2535, %v2505
        %v2537 = vadd.f32 %v2536, %v2506
        %v2538 = vadd.f32 %v2537, %v2507
        %v2539 = vadd.f32 %v2538, %v2508
        %v2540 = vadd.f32 %v2539, %v2509
        %v2541 = vadd.f32 %v2540, %v2510
        %v2542 = vadd.f32 %v2541, %v2511
        %v2543 = vrot.slane %v2542, 4
        %v2544 = vadd.f32 %v2542, %v2543
        %v2545 = vrot.slane %v2544, 2
        %v2546 = vadd.f32 %v2544, %v2545
        %v2547 = vrot.slane %v2546, 1
        %v2548 = vadd.f32 %v2546, %v2547
        %vm2549 = vcmask 1040384
        %v2550 = vsel %vm2549, %v2479, %v2548
        %2551 = vst [vmem:[%s268] sm:$0x3] %v2550
        %s2552 = sand.u32 %s124, 1
        %s2553 = scalar_lea.sflag [#allocation6], %s2552
        %s2554 = sand.u32 %s124, 1
        %s2555 = smul.addr %s2554, 256
        %s2556 = scalar_lea.vmem [#allocation9], %s2555
        %s2557 = sand.u32 %s150, 1
        %s2558 = scalar_lea.sflag [#allocation11], %s2557
        %s2559 = sand.u32 %s150, 1
        %s2560 = smul.addr %s2559, 2
        %s2561 = scalar_lea.vmem [#allocation10], %s2560
        // Predicated region
        $region45: #{tpu_custom_call.1} parent=35 // pred_check
          %p2562 = pneg %p134
        $region46: #{tpu_custom_call.1} parent=35 // pred_check_branch
          %2564 = sbr.rel (%p2562) target = $region48
        $region47: #{tpu_custom_call.1} parent=35 // pred_region
          %s2566 = ssub.s32 4096, 4096
          %2567 = vsyncadd %s2553, %s2566
          %s2568 = smul.addr %s27, 32
          %s2569 = smul.addr %s2568, 128
          %s2570 = scalar_lea.hbm %s4, %s2569
          %s2571 = sshll.u32 %s2556, 4
          %s2572 = int_to_ptr.vmem [resolvable:$true] %s2571
          %2577 = dma.vmem_to_hbm [thread:$0]  %s2572, 4096, %s2570, %s2553, 128, 128, 8
        $region48: #{tpu_custom_call.1} parent=35 // pred_fallthru
          _
        // Predicated region
        $region49: #{tpu_custom_call.1} parent=35 // pred_check
          %p2578 = pneg %p160
        $region50: #{tpu_custom_call.1} parent=35 // pred_check_branch
          %2580 = sbr.rel (%p2578) target = $region52
        $region51: #{tpu_custom_call.1} parent=35 // pred_region
          %s2582 = ssub.s32 32, 32
          %2583 = vsyncadd %s2558, %s2582
          %s2584 = smul.addr %s27, 32
          %s2585 = scalar_lea.hbm %s5, %s2584
          %s2587 = sshll.u32 %s2561, 4
          %s2588 = int_to_ptr.vmem [resolvable:$true] %s2587
          %2590 = dma.vmem_to_hbm [thread:$0]  %s2588, 32, %s2585, %s2558
        $region52: #{tpu_custom_call.1} parent=35 // pred_fallthru
          _
      $region36: #{tpu_custom_call.1} parent=5 // pred_fallthru
        _
      %p2591 = scmp.le.s32.totalorder 2, %s22
      // Predicated region
      $region53: #{tpu_custom_call.1} parent=5 // pred_check
        %p2592 = pneg %p2591
      $region54: #{tpu_custom_call.1} parent=5 // pred_check_branch
        %2594 = sbr.rel (%p2592) target = $region56
      $region55: #{tpu_custom_call.1} parent=5 // pred_region
        %s2595 = ssub.s32 %s22, 2
        // Predicated region
        $region57: #{tpu_custom_call.1} parent=55 // pred_check
          %p2596 = pneg %p140
        $region58: #{tpu_custom_call.1} parent=55 // pred_check_branch
          %2598 = sbr.rel (%p2596) target = $region60
        $region59: #{tpu_custom_call.1} parent=55 // pred_region
          %s2599 = sand.u32 %s125, 1
          %s2600 = scalar_lea.sflag [#allocation6], %s2599
          %s2601 = sand.u32 %s125, 1
          %s2602 = smul.addr %s2601, 256
          %s2603 = scalar_lea.vmem [#allocation9], %s2602
          %2604 = dma.done %s2600, 4096
        $region60: #{tpu_custom_call.1} parent=55 // pred_fallthru
          _
        // Predicated region
        $region61: #{tpu_custom_call.1} parent=55 // pred_check
          %p2605 = pneg %p166
        $region62: #{tpu_custom_call.1} parent=55 // pred_check_branch
          %2607 = sbr.rel (%p2605) target = $region64
        $region63: #{tpu_custom_call.1} parent=55 // pred_region
          %s2608 = sand.u32 %s151, 1
          %s2609 = scalar_lea.sflag [#allocation11], %s2608
          %s2610 = sand.u32 %s151, 1
          %s2611 = smul.addr %s2610, 2
          %s2612 = scalar_lea.vmem [#allocation10], %s2611
          %2613 = dma.done %s2609, 32
        $region64: #{tpu_custom_call.1} parent=55 // pred_fallthru
          _
      $region56: #{tpu_custom_call.1} parent=5 // pred_fallthru
        _
    $region6: #{tpu_custom_call.1} parent=1 // loop_footer
      %s26 = sadd.s32 1, %s22
    $region7: #{tpu_custom_call.1} parent=1 // loop_footer_branch
      %21 = sbr.rel target = $region3
    $region8: #{tpu_custom_call.1} parent=1 // loop_exit
      _
    %2614 = vsyncpa [#allocation5], 1
    %s2615 = scalar_lea.sflag [#allocation5], 1
    %2616 = vsyncpa %s2615, 1
    %2617 = vsyncpa [#allocation8], 1
    %2618 = vsyncpa [#allocation6], 1
    %s2619 = scalar_lea.sflag [#allocation6], 1
    %2620 = vsyncpa %s2619, 1
    %2621 = vsyncpa [#allocation11], 1
    %s2622 = scalar_lea.sflag [#allocation11], 1
    %2623 = vsyncpa %s2622, 1

</llo_original>
